<compile_context>
chip_gen: v7x
topology: tpu7x:2x2x1
jax: 0.10.0
libtpu: 0.0.40
codegen_flags: <defaults>
</compile_context>

<pallas_src>
import math
from functools import partial

import jax
import jax.numpy as jnp
from jax import lax
from jax.experimental import pallas as pl
from jax.experimental.pallas import tpu as pltpu

QUERY_SIZE = 8      # H: LSTM hidden size / positional-table dim
MESSAGE_SIZE = 32   # M: fq/fk output features (folded away, never enters the kernel)
POS_N = 16          # rows of the positional table (= head input features)


def _round_up(x, m):
    return (x + m - 1) // m * m


def pos_table(n, dim):
    """Sin/cos positional table, matches PINN.pos_table (float32)."""
    pos = jnp.arange(n, dtype=jnp.float32)[:, None]                  # (n, 1)
    j = jnp.arange(dim)                                              # (dim,)
    denom = jnp.power(10000.0, (2.0 * (j // 2).astype(jnp.float32)) / dim)
    angle = pos / denom                                              # (n, dim)
    return jnp.where((j % 2) == 0, jnp.sin(angle), jnp.cos(angle)).astype(jnp.float32)


def _layout(action_dims):
    """Static row/lane offsets of the packed parameter slab (all Python ints)."""
    A, H = action_dims, QUERY_SIZE
    G = 4 * H
    lanes = max(G, POS_N, A)
    # Fail loudly instead of silently clipping (review correctness concern).
    assert A >= 1
    assert G <= 128 and POS_N <= 128 and A <= 128, "feature widths must fit 128 lanes"
    assert 2 * A <= 128 and 2 * H <= 128, "packed output rows must fit 128 lanes"
    r_whh = 0                        # W_hh^T                         (H, 4H)
    r_wact = H                       # W_ih[:, 1:1+A]^T               (A, 4H)
    r_ws = H + A                     # W_ih[:, 0]  (state column wt)  (1, 4H)
    r_b = H + A + 1                  # b_ih + b_hh                    (1, 4H)
    r_ct = _round_up(H + A + 2, 8)   # (pos @ Wq^T @ Wk)^T / sqrt(H)  (H, POS_N)
    r_hw = r_ct + H                  # head.weight^T                  (POS_N, A)
    r_hb = r_hw + POS_N              # head.bias                      (1, A)
    p_rows = _round_up(r_hb + 1, 8)
    return dict(A=A, H=H, G=G, lanes=lanes, r_whh=r_whh, r_wact=r_wact, r_ws=r_ws,
                r_b=r_b, r_ct=r_ct, r_hw=r_hw, r_hb=r_hb, p_rows=p_rows)


def build_param_slab(params):
    """Pack all constant weights (attention chain pre-folded) into one small slab.

    Built ONCE per parameter set; stays VMEM-resident for the whole in-kernel rollout.
    """
    A = params["head_b"].shape[0]
    L = _layout(A)
    H, G = L["H"], L["G"]
    slab = jnp.zeros((L["p_rows"], L["lanes"]), jnp.float32)
    slab = slab.at[L["r_whh"]:L["r_whh"] + H, 0:G].set(params["w_hh"].T.astype(jnp.float32))
    slab = slab.at[L["r_wact"]:L["r_wact"] + A, 0:G].set(
        params["w_ih"][:, 1:1 + A].T.astype(jnp.float32))
    slab = slab.at[L["r_ws"], 0:G].set(params["w_ih"][:, 0].astype(jnp.float32))
    slab = slab.at[L["r_b"], 0:G].set((params["b_ih"] + params["b_hh"]).astype(jnp.float32))
    # Fold the constant attention chain AND the 1/sqrt(H) scale at build time.
    c_fold = (params["pos_q"] @ params["w_q"].T @ params["w_k"]) * (1.0 / math.sqrt(H))
    slab = slab.at[L["r_ct"]:L["r_ct"] + H, 0:POS_N].set(c_fold.T.astype(jnp.float32))
    slab = slab.at[L["r_hw"]:L["r_hw"] + POS_N, 0:A].set(params["head_w"].T.astype(jnp.float32))
    slab = slab.at[L["r_hb"], 0:A].set(params["head_b"].astype(jnp.float32))
    return slab


def _pinn_rollout_kernel(params_ref, states_ref, gumbel_ref, pa0_ref, h0_ref, c0_ref,
                         hc_ref, pa_out_ref, *, L, T):
    A, H, G = L["A"], L["H"], L["G"]

    # Weights read once; VMEM-resident for the whole rollout.
    w_hh_t = params_ref[L["r_whh"]:L["r_whh"] + H, 0:G]       # (H, 4H)
    w_act_t = params_ref[L["r_wact"]:L["r_wact"] + A, 0:G]    # (A, 4H)
    w_state = params_ref[L["r_ws"]:L["r_ws"] + 1, 0:G]        # (1, 4H)
    bias = params_ref[L["r_b"]:L["r_b"] + 1, 0:G]             # (1, 4H)
    c_t = params_ref[L["r_ct"]:L["r_ct"] + H, 0:POS_N]        # (H, 16)  1/sqrt(H) folded
    head_wt = params_ref[L["r_hw"]:L["r_hw"] + POS_N, 0:A]    # (16, A)
    head_b = params_ref[L["r_hb"]:L["r_hb"] + 1, 0:A]         # (1, A)

    lane_iota = lax.broadcasted_iota(jnp.int32, (1, A), 1)
    subl_iota = lax.broadcasted_iota(jnp.int32, (A, 1), 0)

    h = h0_ref[...]                                           # (S, H)
    c = c0_ref[...]                                           # (S, H)
    pa_col = pa0_ref[...]                                     # (A, 1) one-hot (or zeros)

    # T is small and static -> fully unrolled at trace time.
    # TODO(synk): for long rollouts switch to lax.fori_loop (carries stay in vregs).
    for t in range(T):
        state_col = states_ref[t]                             # (S, 1)

        # ---- LSTMCell: only h @ W_hh^T goes to the MXU; state (rank-1) and
        # previous-action (one-hot column * W_act^T, sublane reduce) on VPU/XLU.
        pa_gates = jnp.sum(pa_col * w_act_t, axis=0, keepdims=True)              # (1, 4H)
        gates = (jnp.dot(h, w_hh_t, preferred_element_type=jnp.float32)
                 + state_col * w_state + pa_gates + bias)                        # (S, 4H)
        i_g = jax.nn.sigmoid(gates[:, 0:H])
        f_g = jax.nn.sigmoid(gates[:, H:2 * H])
        g_g = jnp.tanh(gates[:, 2 * H:3 * H])
        o_g = jax.nn.sigmoid(gates[:, 3 * H:4 * H])
        c = f_g * c + i_g * g_g
        h = o_g * jnp.tanh(c)

        # ---- attention with the constant chain folded:
        # attn^T = tanh(h @ C^T), m^T = state^T @ attn^T as VPU multiply + sublane reduce.
        attn_t = jnp.tanh(jnp.dot(h, c_t, preferred_element_type=jnp.float32))   # (S, 16)
        m_t = jnp.tanh(jnp.sum(state_col * attn_t, axis=0, keepdims=True))       # (1, 16)

        # ---- head + softmax (approx reciprocal on the otherwise-idle EUP slot).
        logits = jnp.dot(m_t, head_wt, preferred_element_type=jnp.float32) + head_b
        z = logits - jnp.max(logits, axis=-1, keepdims=True)
        e = jnp.exp(z)
        probs = e * pl.reciprocal(jnp.sum(e, axis=-1, keepdims=True), approx=True)

        # ---- categorical sample via Gumbel-max on the logits (== torch.multinomial
        # on softmax(logits)); one-hot built with iota == first-argmax (tie-safe).
        pert = logits + gumbel_ref[t:t + 1, 0:A]                                  # (1, A)
        is_max = pert == jnp.max(pert, axis=-1, keepdims=True)
        first = jnp.min(jnp.where(is_max, lane_iota, A), axis=-1, keepdims=True)  # (1, 1)
        onehot_row = (lane_iota == first).astype(jnp.float32)                     # (1, A)
        pa_col = (subl_iota == first).astype(jnp.float32)                         # (A, 1)

        pa_out_ref[t:t + 1, 0:A] = probs
        pa_out_ref[t:t + 1, A:2 * A] = onehot_row

    # Final LSTM state (module's self.hx), densely packed: h in lanes 0:H, c in H:2H.
    hc_ref[:, 0:H] = h
    hc_ref[:, H:2 * H] = c


@partial(jax.jit, static_argnames=("action_dims",))
def pinn_rollout(param_slab, states, prev_action, h0, c0, gumbel, *, action_dims):
    """Run T PINN forward steps inside one Pallas kernel.

    states:      (T, *state_shape)  per-step observations (the module flattens them)
    prev_action: (1, A)             one-hot (or zeros) previous action at t=0
    h0, c0:      (S, H)             initial LSTM state
    gumbel:      (T, A)             Gumbel(0,1) noise for the in-kernel categorical sample
    Returns (probs (T,A), onehot_actions (T,A), h_T (S,H), c_T (S,H)).
    """
    T = states.shape[0]
    L = _layout(action_dims)
    A, H = L["A"], L["H"]
    states_col = states.reshape(T, -1, 1).astype(jnp.float32)   # (T, S, 1) column per step
    S = states_col.shape[1]

    hc, pa = pl.pallas_call(
        partial(_pinn_rollout_kernel, L=L, T=T),
        out_shape=(jax.ShapeDtypeStruct((S, 2 * H), jnp.float32),
                   jax.ShapeDtypeStruct((T, 2 * A), jnp.float32)),
        in_specs=[pl.BlockSpec(memory_space=pltpu.MemorySpace.VMEM)] * 6,
        out_specs=(pl.BlockSpec(memory_space=pltpu.MemorySpace.VMEM),
                   pl.BlockSpec(memory_space=pltpu.MemorySpace.VMEM)),
    )(param_slab.astype(jnp.float32),
      states_col,
      gumbel.astype(jnp.float32),
      prev_action.reshape(-1, 1).astype(jnp.float32),   # (A, 1) column form
      h0.astype(jnp.float32),
      c0.astype(jnp.float32))

    probs = pa[:, 0:A]
    onehot = pa[:, A:2 * A]
    h_new = hc[:, 0:H]
    c_new = hc[:, H:2 * H]
    return probs, onehot, h_new, c_new


def init_params(key, action_dims):
    """Deterministic init mirroring the nn.Module __init__ shapes."""
    H, M = QUERY_SIZE, MESSAGE_SIZE
    ks = jax.random.split(key, 8)
    k_lstm = 1.0 / math.sqrt(H)
    k_lin = 1.0 / math.sqrt(H)
    k_head = 1.0 / math.sqrt(POS_N)
    u = lambda k, shape, b: jax.random.uniform(k, shape, jnp.float32, -b, b)
    return dict(
        w_ih=u(ks[0], (4 * H, action_dims + 1), k_lstm),
        w_hh=u(ks[1], (4 * H, H), k_lstm),
        b_ih=u(ks[2], (4 * H,), k_lstm),
        b_hh=u(ks[3], (4 * H,), k_lstm),
        w_q=u(ks[4], (M, H), k_lin),          # fq.weight
        w_k=u(ks[5], (M, H), k_lin),          # fk.weight
        head_w=u(ks[6], (action_dims, POS_N), k_head),
        head_b=u(ks[7], (action_dims,), k_head),
        pos_q=pos_table(POS_N, H),
    )


def pinn_reference_rollout(params, states, prev_action, h0, c0, gumbel):
    """Pure-JAX reference of the PyTorch forward, rolled out T steps with the same noise."""
    H = QUERY_SIZE
    A = params["head_b"].shape[0]
    T = states.shape[0]
    h, c, pa = h0, c0, prev_action
    probs_all, onehot_all = [], []
    for t in range(T):
        state_col = states[t].reshape(-1, 1).astype(jnp.float32)
        S = state_col.shape[0]
        x_pa = jnp.concatenate([state_col, jnp.broadcast_to(pa, (S, A))], axis=-1)
        gates = (x_pa @ params["w_ih"].T + params["b_ih"]
                 + h @ params["w_hh"].T + params["b_hh"])
        i_g = jax.nn.sigmoid(gates[:, 0:H])
        f_g = jax.nn.sigmoid(gates[:, H:2 * H])
        g_g = jnp.tanh(gates[:, 2 * H:3 * H])
        o_g = jax.nn.sigmoid(gates[:, 3 * H:4 * H])
        c = f_g * c + i_g * g_g
        h = o_g * jnp.tanh(c)
        q = params["pos_q"] @ params["w_q"].T
        k = h @ params["w_k"].T
        attn = jnp.tanh((q @ k.T) / math.sqrt(H))
        m = jnp.tanh(attn @ state_col)
        logits = m.T @ params["head_w"].T + params["head_b"]
        probs_all.append(jax.nn.softmax(logits, axis=-1)[0])
        action = jnp.argmax(logits[0] + gumbel[t])
        onehot = jax.nn.one_hot(action, A, dtype=jnp.float32)
        onehot_all.append(onehot)
        pa = onehot[None, :]
    return jnp.stack(probs_all), jnp.stack(onehot_all), h, c


if __name__ == "__main__":
    ACTION_DIMS = 4
    T_STEPS = 8
    key = jax.random.PRNGKey(0)
    k_param, k_state, k_noise = jax.random.split(key, 3)

    params = init_params(k_param, ACTION_DIMS)
    param_slab = build_param_slab(params)        # built once; reused for every rollout

    # T observations of arbitrary shape; the module flattens each. (2, 8) -> S = 16.
    states = jax.random.normal(k_state, (T_STEPS, 2, 8), dtype=jnp.float32)
    S = states[0].size

    # module reset() state: hx = zeros, previous_action = zeros.
    prev_action = jnp.zeros((1, ACTION_DIMS), jnp.float32)
    h0 = jnp.zeros((S, QUERY_SIZE), jnp.float32)
    c0 = jnp.zeros((S, QUERY_SIZE), jnp.float32)

    # Host-supplied Gumbel noise -> the in-kernel Gumbel-max argmax is an exact
    # categorical sample (same distribution as torch.multinomial on the softmax).
    gumbel = jax.random.gumbel(k_noise, (T_STEPS, ACTION_DIMS), jnp.float32)

    probs, onehot, h_T, c_T = pinn_rollout(param_slab, states, prev_action, h0, c0,
                                           gumbel, action_dims=ACTION_DIMS)
    jax.block_until_ready((probs, onehot, h_T, c_T))

    # Validate the entire rollout (actions feed back into the next step) against the
    # pure-JAX reference driven by the same noise.
    r_probs, r_onehot, r_h, r_c = pinn_reference_rollout(params, states, prev_action,
                                                         h0, c0, gumbel)
    assert jnp.array_equal(onehot, r_onehot), "sampled action sequence diverged"
    assert jnp.allclose(probs, r_probs, atol=2e-3)        # approx-reciprocal softmax
    assert jnp.allclose(h_T, r_h, atol=1e-4, rtol=1e-4)
    assert jnp.allclose(c_T, r_c, atol=1e-4, rtol=1e-4)

    actions = jnp.argmax(onehot, axis=-1)   # per-step action indices (module's return value)
    jax.block_until_ready(actions)

    print("KERNEL_OK")
</pallas_src>

<mosaic_0001>
module attributes {stable_mosaic.version = 11 : i64} {
  func.func @_pinn_rollout_kernel(%arg0: memref<48x32xf32, #tpu.memory_space<vmem>>, %arg1: memref<8x16x1xf32, #tpu.memory_space<vmem>>, %arg2: memref<8x4xf32, #tpu.memory_space<vmem>>, %arg3: memref<4x1xf32, #tpu.memory_space<vmem>>, %arg4: memref<16x8xf32, #tpu.memory_space<vmem>>, %arg5: memref<16x8xf32, #tpu.memory_space<vmem>>, %arg6: memref<16x16xf32, #tpu.memory_space<vmem>>, %arg7: memref<8x8xf32, #tpu.memory_space<vmem>>) attributes {dimension_semantics = [], scalar_prefetch = 0 : i64, scratch_operands = 0 : i64, tpu.core_type = #tpu.core_type<tc>} {
    %c0 = arith.constant 0 : index
    %c0_0 = arith.constant 0 : index
    %0 = vector.load %arg0[%c0, %c0_0] : memref<48x32xf32, #tpu.memory_space<vmem>>, vector<8x32xf32>
    %c8 = arith.constant 8 : index
    %c0_1 = arith.constant 0 : index
    %1 = vector.load %arg0[%c8, %c0_1] : memref<48x32xf32, #tpu.memory_space<vmem>>, vector<4x32xf32>
    %c12 = arith.constant 12 : index
    %c0_2 = arith.constant 0 : index
    %2 = vector.load %arg0[%c12, %c0_2] : memref<48x32xf32, #tpu.memory_space<vmem>>, vector<1x32xf32>
    %c13 = arith.constant 13 : index
    %c0_3 = arith.constant 0 : index
    %3 = vector.load %arg0[%c13, %c0_3] : memref<48x32xf32, #tpu.memory_space<vmem>>, vector<1x32xf32>
    %c16 = arith.constant 16 : index
    %c0_4 = arith.constant 0 : index
    %4 = vector.load %arg0[%c16, %c0_4] : memref<48x32xf32, #tpu.memory_space<vmem>>, vector<8x16xf32>
    %c24 = arith.constant 24 : index
    %c0_5 = arith.constant 0 : index
    %5 = vector.load %arg0[%c24, %c0_5] : memref<48x32xf32, #tpu.memory_space<vmem>>, vector<16x4xf32>
    %c40 = arith.constant 40 : index
    %c0_6 = arith.constant 0 : index
    %6 = vector.load %arg0[%c40, %c0_6] : memref<48x32xf32, #tpu.memory_space<vmem>>, vector<1x4xf32>
    %7 = tpu.iota {dimensions = array<i32: 1>} : vector<1x4xi32>
    %8 = tpu.iota {dimensions = array<i32: 0>} : vector<4x1xi32>
    %c0_7 = arith.constant 0 : index
    %c0_8 = arith.constant 0 : index
    %9 = vector.load %arg4[%c0_7, %c0_8] : memref<16x8xf32, #tpu.memory_space<vmem>>, vector<16x8xf32>
    %c0_9 = arith.constant 0 : index
    %c0_10 = arith.constant 0 : index
    %10 = vector.load %arg5[%c0_9, %c0_10] : memref<16x8xf32, #tpu.memory_space<vmem>>, vector<16x8xf32>
    %c0_11 = arith.constant 0 : index
    %c0_12 = arith.constant 0 : index
    %11 = vector.load %arg3[%c0_11, %c0_12] : memref<4x1xf32, #tpu.memory_space<vmem>>, vector<4x1xf32>
    %c0_13 = arith.constant 0 : index
    %c0_14 = arith.constant 0 : index
    %c0_15 = arith.constant 0 : index
    %12 = vector.load %arg1[%c0_13, %c0_14, %c0_15] : memref<8x16x1xf32, #tpu.memory_space<vmem>>, vector<1x16x1xf32>
    %13 = vector.shape_cast %12 : vector<1x16x1xf32> to vector<16x1xf32>
    %14 = vector.broadcast %11 : vector<4x1xf32> to vector<4x32xf32>
    %15 = arith.mulf %14, %1 : vector<4x32xf32>
    %cst = arith.constant dense<0.000000e+00> : vector<32xf32>
    %16 = vector.multi_reduction <add>, %15, %cst [0] : vector<4x32xf32> to vector<32xf32>
    %17 = vector.shape_cast %16 : vector<32xf32> to vector<1x32xf32>
    %cst_16 = arith.constant dense<0.000000e+00> : vector<16x32xf32>
    %18 = tpu.matmul %9, %0, %cst_16 {dimension_numbers = #tpu.dot_dimension_numbers<[1], [0], [0], [1], [0, 0, 1, 1], [], []>} : vector<16x8xf32>, vector<8x32xf32>, vector<16x32xf32> -> vector<16x32xf32>
    %19 = vector.broadcast %13 : vector<16x1xf32> to vector<16x32xf32>
    %20 = vector.broadcast %2 : vector<1x32xf32> to vector<16x32xf32>
    %21 = arith.mulf %19, %20 : vector<16x32xf32>
    %22 = arith.addf %18, %21 : vector<16x32xf32>
    %23 = vector.broadcast %17 : vector<1x32xf32> to vector<16x32xf32>
    %24 = arith.addf %22, %23 : vector<16x32xf32>
    %25 = vector.broadcast %3 : vector<1x32xf32> to vector<16x32xf32>
    %26 = arith.addf %24, %25 : vector<16x32xf32>
    %27 = vector.extract_strided_slice %26 {offsets = [0, 0], sizes = [16, 8], strides = [1, 1]} : vector<16x32xf32> to vector<16x8xf32>
    %28 = arith.negf %27 : vector<16x8xf32>
    %29 = math.exp %28 : vector<16x8xf32>
    %cst_17 = arith.constant 1.000000e+00 : f32
    %30 = vector.broadcast %cst_17 : f32 to vector<16x8xf32>
    %31 = arith.addf %30, %29 : vector<16x8xf32>
    %32 = arith.divf %30, %31 : vector<16x8xf32>
    %33 = vector.extract_strided_slice %26 {offsets = [0, 8], sizes = [16, 8], strides = [1, 1]} : vector<16x32xf32> to vector<16x8xf32>
    %34 = arith.negf %33 : vector<16x8xf32>
    %35 = math.exp %34 : vector<16x8xf32>
    %cst_18 = arith.constant 1.000000e+00 : f32
    %36 = vector.broadcast %cst_18 : f32 to vector<16x8xf32>
    %37 = arith.addf %36, %35 : vector<16x8xf32>
    %38 = arith.divf %36, %37 : vector<16x8xf32>
    %39 = vector.extract_strided_slice %26 {offsets = [0, 16], sizes = [16, 8], strides = [1, 1]} : vector<16x32xf32> to vector<16x8xf32>
    %40 = math.tanh %39 : vector<16x8xf32>
    %41 = vector.extract_strided_slice %26 {offsets = [0, 24], sizes = [16, 8], strides = [1, 1]} : vector<16x32xf32> to vector<16x8xf32>
    %42 = arith.negf %41 : vector<16x8xf32>
    %43 = math.exp %42 : vector<16x8xf32>
    %cst_19 = arith.constant 1.000000e+00 : f32
    %44 = vector.broadcast %cst_19 : f32 to vector<16x8xf32>
    %45 = arith.addf %44, %43 : vector<16x8xf32>
    %46 = arith.divf %44, %45 : vector<16x8xf32>
    %47 = arith.mulf %38, %10 : vector<16x8xf32>
    %48 = arith.mulf %32, %40 : vector<16x8xf32>
    %49 = arith.addf %47, %48 : vector<16x8xf32>
    %50 = math.tanh %49 : vector<16x8xf32>
    %51 = arith.mulf %46, %50 : vector<16x8xf32>
    %cst_20 = arith.constant dense<0.000000e+00> : vector<16x16xf32>
    %52 = tpu.matmul %51, %4, %cst_20 {dimension_numbers = #tpu.dot_dimension_numbers<[1], [0], [0], [1], [0, 0, 1, 1], [], []>} : vector<16x8xf32>, vector<8x16xf32>, vector<16x16xf32> -> vector<16x16xf32>
    %53 = math.tanh %52 : vector<16x16xf32>
    %54 = vector.broadcast %13 : vector<16x1xf32> to vector<16x16xf32>
    %55 = arith.mulf %54, %53 : vector<16x16xf32>
    %cst_21 = arith.constant dense<0.000000e+00> : vector<16xf32>
    %56 = vector.multi_reduction <add>, %55, %cst_21 [0] : vector<16x16xf32> to vector<16xf32>
    %57 = vector.shape_cast %56 : vector<16xf32> to vector<1x16xf32>
    %58 = math.tanh %57 : vector<1x16xf32>
    %cst_22 = arith.constant dense<0.000000e+00> : vector<1x4xf32>
    %59 = tpu.matmul %58, %5, %cst_22 {dimension_numbers = #tpu.dot_dimension_numbers<[1], [0], [0], [1], [0, 0, 1, 1], [], []>} : vector<1x16xf32>, vector<16x4xf32>, vector<1x4xf32> -> vector<1x4xf32>
    %60 = arith.addf %59, %6 : vector<1x4xf32>
    %cst_23 = arith.constant dense<0xFF800000> : vector<1xf32>
    %61 = vector.multi_reduction <maximumf>, %60, %cst_23 [1] : vector<1x4xf32> to vector<1xf32>
    %62 = vector.shape_cast %61 : vector<1xf32> to vector<1x1xf32>
    %63 = vector.broadcast %62 : vector<1x1xf32> to vector<1x4xf32>
    %64 = arith.subf %60, %63 : vector<1x4xf32>
    %65 = math.exp %64 : vector<1x4xf32>
    %cst_24 = arith.constant dense<0.000000e+00> : vector<1xf32>
    %66 = vector.multi_reduction <add>, %65, %cst_24 [1] : vector<1x4xf32> to vector<1xf32>
    %67 = vector.shape_cast %66 : vector<1xf32> to vector<1x1xf32>
    %68 = tpu.reciprocal %67 {approx = true} : vector<1x1xf32> -> vector<1x1xf32>
    %69 = vector.broadcast %68 : vector<1x1xf32> to vector<1x4xf32>
    %70 = arith.mulf %65, %69 : vector<1x4xf32>
    %c0_25 = arith.constant 0 : index
    %c0_26 = arith.constant 0 : index
    %71 = vector.load %arg2[%c0_25, %c0_26] : memref<8x4xf32, #tpu.memory_space<vmem>>, vector<1x4xf32>
    %72 = arith.addf %60, %71 : vector<1x4xf32>
    %cst_27 = arith.constant dense<0xFF800000> : vector<1xf32>
    %73 = vector.multi_reduction <maximumf>, %72, %cst_27 [1] : vector<1x4xf32> to vector<1xf32>
    %74 = vector.shape_cast %73 : vector<1xf32> to vector<1x1xf32>
    %75 = vector.broadcast %74 : vector<1x1xf32> to vector<1x4xf32>
    %76 = arith.cmpf oeq, %72, %75 : vector<1x4xf32>
    %c4_i32 = arith.constant 4 : i32
    %77 = vector.broadcast %c4_i32 : i32 to vector<1x4xi32>
    %78 = arith.select %76, %7, %77 : vector<1x4xi1>, vector<1x4xi32>
    %cst_28 = arith.constant dense<2147483647> : vector<1xi32>
    %79 = vector.multi_reduction <minsi>, %78, %cst_28 [1] : vector<1x4xi32> to vector<1xi32>
    %80 = vector.shape_cast %79 : vector<1xi32> to vector<1x1xi32>
    %81 = vector.broadcast %80 : vector<1x1xi32> to vector<1x4xi32>
    %82 = arith.cmpi eq, %7, %81 : vector<1x4xi32>
    %83 = arith.extui %82 : vector<1x4xi1> to vector<1x4xi32>
    %84 = arith.sitofp %83 : vector<1x4xi32> to vector<1x4xf32>
    %85 = vector.broadcast %80 : vector<1x1xi32> to vector<4x1xi32>
    %86 = arith.cmpi eq, %8, %85 : vector<4x1xi32>
    %87 = arith.extui %86 : vector<4x1xi1> to vector<4x1xi32>
    %88 = arith.sitofp %87 : vector<4x1xi32> to vector<4x1xf32>
    %c0_29 = arith.constant 0 : index
    %c0_30 = arith.constant 0 : index
    %89 = vector.load %arg7[%c0_29, %c0_30] : memref<8x8xf32, #tpu.memory_space<vmem>>, vector<1x4xf32>
    tpu.vector_store %arg7[%c0_29, %c0_30], %70 {strides = array<i32>} : memref<8x8xf32, #tpu.memory_space<vmem>>, vector<1x4xf32>,
    %c0_31 = arith.constant 0 : index
    %c4 = arith.constant 4 : index
    %90 = vector.load %arg7[%c0_31, %c4] : memref<8x8xf32, #tpu.memory_space<vmem>>, vector<1x4xf32>
    tpu.vector_store %arg7[%c0_31, %c4], %84 {strides = array<i32>} : memref<8x8xf32, #tpu.memory_space<vmem>>, vector<1x4xf32>,
    %c1 = arith.constant 1 : index
    %c0_32 = arith.constant 0 : index
    %c0_33 = arith.constant 0 : index
    %91 = vector.load %arg1[%c1, %c0_32, %c0_33] : memref<8x16x1xf32, #tpu.memory_space<vmem>>, vector<1x16x1xf32>
    %92 = vector.shape_cast %91 : vector<1x16x1xf32> to vector<16x1xf32>
    %93 = vector.broadcast %88 : vector<4x1xf32> to vector<4x32xf32>
    %94 = arith.mulf %93, %1 : vector<4x32xf32>
    %cst_34 = arith.constant dense<0.000000e+00> : vector<32xf32>
    %95 = vector.multi_reduction <add>, %94, %cst_34 [0] : vector<4x32xf32> to vector<32xf32>
    %96 = vector.shape_cast %95 : vector<32xf32> to vector<1x32xf32>
    %cst_35 = arith.constant dense<0.000000e+00> : vector<16x32xf32>
    %97 = tpu.matmul %51, %0, %cst_35 {dimension_numbers = #tpu.dot_dimension_numbers<[1], [0], [0], [1], [0, 0, 1, 1], [], []>} : vector<16x8xf32>, vector<8x32xf32>, vector<16x32xf32> -> vector<16x32xf32>
    %98 = vector.broadcast %92 : vector<16x1xf32> to vector<16x32xf32>
    %99 = vector.broadcast %2 : vector<1x32xf32> to vector<16x32xf32>
    %100 = arith.mulf %98, %99 : vector<16x32xf32>
    %101 = arith.addf %97, %100 : vector<16x32xf32>
    %102 = vector.broadcast %96 : vector<1x32xf32> to vector<16x32xf32>
    %103 = arith.addf %101, %102 : vector<16x32xf32>
    %104 = vector.broadcast %3 : vector<1x32xf32> to vector<16x32xf32>
    %105 = arith.addf %103, %104 : vector<16x32xf32>
    %106 = vector.extract_strided_slice %105 {offsets = [0, 0], sizes = [16, 8], strides = [1, 1]} : vector<16x32xf32> to vector<16x8xf32>
    %107 = arith.negf %106 : vector<16x8xf32>
    %108 = math.exp %107 : vector<16x8xf32>
    %cst_36 = arith.constant 1.000000e+00 : f32
    %109 = vector.broadcast %cst_36 : f32 to vector<16x8xf32>
    %110 = arith.addf %109, %108 : vector<16x8xf32>
    %111 = arith.divf %109, %110 : vector<16x8xf32>
    %112 = vector.extract_strided_slice %105 {offsets = [0, 8], sizes = [16, 8], strides = [1, 1]} : vector<16x32xf32> to vector<16x8xf32>
    %113 = arith.negf %112 : vector<16x8xf32>
    %114 = math.exp %113 : vector<16x8xf32>
    %cst_37 = arith.constant 1.000000e+00 : f32
    %115 = vector.broadcast %cst_37 : f32 to vector<16x8xf32>
    %116 = arith.addf %115, %114 : vector<16x8xf32>
    %117 = arith.divf %115, %116 : vector<16x8xf32>
    %118 = vector.extract_strided_slice %105 {offsets = [0, 16], sizes = [16, 8], strides = [1, 1]} : vector<16x32xf32> to vector<16x8xf32>
    %119 = math.tanh %118 : vector<16x8xf32>
    %120 = vector.extract_strided_slice %105 {offsets = [0, 24], sizes = [16, 8], strides = [1, 1]} : vector<16x32xf32> to vector<16x8xf32>
    %121 = arith.negf %120 : vector<16x8xf32>
    %122 = math.exp %121 : vector<16x8xf32>
    %cst_38 = arith.constant 1.000000e+00 : f32
    %123 = vector.broadcast %cst_38 : f32 to vector<16x8xf32>
    %124 = arith.addf %123, %122 : vector<16x8xf32>
    %125 = arith.divf %123, %124 : vector<16x8xf32>
    %126 = arith.mulf %117, %49 : vector<16x8xf32>
    %127 = arith.mulf %111, %119 : vector<16x8xf32>
    %128 = arith.addf %126, %127 : vector<16x8xf32>
    %129 = math.tanh %128 : vector<16x8xf32>
    %130 = arith.mulf %125, %129 : vector<16x8xf32>
    %cst_39 = arith.constant dense<0.000000e+00> : vector<16x16xf32>
    %131 = tpu.matmul %130, %4, %cst_39 {dimension_numbers = #tpu.dot_dimension_numbers<[1], [0], [0], [1], [0, 0, 1, 1], [], []>} : vector<16x8xf32>, vector<8x16xf32>, vector<16x16xf32> -> vector<16x16xf32>
    %132 = math.tanh %131 : vector<16x16xf32>
    %133 = vector.broadcast %92 : vector<16x1xf32> to vector<16x16xf32>
    %134 = arith.mulf %133, %132 : vector<16x16xf32>
    %cst_40 = arith.constant dense<0.000000e+00> : vector<16xf32>
    %135 = vector.multi_reduction <add>, %134, %cst_40 [0] : vector<16x16xf32> to vector<16xf32>
    %136 = vector.shape_cast %135 : vector<16xf32> to vector<1x16xf32>
    %137 = math.tanh %136 : vector<1x16xf32>
    %cst_41 = arith.constant dense<0.000000e+00> : vector<1x4xf32>
    %138 = tpu.matmul %137, %5, %cst_41 {dimension_numbers = #tpu.dot_dimension_numbers<[1], [0], [0], [1], [0, 0, 1, 1], [], []>} : vector<1x16xf32>, vector<16x4xf32>, vector<1x4xf32> -> vector<1x4xf32>
    %139 = arith.addf %138, %6 : vector<1x4xf32>
    %cst_42 = arith.constant dense<0xFF800000> : vector<1xf32>
    %140 = vector.multi_reduction <maximumf>, %139, %cst_42 [1] : vector<1x4xf32> to vector<1xf32>
    %141 = vector.shape_cast %140 : vector<1xf32> to vector<1x1xf32>
    %142 = vector.broadcast %141 : vector<1x1xf32> to vector<1x4xf32>
    %143 = arith.subf %139, %142 : vector<1x4xf32>
    %144 = math.exp %143 : vector<1x4xf32>
    %cst_43 = arith.constant dense<0.000000e+00> : vector<1xf32>
    %145 = vector.multi_reduction <add>, %144, %cst_43 [1] : vector<1x4xf32> to vector<1xf32>
    %146 = vector.shape_cast %145 : vector<1xf32> to vector<1x1xf32>
    %147 = tpu.reciprocal %146 {approx = true} : vector<1x1xf32> -> vector<1x1xf32>
    %148 = vector.broadcast %147 : vector<1x1xf32> to vector<1x4xf32>
    %149 = arith.mulf %144, %148 : vector<1x4xf32>
    %c1_44 = arith.constant 1 : index
    %c0_45 = arith.constant 0 : index
    %150 = vector.load %arg2[%c1_44, %c0_45] : memref<8x4xf32, #tpu.memory_space<vmem>>, vector<1x4xf32>
    %151 = arith.addf %139, %150 : vector<1x4xf32>
    %cst_46 = arith.constant dense<0xFF800000> : vector<1xf32>
    %152 = vector.multi_reduction <maximumf>, %151, %cst_46 [1] : vector<1x4xf32> to vector<1xf32>
    %153 = vector.shape_cast %152 : vector<1xf32> to vector<1x1xf32>
    %154 = vector.broadcast %153 : vector<1x1xf32> to vector<1x4xf32>
    %155 = arith.cmpf oeq, %151, %154 : vector<1x4xf32>
    %c4_i32_47 = arith.constant 4 : i32
    %156 = vector.broadcast %c4_i32_47 : i32 to vector<1x4xi32>
    %157 = arith.select %155, %7, %156 : vector<1x4xi1>, vector<1x4xi32>
    %cst_48 = arith.constant dense<2147483647> : vector<1xi32>
    %158 = vector.multi_reduction <minsi>, %157, %cst_48 [1] : vector<1x4xi32> to vector<1xi32>
    %159 = vector.shape_cast %158 : vector<1xi32> to vector<1x1xi32>
    %160 = vector.broadcast %159 : vector<1x1xi32> to vector<1x4xi32>
    %161 = arith.cmpi eq, %7, %160 : vector<1x4xi32>
    %162 = arith.extui %161 : vector<1x4xi1> to vector<1x4xi32>
    %163 = arith.sitofp %162 : vector<1x4xi32> to vector<1x4xf32>
    %164 = vector.broadcast %159 : vector<1x1xi32> to vector<4x1xi32>
    %165 = arith.cmpi eq, %8, %164 : vector<4x1xi32>
    %166 = arith.extui %165 : vector<4x1xi1> to vector<4x1xi32>
    %167 = arith.sitofp %166 : vector<4x1xi32> to vector<4x1xf32>
    %c1_49 = arith.constant 1 : index
    %c0_50 = arith.constant 0 : index
    %168 = vector.load %arg7[%c1_49, %c0_50] : memref<8x8xf32, #tpu.memory_space<vmem>>, vector<1x4xf32>
    tpu.vector_store %arg7[%c1_49, %c0_50], %149 {strides = array<i32>} : memref<8x8xf32, #tpu.memory_space<vmem>>, vector<1x4xf32>,
    %c1_51 = arith.constant 1 : index
    %c4_52 = arith.constant 4 : index
    %169 = vector.load %arg7[%c1_51, %c4_52] : memref<8x8xf32, #tpu.memory_space<vmem>>, vector<1x4xf32>
    tpu.vector_store %arg7[%c1_51, %c4_52], %163 {strides = array<i32>} : memref<8x8xf32, #tpu.memory_space<vmem>>, vector<1x4xf32>,
    %c2 = arith.constant 2 : index
    %c0_53 = arith.constant 0 : index
    %c0_54 = arith.constant 0 : index
    %170 = vector.load %arg1[%c2, %c0_53, %c0_54] : memref<8x16x1xf32, #tpu.memory_space<vmem>>, vector<1x16x1xf32>
    %171 = vector.shape_cast %170 : vector<1x16x1xf32> to vector<16x1xf32>
    %172 = vector.broadcast %167 : vector<4x1xf32> to vector<4x32xf32>
    %173 = arith.mulf %172, %1 : vector<4x32xf32>
    %cst_55 = arith.constant dense<0.000000e+00> : vector<32xf32>
    %174 = vector.multi_reduction <add>, %173, %cst_55 [0] : vector<4x32xf32> to vector<32xf32>
    %175 = vector.shape_cast %174 : vector<32xf32> to vector<1x32xf32>
    %cst_56 = arith.constant dense<0.000000e+00> : vector<16x32xf32>
    %176 = tpu.matmul %130, %0, %cst_56 {dimension_numbers = #tpu.dot_dimension_numbers<[1], [0], [0], [1], [0, 0, 1, 1], [], []>} : vector<16x8xf32>, vector<8x32xf32>, vector<16x32xf32> -> vector<16x32xf32>
    %177 = vector.broadcast %171 : vector<16x1xf32> to vector<16x32xf32>
    %178 = vector.broadcast %2 : vector<1x32xf32> to vector<16x32xf32>
    %179 = arith.mulf %177, %178 : vector<16x32xf32>
    %180 = arith.addf %176, %179 : vector<16x32xf32>
    %181 = vector.broadcast %175 : vector<1x32xf32> to vector<16x32xf32>
    %182 = arith.addf %180, %181 : vector<16x32xf32>
    %183 = vector.broadcast %3 : vector<1x32xf32> to vector<16x32xf32>
    %184 = arith.addf %182, %183 : vector<16x32xf32>
    %185 = vector.extract_strided_slice %184 {offsets = [0, 0], sizes = [16, 8], strides = [1, 1]} : vector<16x32xf32> to vector<16x8xf32>
    %186 = arith.negf %185 : vector<16x8xf32>
    %187 = math.exp %186 : vector<16x8xf32>
    %cst_57 = arith.constant 1.000000e+00 : f32
    %188 = vector.broadcast %cst_57 : f32 to vector<16x8xf32>
    %189 = arith.addf %188, %187 : vector<16x8xf32>
    %190 = arith.divf %188, %189 : vector<16x8xf32>
    %191 = vector.extract_strided_slice %184 {offsets = [0, 8], sizes = [16, 8], strides = [1, 1]} : vector<16x32xf32> to vector<16x8xf32>
    %192 = arith.negf %191 : vector<16x8xf32>
    %193 = math.exp %192 : vector<16x8xf32>
    %cst_58 = arith.constant 1.000000e+00 : f32
    %194 = vector.broadcast %cst_58 : f32 to vector<16x8xf32>
    %195 = arith.addf %194, %193 : vector<16x8xf32>
    %196 = arith.divf %194, %195 : vector<16x8xf32>
    %197 = vector.extract_strided_slice %184 {offsets = [0, 16], sizes = [16, 8], strides = [1, 1]} : vector<16x32xf32> to vector<16x8xf32>
    %198 = math.tanh %197 : vector<16x8xf32>
    %199 = vector.extract_strided_slice %184 {offsets = [0, 24], sizes = [16, 8], strides = [1, 1]} : vector<16x32xf32> to vector<16x8xf32>
    %200 = arith.negf %199 : vector<16x8xf32>
    %201 = math.exp %200 : vector<16x8xf32>
    %cst_59 = arith.constant 1.000000e+00 : f32
    %202 = vector.broadcast %cst_59 : f32 to vector<16x8xf32>
    %203 = arith.addf %202, %201 : vector<16x8xf32>
    %204 = arith.divf %202, %203 : vector<16x8xf32>
    %205 = arith.mulf %196, %128 : vector<16x8xf32>
    %206 = arith.mulf %190, %198 : vector<16x8xf32>
    %207 = arith.addf %205, %206 : vector<16x8xf32>
    %208 = math.tanh %207 : vector<16x8xf32>
    %209 = arith.mulf %204, %208 : vector<16x8xf32>
    %cst_60 = arith.constant dense<0.000000e+00> : vector<16x16xf32>
    %210 = tpu.matmul %209, %4, %cst_60 {dimension_numbers = #tpu.dot_dimension_numbers<[1], [0], [0], [1], [0, 0, 1, 1], [], []>} : vector<16x8xf32>, vector<8x16xf32>, vector<16x16xf32> -> vector<16x16xf32>
    %211 = math.tanh %210 : vector<16x16xf32>
    %212 = vector.broadcast %171 : vector<16x1xf32> to vector<16x16xf32>
    %213 = arith.mulf %212, %211 : vector<16x16xf32>
    %cst_61 = arith.constant dense<0.000000e+00> : vector<16xf32>
    %214 = vector.multi_reduction <add>, %213, %cst_61 [0] : vector<16x16xf32> to vector<16xf32>
    %215 = vector.shape_cast %214 : vector<16xf32> to vector<1x16xf32>
    %216 = math.tanh %215 : vector<1x16xf32>
    %cst_62 = arith.constant dense<0.000000e+00> : vector<1x4xf32>
    %217 = tpu.matmul %216, %5, %cst_62 {dimension_numbers = #tpu.dot_dimension_numbers<[1], [0], [0], [1], [0, 0, 1, 1], [], []>} : vector<1x16xf32>, vector<16x4xf32>, vector<1x4xf32> -> vector<1x4xf32>
    %218 = arith.addf %217, %6 : vector<1x4xf32>
    %cst_63 = arith.constant dense<0xFF800000> : vector<1xf32>
    %219 = vector.multi_reduction <maximumf>, %218, %cst_63 [1] : vector<1x4xf32> to vector<1xf32>
    %220 = vector.shape_cast %219 : vector<1xf32> to vector<1x1xf32>
    %221 = vector.broadcast %220 : vector<1x1xf32> to vector<1x4xf32>
    %222 = arith.subf %218, %221 : vector<1x4xf32>
    %223 = math.exp %222 : vector<1x4xf32>
    %cst_64 = arith.constant dense<0.000000e+00> : vector<1xf32>
    %224 = vector.multi_reduction <add>, %223, %cst_64 [1] : vector<1x4xf32> to vector<1xf32>
    %225 = vector.shape_cast %224 : vector<1xf32> to vector<1x1xf32>
    %226 = tpu.reciprocal %225 {approx = true} : vector<1x1xf32> -> vector<1x1xf32>
    %227 = vector.broadcast %226 : vector<1x1xf32> to vector<1x4xf32>
    %228 = arith.mulf %223, %227 : vector<1x4xf32>
    %c2_65 = arith.constant 2 : index
    %c0_66 = arith.constant 0 : index
    %229 = vector.load %arg2[%c2_65, %c0_66] : memref<8x4xf32, #tpu.memory_space<vmem>>, vector<1x4xf32>
    %230 = arith.addf %218, %229 : vector<1x4xf32>
    %cst_67 = arith.constant dense<0xFF800000> : vector<1xf32>
    %231 = vector.multi_reduction <maximumf>, %230, %cst_67 [1] : vector<1x4xf32> to vector<1xf32>
    %232 = vector.shape_cast %231 : vector<1xf32> to vector<1x1xf32>
    %233 = vector.broadcast %232 : vector<1x1xf32> to vector<1x4xf32>
    %234 = arith.cmpf oeq, %230, %233 : vector<1x4xf32>
    %c4_i32_68 = arith.constant 4 : i32
    %235 = vector.broadcast %c4_i32_68 : i32 to vector<1x4xi32>
    %236 = arith.select %234, %7, %235 : vector<1x4xi1>, vector<1x4xi32>
    %cst_69 = arith.constant dense<2147483647> : vector<1xi32>
    %237 = vector.multi_reduction <minsi>, %236, %cst_69 [1] : vector<1x4xi32> to vector<1xi32>
    %238 = vector.shape_cast %237 : vector<1xi32> to vector<1x1xi32>
    %239 = vector.broadcast %238 : vector<1x1xi32> to vector<1x4xi32>
    %240 = arith.cmpi eq, %7, %239 : vector<1x4xi32>
    %241 = arith.extui %240 : vector<1x4xi1> to vector<1x4xi32>
    %242 = arith.sitofp %241 : vector<1x4xi32> to vector<1x4xf32>
    %243 = vector.broadcast %238 : vector<1x1xi32> to vector<4x1xi32>
    %244 = arith.cmpi eq, %8, %243 : vector<4x1xi32>
    %245 = arith.extui %244 : vector<4x1xi1> to vector<4x1xi32>
    %246 = arith.sitofp %245 : vector<4x1xi32> to vector<4x1xf32>
    %c2_70 = arith.constant 2 : index
    %c0_71 = arith.constant 0 : index
    %247 = vector.load %arg7[%c2_70, %c0_71] : memref<8x8xf32, #tpu.memory_space<vmem>>, vector<1x4xf32>
    tpu.vector_store %arg7[%c2_70, %c0_71], %228 {strides = array<i32>} : memref<8x8xf32, #tpu.memory_space<vmem>>, vector<1x4xf32>,
    %c2_72 = arith.constant 2 : index
    %c4_73 = arith.constant 4 : index
    %248 = vector.load %arg7[%c2_72, %c4_73] : memref<8x8xf32, #tpu.memory_space<vmem>>, vector<1x4xf32>
    tpu.vector_store %arg7[%c2_72, %c4_73], %242 {strides = array<i32>} : memref<8x8xf32, #tpu.memory_space<vmem>>, vector<1x4xf32>,
    %c3 = arith.constant 3 : index
    %c0_74 = arith.constant 0 : index
    %c0_75 = arith.constant 0 : index
    %249 = vector.load %arg1[%c3, %c0_74, %c0_75] : memref<8x16x1xf32, #tpu.memory_space<vmem>>, vector<1x16x1xf32>
    %250 = vector.shape_cast %249 : vector<1x16x1xf32> to vector<16x1xf32>
    %251 = vector.broadcast %246 : vector<4x1xf32> to vector<4x32xf32>
    %252 = arith.mulf %251, %1 : vector<4x32xf32>
    %cst_76 = arith.constant dense<0.000000e+00> : vector<32xf32>
    %253 = vector.multi_reduction <add>, %252, %cst_76 [0] : vector<4x32xf32> to vector<32xf32>
    %254 = vector.shape_cast %253 : vector<32xf32> to vector<1x32xf32>
    %cst_77 = arith.constant dense<0.000000e+00> : vector<16x32xf32>
    %255 = tpu.matmul %209, %0, %cst_77 {dimension_numbers = #tpu.dot_dimension_numbers<[1], [0], [0], [1], [0, 0, 1, 1], [], []>} : vector<16x8xf32>, vector<8x32xf32>, vector<16x32xf32> -> vector<16x32xf32>
    %256 = vector.broadcast %250 : vector<16x1xf32> to vector<16x32xf32>
    %257 = vector.broadcast %2 : vector<1x32xf32> to vector<16x32xf32>
    %258 = arith.mulf %256, %257 : vector<16x32xf32>
    %259 = arith.addf %255, %258 : vector<16x32xf32>
    %260 = vector.broadcast %254 : vector<1x32xf32> to vector<16x32xf32>
    %261 = arith.addf %259, %260 : vector<16x32xf32>
    %262 = vector.broadcast %3 : vector<1x32xf32> to vector<16x32xf32>
    %263 = arith.addf %261, %262 : vector<16x32xf32>
    %264 = vector.extract_strided_slice %263 {offsets = [0, 0], sizes = [16, 8], strides = [1, 1]} : vector<16x32xf32> to vector<16x8xf32>
    %265 = arith.negf %264 : vector<16x8xf32>
    %266 = math.exp %265 : vector<16x8xf32>
    %cst_78 = arith.constant 1.000000e+00 : f32
    %267 = vector.broadcast %cst_78 : f32 to vector<16x8xf32>
    %268 = arith.addf %267, %266 : vector<16x8xf32>
    %269 = arith.divf %267, %268 : vector<16x8xf32>
    %270 = vector.extract_strided_slice %263 {offsets = [0, 8], sizes = [16, 8], strides = [1, 1]} : vector<16x32xf32> to vector<16x8xf32>
    %271 = arith.negf %270 : vector<16x8xf32>
    %272 = math.exp %271 : vector<16x8xf32>
    %cst_79 = arith.constant 1.000000e+00 : f32
    %273 = vector.broadcast %cst_79 : f32 to vector<16x8xf32>
    %274 = arith.addf %273, %272 : vector<16x8xf32>
    %275 = arith.divf %273, %274 : vector<16x8xf32>
    %276 = vector.extract_strided_slice %263 {offsets = [0, 16], sizes = [16, 8], strides = [1, 1]} : vector<16x32xf32> to vector<16x8xf32>
    %277 = math.tanh %276 : vector<16x8xf32>
    %278 = vector.extract_strided_slice %263 {offsets = [0, 24], sizes = [16, 8], strides = [1, 1]} : vector<16x32xf32> to vector<16x8xf32>
    %279 = arith.negf %278 : vector<16x8xf32>
    %280 = math.exp %279 : vector<16x8xf32>
    %cst_80 = arith.constant 1.000000e+00 : f32
    %281 = vector.broadcast %cst_80 : f32 to vector<16x8xf32>
    %282 = arith.addf %281, %280 : vector<16x8xf32>
    %283 = arith.divf %281, %282 : vector<16x8xf32>
    %284 = arith.mulf %275, %207 : vector<16x8xf32>
    %285 = arith.mulf %269, %277 : vector<16x8xf32>
    %286 = arith.addf %284, %285 : vector<16x8xf32>
    %287 = math.tanh %286 : vector<16x8xf32>
    %288 = arith.mulf %283, %287 : vector<16x8xf32>
    %cst_81 = arith.constant dense<0.000000e+00> : vector<16x16xf32>
    %289 = tpu.matmul %288, %4, %cst_81 {dimension_numbers = #tpu.dot_dimension_numbers<[1], [0], [0], [1], [0, 0, 1, 1], [], []>} : vector<16x8xf32>, vector<8x16xf32>, vector<16x16xf32> -> vector<16x16xf32>
    %290 = math.tanh %289 : vector<16x16xf32>
    %291 = vector.broadcast %250 : vector<16x1xf32> to vector<16x16xf32>
    %292 = arith.mulf %291, %290 : vector<16x16xf32>
    %cst_82 = arith.constant dense<0.000000e+00> : vector<16xf32>
    %293 = vector.multi_reduction <add>, %292, %cst_82 [0] : vector<16x16xf32> to vector<16xf32>
    %294 = vector.shape_cast %293 : vector<16xf32> to vector<1x16xf32>
    %295 = math.tanh %294 : vector<1x16xf32>
    %cst_83 = arith.constant dense<0.000000e+00> : vector<1x4xf32>
    %296 = tpu.matmul %295, %5, %cst_83 {dimension_numbers = #tpu.dot_dimension_numbers<[1], [0], [0], [1], [0, 0, 1, 1], [], []>} : vector<1x16xf32>, vector<16x4xf32>, vector<1x4xf32> -> vector<1x4xf32>
    %297 = arith.addf %296, %6 : vector<1x4xf32>
    %cst_84 = arith.constant dense<0xFF800000> : vector<1xf32>
    %298 = vector.multi_reduction <maximumf>, %297, %cst_84 [1] : vector<1x4xf32> to vector<1xf32>
    %299 = vector.shape_cast %298 : vector<1xf32> to vector<1x1xf32>
    %300 = vector.broadcast %299 : vector<1x1xf32> to vector<1x4xf32>
    %301 = arith.subf %297, %300 : vector<1x4xf32>
    %302 = math.exp %301 : vector<1x4xf32>
    %cst_85 = arith.constant dense<0.000000e+00> : vector<1xf32>
    %303 = vector.multi_reduction <add>, %302, %cst_85 [1] : vector<1x4xf32> to vector<1xf32>
    %304 = vector.shape_cast %303 : vector<1xf32> to vector<1x1xf32>
    %305 = tpu.reciprocal %304 {approx = true} : vector<1x1xf32> -> vector<1x1xf32>
    %306 = vector.broadcast %305 : vector<1x1xf32> to vector<1x4xf32>
    %307 = arith.mulf %302, %306 : vector<1x4xf32>
    %c3_86 = arith.constant 3 : index
    %c0_87 = arith.constant 0 : index
    %308 = vector.load %arg2[%c3_86, %c0_87] : memref<8x4xf32, #tpu.memory_space<vmem>>, vector<1x4xf32>
    %309 = arith.addf %297, %308 : vector<1x4xf32>
    %cst_88 = arith.constant dense<0xFF800000> : vector<1xf32>
    %310 = vector.multi_reduction <maximumf>, %309, %cst_88 [1] : vector<1x4xf32> to vector<1xf32>
    %311 = vector.shape_cast %310 : vector<1xf32> to vector<1x1xf32>
    %312 = vector.broadcast %311 : vector<1x1xf32> to vector<1x4xf32>
    %313 = arith.cmpf oeq, %309, %312 : vector<1x4xf32>
    %c4_i32_89 = arith.constant 4 : i32
    %314 = vector.broadcast %c4_i32_89 : i32 to vector<1x4xi32>
    %315 = arith.select %313, %7, %314 : vector<1x4xi1>, vector<1x4xi32>
    %cst_90 = arith.constant dense<2147483647> : vector<1xi32>
    %316 = vector.multi_reduction <minsi>, %315, %cst_90 [1] : vector<1x4xi32> to vector<1xi32>
    %317 = vector.shape_cast %316 : vector<1xi32> to vector<1x1xi32>
    %318 = vector.broadcast %317 : vector<1x1xi32> to vector<1x4xi32>
    %319 = arith.cmpi eq, %7, %318 : vector<1x4xi32>
    %320 = arith.extui %319 : vector<1x4xi1> to vector<1x4xi32>
    %321 = arith.sitofp %320 : vector<1x4xi32> to vector<1x4xf32>
    %322 = vector.broadcast %317 : vector<1x1xi32> to vector<4x1xi32>
    %323 = arith.cmpi eq, %8, %322 : vector<4x1xi32>
    %324 = arith.extui %323 : vector<4x1xi1> to vector<4x1xi32>
    %325 = arith.sitofp %324 : vector<4x1xi32> to vector<4x1xf32>
    %c3_91 = arith.constant 3 : index
    %c0_92 = arith.constant 0 : index
    %326 = vector.load %arg7[%c3_91, %c0_92] : memref<8x8xf32, #tpu.memory_space<vmem>>, vector<1x4xf32>
    tpu.vector_store %arg7[%c3_91, %c0_92], %307 {strides = array<i32>} : memref<8x8xf32, #tpu.memory_space<vmem>>, vector<1x4xf32>,
    %c3_93 = arith.constant 3 : index
    %c4_94 = arith.constant 4 : index
    %327 = vector.load %arg7[%c3_93, %c4_94] : memref<8x8xf32, #tpu.memory_space<vmem>>, vector<1x4xf32>
    tpu.vector_store %arg7[%c3_93, %c4_94], %321 {strides = array<i32>} : memref<8x8xf32, #tpu.memory_space<vmem>>, vector<1x4xf32>,
    %c4_95 = arith.constant 4 : index
    %c0_96 = arith.constant 0 : index
    %c0_97 = arith.constant 0 : index
    %328 = vector.load %arg1[%c4_95, %c0_96, %c0_97] : memref<8x16x1xf32, #tpu.memory_space<vmem>>, vector<1x16x1xf32>
    %329 = vector.shape_cast %328 : vector<1x16x1xf32> to vector<16x1xf32>
    %330 = vector.broadcast %325 : vector<4x1xf32> to vector<4x32xf32>
    %331 = arith.mulf %330, %1 : vector<4x32xf32>
    %cst_98 = arith.constant dense<0.000000e+00> : vector<32xf32>
    %332 = vector.multi_reduction <add>, %331, %cst_98 [0] : vector<4x32xf32> to vector<32xf32>
    %333 = vector.shape_cast %332 : vector<32xf32> to vector<1x32xf32>
    %cst_99 = arith.constant dense<0.000000e+00> : vector<16x32xf32>
    %334 = tpu.matmul %288, %0, %cst_99 {dimension_numbers = #tpu.dot_dimension_numbers<[1], [0], [0], [1], [0, 0, 1, 1], [], []>} : vector<16x8xf32>, vector<8x32xf32>, vector<16x32xf32> -> vector<16x32xf32>
    %335 = vector.broadcast %329 : vector<16x1xf32> to vector<16x32xf32>
    %336 = vector.broadcast %2 : vector<1x32xf32> to vector<16x32xf32>
    %337 = arith.mulf %335, %336 : vector<16x32xf32>
    %338 = arith.addf %334, %337 : vector<16x32xf32>
    %339 = vector.broadcast %333 : vector<1x32xf32> to vector<16x32xf32>
    %340 = arith.addf %338, %339 : vector<16x32xf32>
    %341 = vector.broadcast %3 : vector<1x32xf32> to vector<16x32xf32>
    %342 = arith.addf %340, %341 : vector<16x32xf32>
    %343 = vector.extract_strided_slice %342 {offsets = [0, 0], sizes = [16, 8], strides = [1, 1]} : vector<16x32xf32> to vector<16x8xf32>
    %344 = arith.negf %343 : vector<16x8xf32>
    %345 = math.exp %344 : vector<16x8xf32>
    %cst_100 = arith.constant 1.000000e+00 : f32
    %346 = vector.broadcast %cst_100 : f32 to vector<16x8xf32>
    %347 = arith.addf %346, %345 : vector<16x8xf32>
    %348 = arith.divf %346, %347 : vector<16x8xf32>
    %349 = vector.extract_strided_slice %342 {offsets = [0, 8], sizes = [16, 8], strides = [1, 1]} : vector<16x32xf32> to vector<16x8xf32>
    %350 = arith.negf %349 : vector<16x8xf32>
    %351 = math.exp %350 : vector<16x8xf32>
    %cst_101 = arith.constant 1.000000e+00 : f32
    %352 = vector.broadcast %cst_101 : f32 to vector<16x8xf32>
    %353 = arith.addf %352, %351 : vector<16x8xf32>
    %354 = arith.divf %352, %353 : vector<16x8xf32>
    %355 = vector.extract_strided_slice %342 {offsets = [0, 16], sizes = [16, 8], strides = [1, 1]} : vector<16x32xf32> to vector<16x8xf32>
    %356 = math.tanh %355 : vector<16x8xf32>
    %357 = vector.extract_strided_slice %342 {offsets = [0, 24], sizes = [16, 8], strides = [1, 1]} : vector<16x32xf32> to vector<16x8xf32>
    %358 = arith.negf %357 : vector<16x8xf32>
    %359 = math.exp %358 : vector<16x8xf32>
    %cst_102 = arith.constant 1.000000e+00 : f32
    %360 = vector.broadcast %cst_102 : f32 to vector<16x8xf32>
    %361 = arith.addf %360, %359 : vector<16x8xf32>
    %362 = arith.divf %360, %361 : vector<16x8xf32>
    %363 = arith.mulf %354, %286 : vector<16x8xf32>
    %364 = arith.mulf %348, %356 : vector<16x8xf32>
    %365 = arith.addf %363, %364 : vector<16x8xf32>
    %366 = math.tanh %365 : vector<16x8xf32>
    %367 = arith.mulf %362, %366 : vector<16x8xf32>
    %cst_103 = arith.constant dense<0.000000e+00> : vector<16x16xf32>
    %368 = tpu.matmul %367, %4, %cst_103 {dimension_numbers = #tpu.dot_dimension_numbers<[1], [0], [0], [1], [0, 0, 1, 1], [], []>} : vector<16x8xf32>, vector<8x16xf32>, vector<16x16xf32> -> vector<16x16xf32>
    %369 = math.tanh %368 : vector<16x16xf32>
    %370 = vector.broadcast %329 : vector<16x1xf32> to vector<16x16xf32>
    %371 = arith.mulf %370, %369 : vector<16x16xf32>
    %cst_104 = arith.constant dense<0.000000e+00> : vector<16xf32>
    %372 = vector.multi_reduction <add>, %371, %cst_104 [0] : vector<16x16xf32> to vector<16xf32>
    %373 = vector.shape_cast %372 : vector<16xf32> to vector<1x16xf32>
    %374 = math.tanh %373 : vector<1x16xf32>
    %cst_105 = arith.constant dense<0.000000e+00> : vector<1x4xf32>
    %375 = tpu.matmul %374, %5, %cst_105 {dimension_numbers = #tpu.dot_dimension_numbers<[1], [0], [0], [1], [0, 0, 1, 1], [], []>} : vector<1x16xf32>, vector<16x4xf32>, vector<1x4xf32> -> vector<1x4xf32>
    %376 = arith.addf %375, %6 : vector<1x4xf32>
    %cst_106 = arith.constant dense<0xFF800000> : vector<1xf32>
    %377 = vector.multi_reduction <maximumf>, %376, %cst_106 [1] : vector<1x4xf32> to vector<1xf32>
    %378 = vector.shape_cast %377 : vector<1xf32> to vector<1x1xf32>
    %379 = vector.broadcast %378 : vector<1x1xf32> to vector<1x4xf32>
    %380 = arith.subf %376, %379 : vector<1x4xf32>
    %381 = math.exp %380 : vector<1x4xf32>
    %cst_107 = arith.constant dense<0.000000e+00> : vector<1xf32>
    %382 = vector.multi_reduction <add>, %381, %cst_107 [1] : vector<1x4xf32> to vector<1xf32>
    %383 = vector.shape_cast %382 : vector<1xf32> to vector<1x1xf32>
    %384 = tpu.reciprocal %383 {approx = true} : vector<1x1xf32> -> vector<1x1xf32>
    %385 = vector.broadcast %384 : vector<1x1xf32> to vector<1x4xf32>
    %386 = arith.mulf %381, %385 : vector<1x4xf32>
    %c4_108 = arith.constant 4 : index
    %c0_109 = arith.constant 0 : index
    %387 = vector.load %arg2[%c4_108, %c0_109] : memref<8x4xf32, #tpu.memory_space<vmem>>, vector<1x4xf32>
    %388 = arith.addf %376, %387 : vector<1x4xf32>
    %cst_110 = arith.constant dense<0xFF800000> : vector<1xf32>
    %389 = vector.multi_reduction <maximumf>, %388, %cst_110 [1] : vector<1x4xf32> to vector<1xf32>
    %390 = vector.shape_cast %389 : vector<1xf32> to vector<1x1xf32>
    %391 = vector.broadcast %390 : vector<1x1xf32> to vector<1x4xf32>
    %392 = arith.cmpf oeq, %388, %391 : vector<1x4xf32>
    %c4_i32_111 = arith.constant 4 : i32
    %393 = vector.broadcast %c4_i32_111 : i32 to vector<1x4xi32>
    %394 = arith.select %392, %7, %393 : vector<1x4xi1>, vector<1x4xi32>
    %cst_112 = arith.constant dense<2147483647> : vector<1xi32>
    %395 = vector.multi_reduction <minsi>, %394, %cst_112 [1] : vector<1x4xi32> to vector<1xi32>
    %396 = vector.shape_cast %395 : vector<1xi32> to vector<1x1xi32>
    %397 = vector.broadcast %396 : vector<1x1xi32> to vector<1x4xi32>
    %398 = arith.cmpi eq, %7, %397 : vector<1x4xi32>
    %399 = arith.extui %398 : vector<1x4xi1> to vector<1x4xi32>
    %400 = arith.sitofp %399 : vector<1x4xi32> to vector<1x4xf32>
    %401 = vector.broadcast %396 : vector<1x1xi32> to vector<4x1xi32>
    %402 = arith.cmpi eq, %8, %401 : vector<4x1xi32>
    %403 = arith.extui %402 : vector<4x1xi1> to vector<4x1xi32>
    %404 = arith.sitofp %403 : vector<4x1xi32> to vector<4x1xf32>
    %c4_113 = arith.constant 4 : index
    %c0_114 = arith.constant 0 : index
    %405 = vector.load %arg7[%c4_113, %c0_114] : memref<8x8xf32, #tpu.memory_space<vmem>>, vector<1x4xf32>
    tpu.vector_store %arg7[%c4_113, %c0_114], %386 {strides = array<i32>} : memref<8x8xf32, #tpu.memory_space<vmem>>, vector<1x4xf32>,
    %c4_115 = arith.constant 4 : index
    %c4_116 = arith.constant 4 : index
    %406 = vector.load %arg7[%c4_115, %c4_116] : memref<8x8xf32, #tpu.memory_space<vmem>>, vector<1x4xf32>
    tpu.vector_store %arg7[%c4_115, %c4_116], %400 {strides = array<i32>} : memref<8x8xf32, #tpu.memory_space<vmem>>, vector<1x4xf32>,
    %c5 = arith.constant 5 : index
    %c0_117 = arith.constant 0 : index
    %c0_118 = arith.constant 0 : index
    %407 = vector.load %arg1[%c5, %c0_117, %c0_118] : memref<8x16x1xf32, #tpu.memory_space<vmem>>, vector<1x16x1xf32>
    %408 = vector.shape_cast %407 : vector<1x16x1xf32> to vector<16x1xf32>
    %409 = vector.broadcast %404 : vector<4x1xf32> to vector<4x32xf32>
    %410 = arith.mulf %409, %1 : vector<4x32xf32>
    %cst_119 = arith.constant dense<0.000000e+00> : vector<32xf32>
    %411 = vector.multi_reduction <add>, %410, %cst_119 [0] : vector<4x32xf32> to vector<32xf32>
    %412 = vector.shape_cast %411 : vector<32xf32> to vector<1x32xf32>
    %cst_120 = arith.constant dense<0.000000e+00> : vector<16x32xf32>
    %413 = tpu.matmul %367, %0, %cst_120 {dimension_numbers = #tpu.dot_dimension_numbers<[1], [0], [0], [1], [0, 0, 1, 1], [], []>} : vector<16x8xf32>, vector<8x32xf32>, vector<16x32xf32> -> vector<16x32xf32>
    %414 = vector.broadcast %408 : vector<16x1xf32> to vector<16x32xf32>
    %415 = vector.broadcast %2 : vector<1x32xf32> to vector<16x32xf32>
    %416 = arith.mulf %414, %415 : vector<16x32xf32>
    %417 = arith.addf %413, %416 : vector<16x32xf32>
    %418 = vector.broadcast %412 : vector<1x32xf32> to vector<16x32xf32>
    %419 = arith.addf %417, %418 : vector<16x32xf32>
    %420 = vector.broadcast %3 : vector<1x32xf32> to vector<16x32xf32>
    %421 = arith.addf %419, %420 : vector<16x32xf32>
    %422 = vector.extract_strided_slice %421 {offsets = [0, 0], sizes = [16, 8], strides = [1, 1]} : vector<16x32xf32> to vector<16x8xf32>
    %423 = arith.negf %422 : vector<16x8xf32>
    %424 = math.exp %423 : vector<16x8xf32>
    %cst_121 = arith.constant 1.000000e+00 : f32
    %425 = vector.broadcast %cst_121 : f32 to vector<16x8xf32>
    %426 = arith.addf %425, %424 : vector<16x8xf32>
    %427 = arith.divf %425, %426 : vector<16x8xf32>
    %428 = vector.extract_strided_slice %421 {offsets = [0, 8], sizes = [16, 8], strides = [1, 1]} : vector<16x32xf32> to vector<16x8xf32>
    %429 = arith.negf %428 : vector<16x8xf32>
    %430 = math.exp %429 : vector<16x8xf32>
    %cst_122 = arith.constant 1.000000e+00 : f32
    %431 = vector.broadcast %cst_122 : f32 to vector<16x8xf32>
    %432 = arith.addf %431, %430 : vector<16x8xf32>
    %433 = arith.divf %431, %432 : vector<16x8xf32>
    %434 = vector.extract_strided_slice %421 {offsets = [0, 16], sizes = [16, 8], strides = [1, 1]} : vector<16x32xf32> to vector<16x8xf32>
    %435 = math.tanh %434 : vector<16x8xf32>
    %436 = vector.extract_strided_slice %421 {offsets = [0, 24], sizes = [16, 8], strides = [1, 1]} : vector<16x32xf32> to vector<16x8xf32>
    %437 = arith.negf %436 : vector<16x8xf32>
    %438 = math.exp %437 : vector<16x8xf32>
    %cst_123 = arith.constant 1.000000e+00 : f32
    %439 = vector.broadcast %cst_123 : f32 to vector<16x8xf32>
    %440 = arith.addf %439, %438 : vector<16x8xf32>
    %441 = arith.divf %439, %440 : vector<16x8xf32>
    %442 = arith.mulf %433, %365 : vector<16x8xf32>
    %443 = arith.mulf %427, %435 : vector<16x8xf32>
    %444 = arith.addf %442, %443 : vector<16x8xf32>
    %445 = math.tanh %444 : vector<16x8xf32>
    %446 = arith.mulf %441, %445 : vector<16x8xf32>
    %cst_124 = arith.constant dense<0.000000e+00> : vector<16x16xf32>
    %447 = tpu.matmul %446, %4, %cst_124 {dimension_numbers = #tpu.dot_dimension_numbers<[1], [0], [0], [1], [0, 0, 1, 1], [], []>} : vector<16x8xf32>, vector<8x16xf32>, vector<16x16xf32> -> vector<16x16xf32>
    %448 = math.tanh %447 : vector<16x16xf32>
    %449 = vector.broadcast %408 : vector<16x1xf32> to vector<16x16xf32>
    %450 = arith.mulf %449, %448 : vector<16x16xf32>
    %cst_125 = arith.constant dense<0.000000e+00> : vector<16xf32>
    %451 = vector.multi_reduction <add>, %450, %cst_125 [0] : vector<16x16xf32> to vector<16xf32>
    %452 = vector.shape_cast %451 : vector<16xf32> to vector<1x16xf32>
    %453 = math.tanh %452 : vector<1x16xf32>
    %cst_126 = arith.constant dense<0.000000e+00> : vector<1x4xf32>
    %454 = tpu.matmul %453, %5, %cst_126 {dimension_numbers = #tpu.dot_dimension_numbers<[1], [0], [0], [1], [0, 0, 1, 1], [], []>} : vector<1x16xf32>, vector<16x4xf32>, vector<1x4xf32> -> vector<1x4xf32>
    %455 = arith.addf %454, %6 : vector<1x4xf32>
    %cst_127 = arith.constant dense<0xFF800000> : vector<1xf32>
    %456 = vector.multi_reduction <maximumf>, %455, %cst_127 [1] : vector<1x4xf32> to vector<1xf32>
    %457 = vector.shape_cast %456 : vector<1xf32> to vector<1x1xf32>
    %458 = vector.broadcast %457 : vector<1x1xf32> to vector<1x4xf32>
    %459 = arith.subf %455, %458 : vector<1x4xf32>
    %460 = math.exp %459 : vector<1x4xf32>
    %cst_128 = arith.constant dense<0.000000e+00> : vector<1xf32>
    %461 = vector.multi_reduction <add>, %460, %cst_128 [1] : vector<1x4xf32> to vector<1xf32>
    %462 = vector.shape_cast %461 : vector<1xf32> to vector<1x1xf32>
    %463 = tpu.reciprocal %462 {approx = true} : vector<1x1xf32> -> vector<1x1xf32>
    %464 = vector.broadcast %463 : vector<1x1xf32> to vector<1x4xf32>
    %465 = arith.mulf %460, %464 : vector<1x4xf32>
    %c5_129 = arith.constant 5 : index
    %c0_130 = arith.constant 0 : index
    %466 = vector.load %arg2[%c5_129, %c0_130] : memref<8x4xf32, #tpu.memory_space<vmem>>, vector<1x4xf32>
    %467 = arith.addf %455, %466 : vector<1x4xf32>
    %cst_131 = arith.constant dense<0xFF800000> : vector<1xf32>
    %468 = vector.multi_reduction <maximumf>, %467, %cst_131 [1] : vector<1x4xf32> to vector<1xf32>
    %469 = vector.shape_cast %468 : vector<1xf32> to vector<1x1xf32>
    %470 = vector.broadcast %469 : vector<1x1xf32> to vector<1x4xf32>
    %471 = arith.cmpf oeq, %467, %470 : vector<1x4xf32>
    %c4_i32_132 = arith.constant 4 : i32
    %472 = vector.broadcast %c4_i32_132 : i32 to vector<1x4xi32>
    %473 = arith.select %471, %7, %472 : vector<1x4xi1>, vector<1x4xi32>
    %cst_133 = arith.constant dense<2147483647> : vector<1xi32>
    %474 = vector.multi_reduction <minsi>, %473, %cst_133 [1] : vector<1x4xi32> to vector<1xi32>
    %475 = vector.shape_cast %474 : vector<1xi32> to vector<1x1xi32>
    %476 = vector.broadcast %475 : vector<1x1xi32> to vector<1x4xi32>
    %477 = arith.cmpi eq, %7, %476 : vector<1x4xi32>
    %478 = arith.extui %477 : vector<1x4xi1> to vector<1x4xi32>
    %479 = arith.sitofp %478 : vector<1x4xi32> to vector<1x4xf32>
    %480 = vector.broadcast %475 : vector<1x1xi32> to vector<4x1xi32>
    %481 = arith.cmpi eq, %8, %480 : vector<4x1xi32>
    %482 = arith.extui %481 : vector<4x1xi1> to vector<4x1xi32>
    %483 = arith.sitofp %482 : vector<4x1xi32> to vector<4x1xf32>
    %c5_134 = arith.constant 5 : index
    %c0_135 = arith.constant 0 : index
    %484 = vector.load %arg7[%c5_134, %c0_135] : memref<8x8xf32, #tpu.memory_space<vmem>>, vector<1x4xf32>
    tpu.vector_store %arg7[%c5_134, %c0_135], %465 {strides = array<i32>} : memref<8x8xf32, #tpu.memory_space<vmem>>, vector<1x4xf32>,
    %c5_136 = arith.constant 5 : index
    %c4_137 = arith.constant 4 : index
    %485 = vector.load %arg7[%c5_136, %c4_137] : memref<8x8xf32, #tpu.memory_space<vmem>>, vector<1x4xf32>
    tpu.vector_store %arg7[%c5_136, %c4_137], %479 {strides = array<i32>} : memref<8x8xf32, #tpu.memory_space<vmem>>, vector<1x4xf32>,
    %c6 = arith.constant 6 : index
    %c0_138 = arith.constant 0 : index
    %c0_139 = arith.constant 0 : index
    %486 = vector.load %arg1[%c6, %c0_138, %c0_139] : memref<8x16x1xf32, #tpu.memory_space<vmem>>, vector<1x16x1xf32>
    %487 = vector.shape_cast %486 : vector<1x16x1xf32> to vector<16x1xf32>
    %488 = vector.broadcast %483 : vector<4x1xf32> to vector<4x32xf32>
    %489 = arith.mulf %488, %1 : vector<4x32xf32>
    %cst_140 = arith.constant dense<0.000000e+00> : vector<32xf32>
    %490 = vector.multi_reduction <add>, %489, %cst_140 [0] : vector<4x32xf32> to vector<32xf32>
    %491 = vector.shape_cast %490 : vector<32xf32> to vector<1x32xf32>
    %cst_141 = arith.constant dense<0.000000e+00> : vector<16x32xf32>
    %492 = tpu.matmul %446, %0, %cst_141 {dimension_numbers = #tpu.dot_dimension_numbers<[1], [0], [0], [1], [0, 0, 1, 1], [], []>} : vector<16x8xf32>, vector<8x32xf32>, vector<16x32xf32> -> vector<16x32xf32>
    %493 = vector.broadcast %487 : vector<16x1xf32> to vector<16x32xf32>
    %494 = vector.broadcast %2 : vector<1x32xf32> to vector<16x32xf32>
    %495 = arith.mulf %493, %494 : vector<16x32xf32>
    %496 = arith.addf %492, %495 : vector<16x32xf32>
    %497 = vector.broadcast %491 : vector<1x32xf32> to vector<16x32xf32>
    %498 = arith.addf %496, %497 : vector<16x32xf32>
    %499 = vector.broadcast %3 : vector<1x32xf32> to vector<16x32xf32>
    %500 = arith.addf %498, %499 : vector<16x32xf32>
    %501 = vector.extract_strided_slice %500 {offsets = [0, 0], sizes = [16, 8], strides = [1, 1]} : vector<16x32xf32> to vector<16x8xf32>
    %502 = arith.negf %501 : vector<16x8xf32>
    %503 = math.exp %502 : vector<16x8xf32>
    %cst_142 = arith.constant 1.000000e+00 : f32
    %504 = vector.broadcast %cst_142 : f32 to vector<16x8xf32>
    %505 = arith.addf %504, %503 : vector<16x8xf32>
    %506 = arith.divf %504, %505 : vector<16x8xf32>
    %507 = vector.extract_strided_slice %500 {offsets = [0, 8], sizes = [16, 8], strides = [1, 1]} : vector<16x32xf32> to vector<16x8xf32>
    %508 = arith.negf %507 : vector<16x8xf32>
    %509 = math.exp %508 : vector<16x8xf32>
    %cst_143 = arith.constant 1.000000e+00 : f32
    %510 = vector.broadcast %cst_143 : f32 to vector<16x8xf32>
    %511 = arith.addf %510, %509 : vector<16x8xf32>
    %512 = arith.divf %510, %511 : vector<16x8xf32>
    %513 = vector.extract_strided_slice %500 {offsets = [0, 16], sizes = [16, 8], strides = [1, 1]} : vector<16x32xf32> to vector<16x8xf32>
    %514 = math.tanh %513 : vector<16x8xf32>
    %515 = vector.extract_strided_slice %500 {offsets = [0, 24], sizes = [16, 8], strides = [1, 1]} : vector<16x32xf32> to vector<16x8xf32>
    %516 = arith.negf %515 : vector<16x8xf32>
    %517 = math.exp %516 : vector<16x8xf32>
    %cst_144 = arith.constant 1.000000e+00 : f32
    %518 = vector.broadcast %cst_144 : f32 to vector<16x8xf32>
    %519 = arith.addf %518, %517 : vector<16x8xf32>
    %520 = arith.divf %518, %519 : vector<16x8xf32>
    %521 = arith.mulf %512, %444 : vector<16x8xf32>
    %522 = arith.mulf %506, %514 : vector<16x8xf32>
    %523 = arith.addf %521, %522 : vector<16x8xf32>
    %524 = math.tanh %523 : vector<16x8xf32>
    %525 = arith.mulf %520, %524 : vector<16x8xf32>
    %cst_145 = arith.constant dense<0.000000e+00> : vector<16x16xf32>
    %526 = tpu.matmul %525, %4, %cst_145 {dimension_numbers = #tpu.dot_dimension_numbers<[1], [0], [0], [1], [0, 0, 1, 1], [], []>} : vector<16x8xf32>, vector<8x16xf32>, vector<16x16xf32> -> vector<16x16xf32>
    %527 = math.tanh %526 : vector<16x16xf32>
    %528 = vector.broadcast %487 : vector<16x1xf32> to vector<16x16xf32>
    %529 = arith.mulf %528, %527 : vector<16x16xf32>
    %cst_146 = arith.constant dense<0.000000e+00> : vector<16xf32>
    %530 = vector.multi_reduction <add>, %529, %cst_146 [0] : vector<16x16xf32> to vector<16xf32>
    %531 = vector.shape_cast %530 : vector<16xf32> to vector<1x16xf32>
    %532 = math.tanh %531 : vector<1x16xf32>
    %cst_147 = arith.constant dense<0.000000e+00> : vector<1x4xf32>
    %533 = tpu.matmul %532, %5, %cst_147 {dimension_numbers = #tpu.dot_dimension_numbers<[1], [0], [0], [1], [0, 0, 1, 1], [], []>} : vector<1x16xf32>, vector<16x4xf32>, vector<1x4xf32> -> vector<1x4xf32>
    %534 = arith.addf %533, %6 : vector<1x4xf32>
    %cst_148 = arith.constant dense<0xFF800000> : vector<1xf32>
    %535 = vector.multi_reduction <maximumf>, %534, %cst_148 [1] : vector<1x4xf32> to vector<1xf32>
    %536 = vector.shape_cast %535 : vector<1xf32> to vector<1x1xf32>
    %537 = vector.broadcast %536 : vector<1x1xf32> to vector<1x4xf32>
    %538 = arith.subf %534, %537 : vector<1x4xf32>
    %539 = math.exp %538 : vector<1x4xf32>
    %cst_149 = arith.constant dense<0.000000e+00> : vector<1xf32>
    %540 = vector.multi_reduction <add>, %539, %cst_149 [1] : vector<1x4xf32> to vector<1xf32>
    %541 = vector.shape_cast %540 : vector<1xf32> to vector<1x1xf32>
    %542 = tpu.reciprocal %541 {approx = true} : vector<1x1xf32> -> vector<1x1xf32>
    %543 = vector.broadcast %542 : vector<1x1xf32> to vector<1x4xf32>
    %544 = arith.mulf %539, %543 : vector<1x4xf32>
    %c6_150 = arith.constant 6 : index
    %c0_151 = arith.constant 0 : index
    %545 = vector.load %arg2[%c6_150, %c0_151] : memref<8x4xf32, #tpu.memory_space<vmem>>, vector<1x4xf32>
    %546 = arith.addf %534, %545 : vector<1x4xf32>
    %cst_152 = arith.constant dense<0xFF800000> : vector<1xf32>
    %547 = vector.multi_reduction <maximumf>, %546, %cst_152 [1] : vector<1x4xf32> to vector<1xf32>
    %548 = vector.shape_cast %547 : vector<1xf32> to vector<1x1xf32>
    %549 = vector.broadcast %548 : vector<1x1xf32> to vector<1x4xf32>
    %550 = arith.cmpf oeq, %546, %549 : vector<1x4xf32>
    %c4_i32_153 = arith.constant 4 : i32
    %551 = vector.broadcast %c4_i32_153 : i32 to vector<1x4xi32>
    %552 = arith.select %550, %7, %551 : vector<1x4xi1>, vector<1x4xi32>
    %cst_154 = arith.constant dense<2147483647> : vector<1xi32>
    %553 = vector.multi_reduction <minsi>, %552, %cst_154 [1] : vector<1x4xi32> to vector<1xi32>
    %554 = vector.shape_cast %553 : vector<1xi32> to vector<1x1xi32>
    %555 = vector.broadcast %554 : vector<1x1xi32> to vector<1x4xi32>
    %556 = arith.cmpi eq, %7, %555 : vector<1x4xi32>
    %557 = arith.extui %556 : vector<1x4xi1> to vector<1x4xi32>
    %558 = arith.sitofp %557 : vector<1x4xi32> to vector<1x4xf32>
    %559 = vector.broadcast %554 : vector<1x1xi32> to vector<4x1xi32>
    %560 = arith.cmpi eq, %8, %559 : vector<4x1xi32>
    %561 = arith.extui %560 : vector<4x1xi1> to vector<4x1xi32>
    %562 = arith.sitofp %561 : vector<4x1xi32> to vector<4x1xf32>
    %c6_155 = arith.constant 6 : index
    %c0_156 = arith.constant 0 : index
    %563 = vector.load %arg7[%c6_155, %c0_156] : memref<8x8xf32, #tpu.memory_space<vmem>>, vector<1x4xf32>
    tpu.vector_store %arg7[%c6_155, %c0_156], %544 {strides = array<i32>} : memref<8x8xf32, #tpu.memory_space<vmem>>, vector<1x4xf32>,
    %c6_157 = arith.constant 6 : index
    %c4_158 = arith.constant 4 : index
    %564 = vector.load %arg7[%c6_157, %c4_158] : memref<8x8xf32, #tpu.memory_space<vmem>>, vector<1x4xf32>
    tpu.vector_store %arg7[%c6_157, %c4_158], %558 {strides = array<i32>} : memref<8x8xf32, #tpu.memory_space<vmem>>, vector<1x4xf32>,
    %c7 = arith.constant 7 : index
    %c0_159 = arith.constant 0 : index
    %c0_160 = arith.constant 0 : index
    %565 = vector.load %arg1[%c7, %c0_159, %c0_160] : memref<8x16x1xf32, #tpu.memory_space<vmem>>, vector<1x16x1xf32>
    %566 = vector.shape_cast %565 : vector<1x16x1xf32> to vector<16x1xf32>
    %567 = vector.broadcast %562 : vector<4x1xf32> to vector<4x32xf32>
    %568 = arith.mulf %567, %1 : vector<4x32xf32>
    %cst_161 = arith.constant dense<0.000000e+00> : vector<32xf32>
    %569 = vector.multi_reduction <add>, %568, %cst_161 [0] : vector<4x32xf32> to vector<32xf32>
    %570 = vector.shape_cast %569 : vector<32xf32> to vector<1x32xf32>
    %cst_162 = arith.constant dense<0.000000e+00> : vector<16x32xf32>
    %571 = tpu.matmul %525, %0, %cst_162 {dimension_numbers = #tpu.dot_dimension_numbers<[1], [0], [0], [1], [0, 0, 1, 1], [], []>} : vector<16x8xf32>, vector<8x32xf32>, vector<16x32xf32> -> vector<16x32xf32>
    %572 = vector.broadcast %566 : vector<16x1xf32> to vector<16x32xf32>
    %573 = vector.broadcast %2 : vector<1x32xf32> to vector<16x32xf32>
    %574 = arith.mulf %572, %573 : vector<16x32xf32>
    %575 = arith.addf %571, %574 : vector<16x32xf32>
    %576 = vector.broadcast %570 : vector<1x32xf32> to vector<16x32xf32>
    %577 = arith.addf %575, %576 : vector<16x32xf32>
    %578 = vector.broadcast %3 : vector<1x32xf32> to vector<16x32xf32>
    %579 = arith.addf %577, %578 : vector<16x32xf32>
    %580 = vector.extract_strided_slice %579 {offsets = [0, 0], sizes = [16, 8], strides = [1, 1]} : vector<16x32xf32> to vector<16x8xf32>
    %581 = arith.negf %580 : vector<16x8xf32>
    %582 = math.exp %581 : vector<16x8xf32>
    %cst_163 = arith.constant 1.000000e+00 : f32
    %583 = vector.broadcast %cst_163 : f32 to vector<16x8xf32>
    %584 = arith.addf %583, %582 : vector<16x8xf32>
    %585 = arith.divf %583, %584 : vector<16x8xf32>
    %586 = vector.extract_strided_slice %579 {offsets = [0, 8], sizes = [16, 8], strides = [1, 1]} : vector<16x32xf32> to vector<16x8xf32>
    %587 = arith.negf %586 : vector<16x8xf32>
    %588 = math.exp %587 : vector<16x8xf32>
    %cst_164 = arith.constant 1.000000e+00 : f32
    %589 = vector.broadcast %cst_164 : f32 to vector<16x8xf32>
    %590 = arith.addf %589, %588 : vector<16x8xf32>
    %591 = arith.divf %589, %590 : vector<16x8xf32>
    %592 = vector.extract_strided_slice %579 {offsets = [0, 16], sizes = [16, 8], strides = [1, 1]} : vector<16x32xf32> to vector<16x8xf32>
    %593 = math.tanh %592 : vector<16x8xf32>
    %594 = vector.extract_strided_slice %579 {offsets = [0, 24], sizes = [16, 8], strides = [1, 1]} : vector<16x32xf32> to vector<16x8xf32>
    %595 = arith.negf %594 : vector<16x8xf32>
    %596 = math.exp %595 : vector<16x8xf32>
    %cst_165 = arith.constant 1.000000e+00 : f32
    %597 = vector.broadcast %cst_165 : f32 to vector<16x8xf32>
    %598 = arith.addf %597, %596 : vector<16x8xf32>
    %599 = arith.divf %597, %598 : vector<16x8xf32>
    %600 = arith.mulf %591, %523 : vector<16x8xf32>
    %601 = arith.mulf %585, %593 : vector<16x8xf32>
    %602 = arith.addf %600, %601 : vector<16x8xf32>
    %603 = math.tanh %602 : vector<16x8xf32>
    %604 = arith.mulf %599, %603 : vector<16x8xf32>
    %cst_166 = arith.constant dense<0.000000e+00> : vector<16x16xf32>
    %605 = tpu.matmul %604, %4, %cst_166 {dimension_numbers = #tpu.dot_dimension_numbers<[1], [0], [0], [1], [0, 0, 1, 1], [], []>} : vector<16x8xf32>, vector<8x16xf32>, vector<16x16xf32> -> vector<16x16xf32>
    %606 = math.tanh %605 : vector<16x16xf32>
    %607 = vector.broadcast %566 : vector<16x1xf32> to vector<16x16xf32>
    %608 = arith.mulf %607, %606 : vector<16x16xf32>
    %cst_167 = arith.constant dense<0.000000e+00> : vector<16xf32>
    %609 = vector.multi_reduction <add>, %608, %cst_167 [0] : vector<16x16xf32> to vector<16xf32>
    %610 = vector.shape_cast %609 : vector<16xf32> to vector<1x16xf32>
    %611 = math.tanh %610 : vector<1x16xf32>
    %cst_168 = arith.constant dense<0.000000e+00> : vector<1x4xf32>
    %612 = tpu.matmul %611, %5, %cst_168 {dimension_numbers = #tpu.dot_dimension_numbers<[1], [0], [0], [1], [0, 0, 1, 1], [], []>} : vector<1x16xf32>, vector<16x4xf32>, vector<1x4xf32> -> vector<1x4xf32>
    %613 = arith.addf %612, %6 : vector<1x4xf32>
    %cst_169 = arith.constant dense<0xFF800000> : vector<1xf32>
    %614 = vector.multi_reduction <maximumf>, %613, %cst_169 [1] : vector<1x4xf32> to vector<1xf32>
    %615 = vector.shape_cast %614 : vector<1xf32> to vector<1x1xf32>
    %616 = vector.broadcast %615 : vector<1x1xf32> to vector<1x4xf32>
    %617 = arith.subf %613, %616 : vector<1x4xf32>
    %618 = math.exp %617 : vector<1x4xf32>
    %cst_170 = arith.constant dense<0.000000e+00> : vector<1xf32>
    %619 = vector.multi_reduction <add>, %618, %cst_170 [1] : vector<1x4xf32> to vector<1xf32>
    %620 = vector.shape_cast %619 : vector<1xf32> to vector<1x1xf32>
    %621 = tpu.reciprocal %620 {approx = true} : vector<1x1xf32> -> vector<1x1xf32>
    %622 = vector.broadcast %621 : vector<1x1xf32> to vector<1x4xf32>
    %623 = arith.mulf %618, %622 : vector<1x4xf32>
    %c7_171 = arith.constant 7 : index
    %c0_172 = arith.constant 0 : index
    %624 = vector.load %arg2[%c7_171, %c0_172] : memref<8x4xf32, #tpu.memory_space<vmem>>, vector<1x4xf32>
    %625 = arith.addf %613, %624 : vector<1x4xf32>
    %cst_173 = arith.constant dense<0xFF800000> : vector<1xf32>
    %626 = vector.multi_reduction <maximumf>, %625, %cst_173 [1] : vector<1x4xf32> to vector<1xf32>
    %627 = vector.shape_cast %626 : vector<1xf32> to vector<1x1xf32>
    %628 = vector.broadcast %627 : vector<1x1xf32> to vector<1x4xf32>
    %629 = arith.cmpf oeq, %625, %628 : vector<1x4xf32>
    %c4_i32_174 = arith.constant 4 : i32
    %630 = vector.broadcast %c4_i32_174 : i32 to vector<1x4xi32>
    %631 = arith.select %629, %7, %630 : vector<1x4xi1>, vector<1x4xi32>
    %cst_175 = arith.constant dense<2147483647> : vector<1xi32>
    %632 = vector.multi_reduction <minsi>, %631, %cst_175 [1] : vector<1x4xi32> to vector<1xi32>
    %633 = vector.shape_cast %632 : vector<1xi32> to vector<1x1xi32>
    %634 = vector.broadcast %633 : vector<1x1xi32> to vector<1x4xi32>
    %635 = arith.cmpi eq, %7, %634 : vector<1x4xi32>
    %636 = arith.extui %635 : vector<1x4xi1> to vector<1x4xi32>
    %637 = arith.sitofp %636 : vector<1x4xi32> to vector<1x4xf32>
    %c7_176 = arith.constant 7 : index
    %c0_177 = arith.constant 0 : index
    %638 = vector.load %arg7[%c7_176, %c0_177] : memref<8x8xf32, #tpu.memory_space<vmem>>, vector<1x4xf32>
    tpu.vector_store %arg7[%c7_176, %c0_177], %623 {strides = array<i32>} : memref<8x8xf32, #tpu.memory_space<vmem>>, vector<1x4xf32>,
    %c7_178 = arith.constant 7 : index
    %c4_179 = arith.constant 4 : index
    %639 = vector.load %arg7[%c7_178, %c4_179] : memref<8x8xf32, #tpu.memory_space<vmem>>, vector<1x4xf32>
    tpu.vector_store %arg7[%c7_178, %c4_179], %637 {strides = array<i32>} : memref<8x8xf32, #tpu.memory_space<vmem>>, vector<1x4xf32>,
    %c0_180 = arith.constant 0 : index
    %c0_181 = arith.constant 0 : index
    %640 = vector.load %arg6[%c0_180, %c0_181] : memref<16x16xf32, #tpu.memory_space<vmem>>, vector<16x8xf32>
    tpu.vector_store %arg6[%c0_180, %c0_181], %604 {strides = array<i32>} : memref<16x16xf32, #tpu.memory_space<vmem>>, vector<16x8xf32>,
    %c0_182 = arith.constant 0 : index
    %c8_183 = arith.constant 8 : index
    %641 = vector.load %arg6[%c0_182, %c8_183] : memref<16x16xf32, #tpu.memory_space<vmem>>, vector<16x8xf32>
    tpu.vector_store %arg6[%c0_182, %c8_183], %602 {strides = array<i32>} : memref<16x16xf32, #tpu.memory_space<vmem>>, vector<16x8xf32>,
    return
  }
}

</mosaic_0001>

<llo_original>
// kernel: pinn_rollout.1
$region0: #{pinn_rollout.1}
  #allocation0 [shape = 'u32[]', space=smem, size = 0x4, offset = 0x4, fixed_abs, tag = 'smem constant byte address 0x4 - core index']
  #allocation1 [shape = 'u32[144,128]{1,0:T(1,128)}', space=vmem, size = 0x12000, scoped, tag = 'internal scratch']
  %s0 = inlined_call_operand.vmem [shape: f32[48,32], index: 0, kind: input, shape index: {}]
  %s1 = inlined_call_operand.vmem [shape: f32[8,16,1], index: 1, kind: input, shape index: {}]
  %s2 = inlined_call_operand.vmem [shape: f32[8,4], index: 2, kind: input, shape index: {}]
  %s3 = inlined_call_operand.vmem [shape: f32[4,1], index: 3, kind: input, shape index: {}]
  %s4 = inlined_call_operand.vmem [shape: f32[16,8], index: 4, kind: input, shape index: {}]
  %s5 = inlined_call_operand.vmem [shape: f32[16,8], index: 5, kind: input, shape index: {}]
  %s6 = inlined_call_operand.vmem [shape: f32[16,16], index: 6, kind: output, shape index: {0}]
  %s7 = inlined_call_operand.vmem [shape: f32[8,8], index: 7, kind: output, shape index: {1}]
  %8 = xla_tuple %s6, %s7
  %s9 = sld [smem:[#allocation0]]
  $region42: #{pinn_rollout.1} parent=0
    _
  %s11 = ssub.s32 1, %s9
  %s12 = scalar_select 0, %s11, %s9
  // Predicated region
  $region2: #{pinn_rollout.1} parent=0 // pred_check
    _
  $region3: #{pinn_rollout.1} parent=0 // pred_check_branch
    %14 = sbr.rel (0) target = $region5
  $region4: #{pinn_rollout.1} parent=0 // pred_region
    _
  $region5: #{pinn_rollout.1} parent=0 // pred_fallthru
    _
  // Predicated region
  $region6: #{pinn_rollout.1} parent=0 // pred_check
    _
  $region7: #{pinn_rollout.1} parent=0 // pred_check_branch
    %16 = sbr.rel (0) target = $region9
  $region8: #{pinn_rollout.1} parent=0 // pred_region
    _
  $region9: #{pinn_rollout.1} parent=0 // pred_fallthru
    _
  // Predicated region
  $region10: #{pinn_rollout.1} parent=0 // pred_check
    _
  $region11: #{pinn_rollout.1} parent=0 // pred_check_branch
    %18 = sbr.rel (0) target = $region13
  $region12: #{pinn_rollout.1} parent=0 // pred_region
    _
  $region13: #{pinn_rollout.1} parent=0 // pred_fallthru
    _
  // Predicated region
  $region14: #{pinn_rollout.1} parent=0 // pred_check
    _
  $region15: #{pinn_rollout.1} parent=0 // pred_check_branch
    %20 = sbr.rel (0) target = $region17
  $region16: #{pinn_rollout.1} parent=0 // pred_region
    _
  $region17: #{pinn_rollout.1} parent=0 // pred_fallthru
    _
  // Predicated region
  $region18: #{pinn_rollout.1} parent=0 // pred_check
    _
  $region19: #{pinn_rollout.1} parent=0 // pred_check_branch
    %22 = sbr.rel (0) target = $region21
  $region20: #{pinn_rollout.1} parent=0 // pred_region
    _
  $region21: #{pinn_rollout.1} parent=0 // pred_fallthru
    _
  // Predicated region
  $region22: #{pinn_rollout.1} parent=0 // pred_check
    _
  $region23: #{pinn_rollout.1} parent=0 // pred_check_branch
    %24 = sbr.rel (0) target = $region25
  $region24: #{pinn_rollout.1} parent=0 // pred_region
    _
  $region25: #{pinn_rollout.1} parent=0 // pred_fallthru
    _
  %v25 = vld [vmem:[%s0] sm:$0xff]
  %v26 = vld [vmem:[%s0 + $0x8] sm:$0xf]
  %v27 = vld [vmem:[%s0 + $0xc] sm:$0x1]
  %v28 = vld [vmem:[%s0 + $0xd] sm:$0x1]
  %v29 = vld [vmem:[%s0 + $0x10] sm:$0xff]
  %v30 = vld [vmem:[%s0 + $0x18] sm:$0xff]
  %v31 = vld [vmem:[%s0 + $0x20] sm:$0xff]
  %v32 = vld [vmem:[%s0 + $0x28] sm:$0x1]
  %v33 = vlaneseq
  %v34 = vand.u32 %v33, 127
  %v35 = vlaneseq
  %v36 = vshrl.u32 %v35, 7
  %v37 = vld [vmem:[%s4] sm:$0xff]
  %v38 = vld [vmem:[%s4 + $0x8] sm:$0xff]
  %v39 = vld [vmem:[%s5] sm:$0xff]
  %v40 = vld [vmem:[%s5 + $0x8] sm:$0xff]
  %v41 = vld [vmem:[%s3] sm:$0xf]
  %v42 = vld [vmem:[%s1] sm:$0xff]
  %v43 = vld [vmem:[%s1 + $0x8] sm:$0xff]
  %45 = vset.pattern.permute.xlu0 0
  %46 = vperm.xlu0 %45, %v41
  %v47 = vpop.permute.xlu0 %46
  %v49 = vmul.f32 %v47, %v26
  %vm50 = vcmask 257024
  %v51 = vsel %vm50, %v49, 0.0
  %v52 = vrot.slane %v51, 4
  %v53 = vadd.f32 %v51, %v52
  %v54 = vrot.slane %v53, 2
  %v55 = vadd.f32 %v53, %v54
  %v56 = vrot.slane %v55, 1
  %v57 = vadd.f32 %v55, %v56
  %59 = vset.pattern.permute.xlu0 0
  %60 = vperm.xlu0 %59, %v42
  %v61 = vpop.permute.xlu0 %60
  %64 = vset.pattern.permute.xlu0 0
  %65 = vperm.xlu0 %64, %v43
  %v66 = vpop.permute.xlu0 %65
  %v68 = vlaneseq
  %v69 = vshrl.u32 %v68, 7
  %v70 = vsub.s32 0, %v69
  %v71 = vrot.slane %v27, %v70
  %v72 = vmul.f32 %v61, %v71
  %v73 = vmul.f32 %v66, %v71
  %vm74 = vcmask 64512
  %v76 = vsel %vm74, %v37, 0
  %v79 = vsel %vm74, %v38, 0
  %81 = vmatprep.subr.mxu0 0.0
  %82 = vmatpush1.msra.mxu0 %v25
  %83 = vmatprep.subr.mxu0 0.0
  %84 = vmatpush1.msra.mxu0 0.0
  %85 = vmatprep.subr.mxu0 0.0
  %86 = vmatpush1.msra.mxu0 0.0
  %87 = vmatprep.subr.mxu0 0.0
  %88 = vmatpush1.msra.mxu0 0.0
  %89 = vmatprep.subr.mxu0 0.0
  %90 = vmatpush1.msra.mxu0 0.0
  %91 = vmatprep.subr.mxu0 0.0
  %92 = vmatpush1.msra.mxu0 0.0
  %93 = vmatprep.subr.mxu0 0.0
  %94 = vmatpush1.msra.mxu0 0.0
  %95 = vmatprep.subr.mxu0 0.0
  %96 = vmatpush1.msra.mxu0 0.0
  %97 = vmatprep.subr.mxu0 0.0
  %98 = vmatpush1.msra.mxu0 0.0
  %99 = vmatprep.subr.mxu0 0.0
  %100 = vmatpush1.msra.mxu0 0.0
  %101 = vmatprep.subr.mxu0 0.0
  %102 = vmatpush1.msra.mxu0 0.0
  %103 = vmatprep.subr.mxu0 0.0
  %104 = vmatpush1.msra.mxu0 0.0
  %105 = vmatprep.subr.mxu0 0.0
  %106 = vmatpush1.msra.mxu0 0.0
  %107 = vmatprep.subr.mxu0 0.0
  %108 = vmatpush1.msra.mxu0 0.0
  %109 = vmatprep.subr.mxu0 0.0
  %110 = vmatpush1.msra.mxu0 0.0
  %111 = vmatprep.subr.mxu0 0.0
  %112 = vmatpush1.msra.mxu0 0.0
  %113 = vmatprep.subr.mxu0 0.0
  %114 = vmatpush1.msra.mxu0 0.0
  %115 = vmatprep.subr.mxu0 0.0
  %116 = vmatpush1.msra.mxu0 0.0
  %117 = vmatprep.subr.mxu0 0.0
  %118 = vmatpush1.msra.mxu0 0.0
  %119 = vmatprep.subr.mxu0 0.0
  %120 = vmatpush1.msra.mxu0 0.0
  %121 = vmatprep.subr.mxu0 0.0
  %122 = vmatpush1.msra.mxu0 0.0
  %123 = vmatprep.subr.mxu0 0.0
  %124 = vmatpush1.msra.mxu0 0.0
  %125 = vmatprep.subr.mxu0 0.0
  %126 = vmatpush1.msra.mxu0 0.0
  %127 = vmatprep.subr.mxu0 0.0
  %128 = vmatpush1.msra.mxu0 0.0
  %129 = vmatprep.subr.mxu0 0.0
  %130 = vmatpush1.msra.mxu0 0.0
  %131 = vmatprep.subr.mxu0 0.0
  %132 = vmatpush1.msra.mxu0 0.0
  %133 = vmatprep.subr.mxu0 0.0
  %134 = vmatpush1.msra.mxu0 0.0
  %135 = vmatprep.subr.mxu0 0.0
  %136 = vmatpush1.msra.mxu0 0.0
  %137 = vmatprep.subr.mxu0 0.0
  %138 = vmatpush1.msra.mxu0 0.0
  %139 = vmatprep.subr.mxu0 0.0
  %140 = vmatpush1.msra.mxu0 0.0
  %141 = vmatprep.subr.mxu0 0.0
  %142 = vmatpush1.msra.mxu0 0.0
  %143 = vmatprep.subr.mxu0 0.0
  %144 = vmatpush1.msra.mxu0 0.0
  %145 = vmatprep.mubr.f32.mxu0 0.0
  %146 = vmatmul.mubr.f32.gmra.mrb[0].mxu0 %v76
  %v147 = vpop.f32.mrb[0].mxu0
  %v148 = vadd.f32 %v72, %v147
  %v149 = vpop.f32.mrb[0].mxu0
  %150 = vmatprep.mubr.f32.mxu0 0.0
  %151 = vmatmul.mubr.f32.gmra.mrb[0].mxu0 %v79
  %v152 = vpop.f32.mrb[0].mxu0
  %v153 = vadd.f32 %v73, %v152
  %v154 = vpop.f32.mrb[0].mxu0
  %155 = vdwg.mxu0
  %v156 = vadd.f32 %v148, %v57
  %v157 = vadd.f32 %v153, %v57
  %v158 = vlaneseq
  %v159 = vshrl.u32 %v158, 7
  %v160 = vsub.s32 0, %v159
  %v161 = vrot.slane %v28, %v160
  %v162 = vadd.f32 %v156, %v161
  %v163 = vadd.f32 %v157, %v161
  %v164 = vxor.u32 %v162, 2147483648
  %v165 = vxor.u32 %v163, 2147483648
  %v166 = vmul.f32 %v164, 1.442695
  %v167 = vpow.pop %v166
  %v168 = vmul.f32 %v165, 1.442695
  %v169 = vpow.pop %v168
  %v170 = vadd.f32 %v167, 1.0
  %v171 = vadd.f32 %v169, 1.0
  %v172 = vrcp.pop %v170
  %v173 = vmul.f32 1.0, %v172
  %v174 = vrcp.pop %v171
  %v175 = vmul.f32 1.0, %v174
  %v176 = vtanh.pop %v162
  %v177 = vtanh.pop %v163
  %180 = vrot.lane.b32.xlu0 %v39, 8
  %v181 = vpop.permute.xlu0 %180
  %182 = vrot.lane.b32.xlu0 %v40, 8
  %v183 = vpop.permute.xlu0 %182
  %v186 = vmul.f32 %v173, %v181
  %v187 = vmul.f32 %v175, %v183
  %190 = vrot.lane.b32.xlu0 %v176, 112
  %v191 = vpop.permute.xlu0 %190
  %192 = vrot.lane.b32.xlu0 %v177, 112
  %v193 = vpop.permute.xlu0 %192
  %v196 = vmul.f32 %v173, %v191
  %v197 = vmul.f32 %v175, %v193
  %200 = vrot.lane.b32.xlu0 %v196, 8
  %v201 = vpop.permute.xlu0 %200
  %202 = vrot.lane.b32.xlu0 %v197, 8
  %v203 = vpop.permute.xlu0 %202
  %v206 = vadd.f32 %v186, %v201
  %v207 = vadd.f32 %v187, %v203
  %v208 = vtanh.pop %v206
  %v209 = vtanh.pop %v207
  %212 = vrot.lane.b32.xlu0 %v208, 16
  %v213 = vpop.permute.xlu0 %212
  %214 = vrot.lane.b32.xlu0 %v209, 16
  %v215 = vpop.permute.xlu0 %214
  %v218 = vmul.f32 %v173, %v213
  %v219 = vmul.f32 %v175, %v215
  %222 = vrot.lane.b32.xlu0 %v218, 104
  %v223 = vpop.permute.xlu0 %222
  %224 = vrot.lane.b32.xlu0 %v219, 104
  %v225 = vpop.permute.xlu0 %224
  %v226 = vsel %vm74, %v223, 0
  %v228 = vsel %vm74, %v225, 0
  %230 = vmatprep.subr.mxu0 0.0
  %231 = vmatpush1.msra.mxu0 %v29
  %232 = vmatprep.subr.mxu0 0.0
  %233 = vmatpush1.msra.mxu0 0.0
  %234 = vmatprep.subr.mxu0 0.0
  %235 = vmatpush1.msra.mxu0 0.0
  %236 = vmatprep.subr.mxu0 0.0
  %237 = vmatpush1.msra.mxu0 0.0
  %238 = vmatprep.subr.mxu0 0.0
  %239 = vmatpush1.msra.mxu0 0.0
  %240 = vmatprep.subr.mxu0 0.0
  %241 = vmatpush1.msra.mxu0 0.0
  %242 = vmatprep.subr.mxu0 0.0
  %243 = vmatpush1.msra.mxu0 0.0
  %244 = vmatprep.subr.mxu0 0.0
  %245 = vmatpush1.msra.mxu0 0.0
  %246 = vmatprep.subr.mxu0 0.0
  %247 = vmatpush1.msra.mxu0 0.0
  %248 = vmatprep.subr.mxu0 0.0
  %249 = vmatpush1.msra.mxu0 0.0
  %250 = vmatprep.subr.mxu0 0.0
  %251 = vmatpush1.msra.mxu0 0.0
  %252 = vmatprep.subr.mxu0 0.0
  %253 = vmatpush1.msra.mxu0 0.0
  %254 = vmatprep.subr.mxu0 0.0
  %255 = vmatpush1.msra.mxu0 0.0
  %256 = vmatprep.subr.mxu0 0.0
  %257 = vmatpush1.msra.mxu0 0.0
  %258 = vmatprep.subr.mxu0 0.0
  %259 = vmatpush1.msra.mxu0 0.0
  %260 = vmatprep.subr.mxu0 0.0
  %261 = vmatpush1.msra.mxu0 0.0
  %262 = vmatprep.subr.mxu0 0.0
  %263 = vmatpush1.msra.mxu0 0.0
  %264 = vmatprep.subr.mxu0 0.0
  %265 = vmatpush1.msra.mxu0 0.0
  %266 = vmatprep.subr.mxu0 0.0
  %267 = vmatpush1.msra.mxu0 0.0
  %268 = vmatprep.subr.mxu0 0.0
  %269 = vmatpush1.msra.mxu0 0.0
  %270 = vmatprep.subr.mxu0 0.0
  %271 = vmatpush1.msra.mxu0 0.0
  %272 = vmatprep.subr.mxu0 0.0
  %273 = vmatpush1.msra.mxu0 0.0
  %274 = vmatprep.subr.mxu0 0.0
  %275 = vmatpush1.msra.mxu0 0.0
  %276 = vmatprep.subr.mxu0 0.0
  %277 = vmatpush1.msra.mxu0 0.0
  %278 = vmatprep.subr.mxu0 0.0
  %279 = vmatpush1.msra.mxu0 0.0
  %280 = vmatprep.subr.mxu0 0.0
  %281 = vmatpush1.msra.mxu0 0.0
  %282 = vmatprep.subr.mxu0 0.0
  %283 = vmatpush1.msra.mxu0 0.0
  %284 = vmatprep.subr.mxu0 0.0
  %285 = vmatpush1.msra.mxu0 0.0
  %286 = vmatprep.subr.mxu0 0.0
  %287 = vmatpush1.msra.mxu0 0.0
  %288 = vmatprep.subr.mxu0 0.0
  %289 = vmatpush1.msra.mxu0 0.0
  %290 = vmatprep.subr.mxu0 0.0
  %291 = vmatpush1.msra.mxu0 0.0
  %292 = vmatprep.subr.mxu0 0.0
  %293 = vmatpush1.msra.mxu0 0.0
  %294 = vmatprep.mubr.f32.mxu0 0.0
  %295 = vmatmul.mubr.f32.gmra.mrb[0].mxu0 %v226
  %v296 = vpop.f32.mrb[0].mxu0
  %v297 = vadd.f32 0.0, %v296
  %v298 = vpop.f32.mrb[0].mxu0
  %299 = vmatprep.mubr.f32.mxu0 0.0
  %300 = vmatmul.mubr.f32.gmra.mrb[0].mxu0 %v228
  %v301 = vpop.f32.mrb[0].mxu0
  %v302 = vadd.f32 0.0, %v301
  %v303 = vpop.f32.mrb[0].mxu0
  %304 = vdwg.mxu0
  %v305 = vtanh.pop %v297
  %v306 = vtanh.pop %v302
  %v307 = vmul.f32 %v61, %v305
  %v308 = vmul.f32 %v66, %v306
  %vm309 = vcmask 130048
  %v310 = vsel %vm309, %v307, 0.0
  %v311 = vsel %vm309, %v308, 0.0
  %v312 = vadd.f32 %v310, %v311
  %v313 = vrot.slane %v312, 4
  %v314 = vadd.f32 %v312, %v313
  %v315 = vrot.slane %v314, 2
  %v316 = vadd.f32 %v314, %v315
  %v317 = vrot.slane %v316, 1
  %v318 = vadd.f32 %v316, %v317
  %v319 = vtanh.pop %v318
  %v321 = vsel %vm309, %v319, 0
  %323 = vmatprep.subr.mxu0 0.0
  %324 = vmatpush1.msra.mxu0 %v30
  %325 = vmatprep.subr.mxu0 0.0
  %326 = vmatpush1.msra.mxu0 %v31
  %327 = vmatprep.subr.mxu0 0.0
  %328 = vmatpush1.msra.mxu0 0.0
  %329 = vmatprep.subr.mxu0 0.0
  %330 = vmatpush1.msra.mxu0 0.0
  %331 = vmatprep.subr.mxu0 0.0
  %332 = vmatpush1.msra.mxu0 0.0
  %333 = vmatprep.subr.mxu0 0.0
  %334 = vmatpush1.msra.mxu0 0.0
  %335 = vmatprep.subr.mxu0 0.0
  %336 = vmatpush1.msra.mxu0 0.0
  %337 = vmatprep.subr.mxu0 0.0
  %338 = vmatpush1.msra.mxu0 0.0
  %339 = vmatprep.subr.mxu0 0.0
  %340 = vmatpush1.msra.mxu0 0.0
  %341 = vmatprep.subr.mxu0 0.0
  %342 = vmatpush1.msra.mxu0 0.0
  %343 = vmatprep.subr.mxu0 0.0
  %344 = vmatpush1.msra.mxu0 0.0
  %345 = vmatprep.subr.mxu0 0.0
  %346 = vmatpush1.msra.mxu0 0.0
  %347 = vmatprep.subr.mxu0 0.0
  %348 = vmatpush1.msra.mxu0 0.0
  %349 = vmatprep.subr.mxu0 0.0
  %350 = vmatpush1.msra.mxu0 0.0
  %351 = vmatprep.subr.mxu0 0.0
  %352 = vmatpush1.msra.mxu0 0.0
  %353 = vmatprep.subr.mxu0 0.0
  %354 = vmatpush1.msra.mxu0 0.0
  %355 = vmatprep.subr.mxu0 0.0
  %356 = vmatpush1.msra.mxu0 0.0
  %357 = vmatprep.subr.mxu0 0.0
  %358 = vmatpush1.msra.mxu0 0.0
  %359 = vmatprep.subr.mxu0 0.0
  %360 = vmatpush1.msra.mxu0 0.0
  %361 = vmatprep.subr.mxu0 0.0
  %362 = vmatpush1.msra.mxu0 0.0
  %363 = vmatprep.subr.mxu0 0.0
  %364 = vmatpush1.msra.mxu0 0.0
  %365 = vmatprep.subr.mxu0 0.0
  %366 = vmatpush1.msra.mxu0 0.0
  %367 = vmatprep.subr.mxu0 0.0
  %368 = vmatpush1.msra.mxu0 0.0
  %369 = vmatprep.subr.mxu0 0.0
  %370 = vmatpush1.msra.mxu0 0.0
  %371 = vmatprep.subr.mxu0 0.0
  %372 = vmatpush1.msra.mxu0 0.0
  %373 = vmatprep.subr.mxu0 0.0
  %374 = vmatpush1.msra.mxu0 0.0
  %375 = vmatprep.subr.mxu0 0.0
  %376 = vmatpush1.msra.mxu0 0.0
  %377 = vmatprep.subr.mxu0 0.0
  %378 = vmatpush1.msra.mxu0 0.0
  %379 = vmatprep.subr.mxu0 0.0
  %380 = vmatpush1.msra.mxu0 0.0
  %381 = vmatprep.subr.mxu0 0.0
  %382 = vmatpush1.msra.mxu0 0.0
  %383 = vmatprep.subr.mxu0 0.0
  %384 = vmatpush1.msra.mxu0 0.0
  %385 = vmatprep.subr.mxu0 0.0
  %386 = vmatpush1.msra.mxu0 0.0
  %387 = vmatprep.mubr.f32.mxu0 0.0
  %388 = vmatmul.mubr.f32.gmra.mrb[0].mxu0 %v321
  %v389 = vpop.f32.mrb[0].mxu0
  %v390 = vadd.f32 %v32, %v389
  %v391 = vpop.f32.mrb[0].mxu0
  %392 = vdwg.mxu0
  %vm393 = vcmask 24576
  %v394 = vsel %vm393, %v390, -inf
  %395 = vmax.xlane.f32.xlu0 %v394
  %v396 = vpop.xlane.xlu0 %395
  %v397 = vsub.f32 %v390, %v396
  %v398 = vmul.f32 %v397, 1.442695
  %v399 = vpow.pop %v398
  %v400 = vsel %vm393, %v399, 0.0
  %401 = vadd.xlane.f32.xlu0 %v400
  %v402 = vpop.xlane.xlu0 %401
  %v403 = vrcp.pop %v402
  %v404 = vmul.f32 %v399, %v403
  %v405 = vld [vmem:[%s2] sm:$0x1]
  %v406 = vadd.f32 %v390, %v405
  %v407 = vsel %vm393, %v406, -inf
  %408 = vmax.xlane.f32.xlu0 %v407
  %v409 = vpop.xlane.xlu0 %408
  %vm410 = vcmp.eq.f32.partialorder %v406, %v409
  %v411 = vsel %vm410, %v34, 4
  %v412 = vsel %vm393, %v411, 2147483647
  %v413 = vand.u32 %v412, 65535
  %v414 = vshra.s32 %v412, 16
  %v415 = vcvt.s32.f32 %v413
  %v416 = vcvt.s32.f32 %v414
  %417 = vmin.xlane.f32.xlu0 %v416
  %v418 = vpop.xlane.xlu0 %417
  %vm419 = vcmp.eq.f32.partialorder %v416, %v418
  %v420 = vsel %vm419, %v415, inf
  %421 = vmin.xlane.f32.xlu0 %v420
  %v422 = vpop.xlane.xlu0 %421
  %v423 = vcvt.f32.s32 %v422
  %v424 = vcvt.f32.s32 %v418
  %v425 = vshll.u32 %v424, 16
  %v426 = vadd.s32 %v425, %v423
  %vm427 = vcmp.eq.s32.totalorder %v34, %v426
  %v428 = vsel %vm427, 1, 0
  %v429 = vcvt.s32.f32 %v428
  %v430 = vlaneseq
  %v431 = vshrl.u32 %v430, 7
  %v432 = vsub.s32 0, %v431
  %v433 = vrot.slane %v426, %v432
  %vm434 = vcmp.eq.s32.totalorder %v36, %v433
  %v435 = vsel %vm434, 1, 0
  %v436 = vcvt.s32.f32 %v435
  %437 = vst.msk [vmem:[%s7] sm:$0x1] %vm393, %v404
  %439 = vrot.lane.b32.xlu0 %v429, 4
  %v440 = vpop.permute.xlu0 %439
  %vm442 = vcmask 57376
  %443 = vst.msk [vmem:[%s7] sm:$0x1] %vm442, %v440
  %s444 = scalar_lea.vmem %s1, 16
  %v445 = vld [vmem:[%s444] sm:$0xff]
  %v446 = vld [vmem:[%s444 + $0x8] sm:$0xff]
  %v447 = vmul.f32 %v436, %v26
  %v448 = vsel %vm50, %v447, 0.0
  %v449 = vrot.slane %v448, 4
  %v450 = vadd.f32 %v448, %v449
  %v451 = vrot.slane %v450, 2
  %v452 = vadd.f32 %v450, %v451
  %v453 = vrot.slane %v452, 1
  %v454 = vadd.f32 %v452, %v453
  %456 = vset.pattern.permute.xlu0 0
  %457 = vperm.xlu0 %456, %v445
  %v458 = vpop.permute.xlu0 %457
  %461 = vset.pattern.permute.xlu0 0
  %462 = vperm.xlu0 %461, %v446
  %v463 = vpop.permute.xlu0 %462
  %v465 = vmul.f32 %v458, %v71
  %v466 = vmul.f32 %v463, %v71
  %467 = vmatprep.subr.mxu0 0.0
  %468 = vmatpush1.msra.mxu0 %v25
  %469 = vmatprep.subr.mxu0 0.0
  %470 = vmatpush1.msra.mxu0 0.0
  %471 = vmatprep.subr.mxu0 0.0
  %472 = vmatpush1.msra.mxu0 0.0
  %473 = vmatprep.subr.mxu0 0.0
  %474 = vmatpush1.msra.mxu0 0.0
  %475 = vmatprep.subr.mxu0 0.0
  %476 = vmatpush1.msra.mxu0 0.0
  %477 = vmatprep.subr.mxu0 0.0
  %478 = vmatpush1.msra.mxu0 0.0
  %479 = vmatprep.subr.mxu0 0.0
  %480 = vmatpush1.msra.mxu0 0.0
  %481 = vmatprep.subr.mxu0 0.0
  %482 = vmatpush1.msra.mxu0 0.0
  %483 = vmatprep.subr.mxu0 0.0
  %484 = vmatpush1.msra.mxu0 0.0
  %485 = vmatprep.subr.mxu0 0.0
  %486 = vmatpush1.msra.mxu0 0.0
  %487 = vmatprep.subr.mxu0 0.0
  %488 = vmatpush1.msra.mxu0 0.0
  %489 = vmatprep.subr.mxu0 0.0
  %490 = vmatpush1.msra.mxu0 0.0
  %491 = vmatprep.subr.mxu0 0.0
  %492 = vmatpush1.msra.mxu0 0.0
  %493 = vmatprep.subr.mxu0 0.0
  %494 = vmatpush1.msra.mxu0 0.0
  %495 = vmatprep.subr.mxu0 0.0
  %496 = vmatpush1.msra.mxu0 0.0
  %497 = vmatprep.subr.mxu0 0.0
  %498 = vmatpush1.msra.mxu0 0.0
  %499 = vmatprep.subr.mxu0 0.0
  %500 = vmatpush1.msra.mxu0 0.0
  %501 = vmatprep.subr.mxu0 0.0
  %502 = vmatpush1.msra.mxu0 0.0
  %503 = vmatprep.subr.mxu0 0.0
  %504 = vmatpush1.msra.mxu0 0.0
  %505 = vmatprep.subr.mxu0 0.0
  %506 = vmatpush1.msra.mxu0 0.0
  %507 = vmatprep.subr.mxu0 0.0
  %508 = vmatpush1.msra.mxu0 0.0
  %509 = vmatprep.subr.mxu0 0.0
  %510 = vmatpush1.msra.mxu0 0.0
  %511 = vmatprep.subr.mxu0 0.0
  %512 = vmatpush1.msra.mxu0 0.0
  %513 = vmatprep.subr.mxu0 0.0
  %514 = vmatpush1.msra.mxu0 0.0
  %515 = vmatprep.subr.mxu0 0.0
  %516 = vmatpush1.msra.mxu0 0.0
  %517 = vmatprep.subr.mxu0 0.0
  %518 = vmatpush1.msra.mxu0 0.0
  %519 = vmatprep.subr.mxu0 0.0
  %520 = vmatpush1.msra.mxu0 0.0
  %521 = vmatprep.subr.mxu0 0.0
  %522 = vmatpush1.msra.mxu0 0.0
  %523 = vmatprep.subr.mxu0 0.0
  %524 = vmatpush1.msra.mxu0 0.0
  %525 = vmatprep.subr.mxu0 0.0
  %526 = vmatpush1.msra.mxu0 0.0
  %527 = vmatprep.subr.mxu0 0.0
  %528 = vmatpush1.msra.mxu0 0.0
  %529 = vmatprep.subr.mxu0 0.0
  %530 = vmatpush1.msra.mxu0 0.0
  %531 = vmatprep.mubr.f32.mxu0 0.0
  %532 = vmatmul.mubr.f32.gmra.mrb[0].mxu0 %v226
  %v533 = vpop.f32.mrb[0].mxu0
  %v534 = vadd.f32 %v465, %v533
  %v535 = vpop.f32.mrb[0].mxu0
  %536 = vmatprep.mubr.f32.mxu0 0.0
  %537 = vmatmul.mubr.f32.gmra.mrb[0].mxu0 %v228
  %v538 = vpop.f32.mrb[0].mxu0
  %v539 = vadd.f32 %v466, %v538
  %v540 = vpop.f32.mrb[0].mxu0
  %541 = vdwg.mxu0
  %v542 = vadd.f32 %v534, %v454
  %v543 = vadd.f32 %v539, %v454
  %v544 = vadd.f32 %v542, %v161
  %v545 = vadd.f32 %v543, %v161
  %v546 = vxor.u32 %v544, 2147483648
  %v547 = vxor.u32 %v545, 2147483648
  %v548 = vmul.f32 %v546, 1.442695
  %v549 = vpow.pop %v548
  %v550 = vmul.f32 %v547, 1.442695
  %v551 = vpow.pop %v550
  %v552 = vadd.f32 %v549, 1.0
  %v553 = vadd.f32 %v551, 1.0
  %v554 = vrcp.pop %v552
  %v555 = vmul.f32 1.0, %v554
  %v556 = vrcp.pop %v553
  %v557 = vmul.f32 1.0, %v556
  %v558 = vtanh.pop %v544
  %v559 = vtanh.pop %v545
  %v560 = vmul.f32 %v555, %v206
  %v561 = vmul.f32 %v557, %v207
  %564 = vrot.lane.b32.xlu0 %v558, 112
  %v565 = vpop.permute.xlu0 %564
  %566 = vrot.lane.b32.xlu0 %v559, 112
  %v567 = vpop.permute.xlu0 %566
  %v570 = vmul.f32 %v555, %v565
  %v571 = vmul.f32 %v557, %v567
  %574 = vrot.lane.b32.xlu0 %v570, 8
  %v575 = vpop.permute.xlu0 %574
  %576 = vrot.lane.b32.xlu0 %v571, 8
  %v577 = vpop.permute.xlu0 %576
  %v580 = vadd.f32 %v560, %v575
  %v581 = vadd.f32 %v561, %v577
  %v582 = vtanh.pop %v580
  %v583 = vtanh.pop %v581
  %586 = vrot.lane.b32.xlu0 %v582, 16
  %v587 = vpop.permute.xlu0 %586
  %588 = vrot.lane.b32.xlu0 %v583, 16
  %v589 = vpop.permute.xlu0 %588
  %v592 = vmul.f32 %v555, %v587
  %v593 = vmul.f32 %v557, %v589
  %596 = vrot.lane.b32.xlu0 %v592, 104
  %v597 = vpop.permute.xlu0 %596
  %598 = vrot.lane.b32.xlu0 %v593, 104
  %v599 = vpop.permute.xlu0 %598
  %v600 = vsel %vm74, %v597, 0
  %v602 = vsel %vm74, %v599, 0
  %604 = vmatprep.subr.mxu0 0.0
  %605 = vmatpush1.msra.mxu0 %v29
  %606 = vmatprep.subr.mxu0 0.0
  %607 = vmatpush1.msra.mxu0 0.0
  %608 = vmatprep.subr.mxu0 0.0
  %609 = vmatpush1.msra.mxu0 0.0
  %610 = vmatprep.subr.mxu0 0.0
  %611 = vmatpush1.msra.mxu0 0.0
  %612 = vmatprep.subr.mxu0 0.0
  %613 = vmatpush1.msra.mxu0 0.0
  %614 = vmatprep.subr.mxu0 0.0
  %615 = vmatpush1.msra.mxu0 0.0
  %616 = vmatprep.subr.mxu0 0.0
  %617 = vmatpush1.msra.mxu0 0.0
  %618 = vmatprep.subr.mxu0 0.0
  %619 = vmatpush1.msra.mxu0 0.0
  %620 = vmatprep.subr.mxu0 0.0
  %621 = vmatpush1.msra.mxu0 0.0
  %622 = vmatprep.subr.mxu0 0.0
  %623 = vmatpush1.msra.mxu0 0.0
  %624 = vmatprep.subr.mxu0 0.0
  %625 = vmatpush1.msra.mxu0 0.0
  %626 = vmatprep.subr.mxu0 0.0
  %627 = vmatpush1.msra.mxu0 0.0
  %628 = vmatprep.subr.mxu0 0.0
  %629 = vmatpush1.msra.mxu0 0.0
  %630 = vmatprep.subr.mxu0 0.0
  %631 = vmatpush1.msra.mxu0 0.0
  %632 = vmatprep.subr.mxu0 0.0
  %633 = vmatpush1.msra.mxu0 0.0
  %634 = vmatprep.subr.mxu0 0.0
  %635 = vmatpush1.msra.mxu0 0.0
  %636 = vmatprep.subr.mxu0 0.0
  %637 = vmatpush1.msra.mxu0 0.0
  %638 = vmatprep.subr.mxu0 0.0
  %639 = vmatpush1.msra.mxu0 0.0
  %640 = vmatprep.subr.mxu0 0.0
  %641 = vmatpush1.msra.mxu0 0.0
  %642 = vmatprep.subr.mxu0 0.0
  %643 = vmatpush1.msra.mxu0 0.0
  %644 = vmatprep.subr.mxu0 0.0
  %645 = vmatpush1.msra.mxu0 0.0
  %646 = vmatprep.subr.mxu0 0.0
  %647 = vmatpush1.msra.mxu0 0.0
  %648 = vmatprep.subr.mxu0 0.0
  %649 = vmatpush1.msra.mxu0 0.0
  %650 = vmatprep.subr.mxu0 0.0
  %651 = vmatpush1.msra.mxu0 0.0
  %652 = vmatprep.subr.mxu0 0.0
  %653 = vmatpush1.msra.mxu0 0.0
  %654 = vmatprep.subr.mxu0 0.0
  %655 = vmatpush1.msra.mxu0 0.0
  %656 = vmatprep.subr.mxu0 0.0
  %657 = vmatpush1.msra.mxu0 0.0
  %658 = vmatprep.subr.mxu0 0.0
  %659 = vmatpush1.msra.mxu0 0.0
  %660 = vmatprep.subr.mxu0 0.0
  %661 = vmatpush1.msra.mxu0 0.0
  %662 = vmatprep.subr.mxu0 0.0
  %663 = vmatpush1.msra.mxu0 0.0
  %664 = vmatprep.subr.mxu0 0.0
  %665 = vmatpush1.msra.mxu0 0.0
  %666 = vmatprep.subr.mxu0 0.0
  %667 = vmatpush1.msra.mxu0 0.0
  %668 = vmatprep.mubr.f32.mxu0 0.0
  %669 = vmatmul.mubr.f32.gmra.mrb[0].mxu0 %v600
  %v670 = vpop.f32.mrb[0].mxu0
  %v671 = vadd.f32 0.0, %v670
  %v672 = vpop.f32.mrb[0].mxu0
  %673 = vmatprep.mubr.f32.mxu0 0.0
  %674 = vmatmul.mubr.f32.gmra.mrb[0].mxu0 %v602
  %v675 = vpop.f32.mrb[0].mxu0
  %v676 = vadd.f32 0.0, %v675
  %v677 = vpop.f32.mrb[0].mxu0
  %678 = vdwg.mxu0
  %v679 = vtanh.pop %v671
  %v680 = vtanh.pop %v676
  %v681 = vmul.f32 %v458, %v679
  %v682 = vmul.f32 %v463, %v680
  %v683 = vsel %vm309, %v681, 0.0
  %v684 = vsel %vm309, %v682, 0.0
  %v685 = vadd.f32 %v683, %v684
  %v686 = vrot.slane %v685, 4
  %v687 = vadd.f32 %v685, %v686
  %v688 = vrot.slane %v687, 2
  %v689 = vadd.f32 %v687, %v688
  %v690 = vrot.slane %v689, 1
  %v691 = vadd.f32 %v689, %v690
  %v692 = vtanh.pop %v691
  %v694 = vsel %vm309, %v692, 0
  %696 = vmatprep.subr.mxu0 0.0
  %697 = vmatpush1.msra.mxu0 %v30
  %698 = vmatprep.subr.mxu0 0.0
  %699 = vmatpush1.msra.mxu0 %v31
  %700 = vmatprep.subr.mxu0 0.0
  %701 = vmatpush1.msra.mxu0 0.0
  %702 = vmatprep.subr.mxu0 0.0
  %703 = vmatpush1.msra.mxu0 0.0
  %704 = vmatprep.subr.mxu0 0.0
  %705 = vmatpush1.msra.mxu0 0.0
  %706 = vmatprep.subr.mxu0 0.0
  %707 = vmatpush1.msra.mxu0 0.0
  %708 = vmatprep.subr.mxu0 0.0
  %709 = vmatpush1.msra.mxu0 0.0
  %710 = vmatprep.subr.mxu0 0.0
  %711 = vmatpush1.msra.mxu0 0.0
  %712 = vmatprep.subr.mxu0 0.0
  %713 = vmatpush1.msra.mxu0 0.0
  %714 = vmatprep.subr.mxu0 0.0
  %715 = vmatpush1.msra.mxu0 0.0
  %716 = vmatprep.subr.mxu0 0.0
  %717 = vmatpush1.msra.mxu0 0.0
  %718 = vmatprep.subr.mxu0 0.0
  %719 = vmatpush1.msra.mxu0 0.0
  %720 = vmatprep.subr.mxu0 0.0
  %721 = vmatpush1.msra.mxu0 0.0
  %722 = vmatprep.subr.mxu0 0.0
  %723 = vmatpush1.msra.mxu0 0.0
  %724 = vmatprep.subr.mxu0 0.0
  %725 = vmatpush1.msra.mxu0 0.0
  %726 = vmatprep.subr.mxu0 0.0
  %727 = vmatpush1.msra.mxu0 0.0
  %728 = vmatprep.subr.mxu0 0.0
  %729 = vmatpush1.msra.mxu0 0.0
  %730 = vmatprep.subr.mxu0 0.0
  %731 = vmatpush1.msra.mxu0 0.0
  %732 = vmatprep.subr.mxu0 0.0
  %733 = vmatpush1.msra.mxu0 0.0
  %734 = vmatprep.subr.mxu0 0.0
  %735 = vmatpush1.msra.mxu0 0.0
  %736 = vmatprep.subr.mxu0 0.0
  %737 = vmatpush1.msra.mxu0 0.0
  %738 = vmatprep.subr.mxu0 0.0
  %739 = vmatpush1.msra.mxu0 0.0
  %740 = vmatprep.subr.mxu0 0.0
  %741 = vmatpush1.msra.mxu0 0.0
  %742 = vmatprep.subr.mxu0 0.0
  %743 = vmatpush1.msra.mxu0 0.0
  %744 = vmatprep.subr.mxu0 0.0
  %745 = vmatpush1.msra.mxu0 0.0
  %746 = vmatprep.subr.mxu0 0.0
  %747 = vmatpush1.msra.mxu0 0.0
  %748 = vmatprep.subr.mxu0 0.0
  %749 = vmatpush1.msra.mxu0 0.0
  %750 = vmatprep.subr.mxu0 0.0
  %751 = vmatpush1.msra.mxu0 0.0
  %752 = vmatprep.subr.mxu0 0.0
  %753 = vmatpush1.msra.mxu0 0.0
  %754 = vmatprep.subr.mxu0 0.0
  %755 = vmatpush1.msra.mxu0 0.0
  %756 = vmatprep.subr.mxu0 0.0
  %757 = vmatpush1.msra.mxu0 0.0
  %758 = vmatprep.subr.mxu0 0.0
  %759 = vmatpush1.msra.mxu0 0.0
  %760 = vmatprep.mubr.f32.mxu0 0.0
  %761 = vmatmul.mubr.f32.gmra.mrb[0].mxu0 %v694
  %v762 = vpop.f32.mrb[0].mxu0
  %v763 = vadd.f32 %v32, %v762
  %v764 = vpop.f32.mrb[0].mxu0
  %765 = vdwg.mxu0
  %v766 = vsel %vm393, %v763, -inf
  %767 = vmax.xlane.f32.xlu0 %v766
  %v768 = vpop.xlane.xlu0 %767
  %v769 = vsub.f32 %v763, %v768
  %v770 = vmul.f32 %v769, 1.442695
  %v771 = vpow.pop %v770
  %v772 = vsel %vm393, %v771, 0.0
  %773 = vadd.xlane.f32.xlu0 %v772
  %v774 = vpop.xlane.xlu0 %773
  %v775 = vrcp.pop %v774
  %v776 = vmul.f32 %v771, %v775
  %v777 = vld [vmem:[%s2 + $0x1] sm:$0x1]
  %v778 = vadd.f32 %v763, %v777
  %v779 = vsel %vm393, %v778, -inf
  %780 = vmax.xlane.f32.xlu0 %v779
  %v781 = vpop.xlane.xlu0 %780
  %vm782 = vcmp.eq.f32.partialorder %v778, %v781
  %v783 = vsel %vm782, %v34, 4
  %v784 = vsel %vm393, %v783, 2147483647
  %v785 = vand.u32 %v784, 65535
  %v786 = vshra.s32 %v784, 16
  %v787 = vcvt.s32.f32 %v785
  %v788 = vcvt.s32.f32 %v786
  %789 = vmin.xlane.f32.xlu0 %v788
  %v790 = vpop.xlane.xlu0 %789
  %vm791 = vcmp.eq.f32.partialorder %v788, %v790
  %v792 = vsel %vm791, %v787, inf
  %793 = vmin.xlane.f32.xlu0 %v792
  %v794 = vpop.xlane.xlu0 %793
  %v795 = vcvt.f32.s32 %v794
  %v796 = vcvt.f32.s32 %v790
  %v797 = vshll.u32 %v796, 16
  %v798 = vadd.s32 %v797, %v795
  %vm799 = vcmp.eq.s32.totalorder %v34, %v798
  %v800 = vsel %vm799, 1, 0
  %v801 = vcvt.s32.f32 %v800
  %v802 = vlaneseq
  %v803 = vshrl.u32 %v802, 7
  %v804 = vsub.s32 0, %v803
  %v805 = vrot.slane %v798, %v804
  %vm806 = vcmp.eq.s32.totalorder %v36, %v805
  %v807 = vsel %vm806, 1, 0
  %v808 = vcvt.s32.f32 %v807
  %809 = vst.msk [vmem:[%s7 + $0x1] sm:$0x1] %vm393, %v776
  %811 = vrot.lane.b32.xlu0 %v801, 4
  %v812 = vpop.permute.xlu0 %811
  %814 = vst.msk [vmem:[%s7 + $0x1] sm:$0x1] %vm442, %v812
  %s815 = scalar_lea.vmem %s1, 32
  %v816 = vld [vmem:[%s815] sm:$0xff]
  %v817 = vld [vmem:[%s815 + $0x8] sm:$0xff]
  %v818 = vmul.f32 %v808, %v26
  %v819 = vsel %vm50, %v818, 0.0
  %v820 = vrot.slane %v819, 4
  %v821 = vadd.f32 %v819, %v820
  %v822 = vrot.slane %v821, 2
  %v823 = vadd.f32 %v821, %v822
  %v824 = vrot.slane %v823, 1
  %v825 = vadd.f32 %v823, %v824
  %827 = vset.pattern.permute.xlu0 0
  %828 = vperm.xlu0 %827, %v816
  %v829 = vpop.permute.xlu0 %828
  %832 = vset.pattern.permute.xlu0 0
  %833 = vperm.xlu0 %832, %v817
  %v834 = vpop.permute.xlu0 %833
  %v836 = vmul.f32 %v829, %v71
  %v837 = vmul.f32 %v834, %v71
  %838 = vmatprep.subr.mxu0 0.0
  %839 = vmatpush1.msra.mxu0 %v25
  %840 = vmatprep.subr.mxu0 0.0
  %841 = vmatpush1.msra.mxu0 0.0
  %842 = vmatprep.subr.mxu0 0.0
  %843 = vmatpush1.msra.mxu0 0.0
  %844 = vmatprep.subr.mxu0 0.0
  %845 = vmatpush1.msra.mxu0 0.0
  %846 = vmatprep.subr.mxu0 0.0
  %847 = vmatpush1.msra.mxu0 0.0
  %848 = vmatprep.subr.mxu0 0.0
  %849 = vmatpush1.msra.mxu0 0.0
  %850 = vmatprep.subr.mxu0 0.0
  %851 = vmatpush1.msra.mxu0 0.0
  %852 = vmatprep.subr.mxu0 0.0
  %853 = vmatpush1.msra.mxu0 0.0
  %854 = vmatprep.subr.mxu0 0.0
  %855 = vmatpush1.msra.mxu0 0.0
  %856 = vmatprep.subr.mxu0 0.0
  %857 = vmatpush1.msra.mxu0 0.0
  %858 = vmatprep.subr.mxu0 0.0
  %859 = vmatpush1.msra.mxu0 0.0
  %860 = vmatprep.subr.mxu0 0.0
  %861 = vmatpush1.msra.mxu0 0.0
  %862 = vmatprep.subr.mxu0 0.0
  %863 = vmatpush1.msra.mxu0 0.0
  %864 = vmatprep.subr.mxu0 0.0
  %865 = vmatpush1.msra.mxu0 0.0
  %866 = vmatprep.subr.mxu0 0.0
  %867 = vmatpush1.msra.mxu0 0.0
  %868 = vmatprep.subr.mxu0 0.0
  %869 = vmatpush1.msra.mxu0 0.0
  %870 = vmatprep.subr.mxu0 0.0
  %871 = vmatpush1.msra.mxu0 0.0
  %872 = vmatprep.subr.mxu0 0.0
  %873 = vmatpush1.msra.mxu0 0.0
  %874 = vmatprep.subr.mxu0 0.0
  %875 = vmatpush1.msra.mxu0 0.0
  %876 = vmatprep.subr.mxu0 0.0
  %877 = vmatpush1.msra.mxu0 0.0
  %878 = vmatprep.subr.mxu0 0.0
  %879 = vmatpush1.msra.mxu0 0.0
  %880 = vmatprep.subr.mxu0 0.0
  %881 = vmatpush1.msra.mxu0 0.0
  %882 = vmatprep.subr.mxu0 0.0
  %883 = vmatpush1.msra.mxu0 0.0
  %884 = vmatprep.subr.mxu0 0.0
  %885 = vmatpush1.msra.mxu0 0.0
  %886 = vmatprep.subr.mxu0 0.0
  %887 = vmatpush1.msra.mxu0 0.0
  %888 = vmatprep.subr.mxu0 0.0
  %889 = vmatpush1.msra.mxu0 0.0
  %890 = vmatprep.subr.mxu0 0.0
  %891 = vmatpush1.msra.mxu0 0.0
  %892 = vmatprep.subr.mxu0 0.0
  %893 = vmatpush1.msra.mxu0 0.0
  %894 = vmatprep.subr.mxu0 0.0
  %895 = vmatpush1.msra.mxu0 0.0
  %896 = vmatprep.subr.mxu0 0.0
  %897 = vmatpush1.msra.mxu0 0.0
  %898 = vmatprep.subr.mxu0 0.0
  %899 = vmatpush1.msra.mxu0 0.0
  %900 = vmatprep.subr.mxu0 0.0
  %901 = vmatpush1.msra.mxu0 0.0
  %902 = vmatprep.mubr.f32.mxu0 0.0
  %903 = vmatmul.mubr.f32.gmra.mrb[0].mxu0 %v600
  %v904 = vpop.f32.mrb[0].mxu0
  %v905 = vadd.f32 %v836, %v904
  %v906 = vpop.f32.mrb[0].mxu0
  %907 = vmatprep.mubr.f32.mxu0 0.0
  %908 = vmatmul.mubr.f32.gmra.mrb[0].mxu0 %v602
  %v909 = vpop.f32.mrb[0].mxu0
  %v910 = vadd.f32 %v837, %v909
  %v911 = vpop.f32.mrb[0].mxu0
  %912 = vdwg.mxu0
  %v913 = vadd.f32 %v905, %v825
  %v914 = vadd.f32 %v910, %v825
  %v915 = vadd.f32 %v913, %v161
  %v916 = vadd.f32 %v914, %v161
  %v917 = vxor.u32 %v915, 2147483648
  %v918 = vxor.u32 %v916, 2147483648
  %v919 = vmul.f32 %v917, 1.442695
  %v920 = vpow.pop %v919
  %v921 = vmul.f32 %v918, 1.442695
  %v922 = vpow.pop %v921
  %v923 = vadd.f32 %v920, 1.0
  %v924 = vadd.f32 %v922, 1.0
  %v925 = vrcp.pop %v923
  %v926 = vmul.f32 1.0, %v925
  %v927 = vrcp.pop %v924
  %v928 = vmul.f32 1.0, %v927
  %v929 = vtanh.pop %v915
  %v930 = vtanh.pop %v916
  %v931 = vmul.f32 %v926, %v580
  %v932 = vmul.f32 %v928, %v581
  %935 = vrot.lane.b32.xlu0 %v929, 112
  %v936 = vpop.permute.xlu0 %935
  %937 = vrot.lane.b32.xlu0 %v930, 112
  %v938 = vpop.permute.xlu0 %937
  %v941 = vmul.f32 %v926, %v936
  %v942 = vmul.f32 %v928, %v938
  %945 = vrot.lane.b32.xlu0 %v941, 8
  %v946 = vpop.permute.xlu0 %945
  %947 = vrot.lane.b32.xlu0 %v942, 8
  %v948 = vpop.permute.xlu0 %947
  %v951 = vadd.f32 %v931, %v946
  %v952 = vadd.f32 %v932, %v948
  %v953 = vtanh.pop %v951
  %v954 = vtanh.pop %v952
  %957 = vrot.lane.b32.xlu0 %v953, 16
  %v958 = vpop.permute.xlu0 %957
  %959 = vrot.lane.b32.xlu0 %v954, 16
  %v960 = vpop.permute.xlu0 %959
  %v963 = vmul.f32 %v926, %v958
  %v964 = vmul.f32 %v928, %v960
  %967 = vrot.lane.b32.xlu0 %v963, 104
  %v968 = vpop.permute.xlu0 %967
  %969 = vrot.lane.b32.xlu0 %v964, 104
  %v970 = vpop.permute.xlu0 %969
  %v971 = vsel %vm74, %v968, 0
  %v973 = vsel %vm74, %v970, 0
  %975 = vmatprep.subr.mxu0 0.0
  %976 = vmatpush1.msra.mxu0 %v29
  %977 = vmatprep.subr.mxu0 0.0
  %978 = vmatpush1.msra.mxu0 0.0
  %979 = vmatprep.subr.mxu0 0.0
  %980 = vmatpush1.msra.mxu0 0.0
  %981 = vmatprep.subr.mxu0 0.0
  %982 = vmatpush1.msra.mxu0 0.0
  %983 = vmatprep.subr.mxu0 0.0
  %984 = vmatpush1.msra.mxu0 0.0
  %985 = vmatprep.subr.mxu0 0.0
  %986 = vmatpush1.msra.mxu0 0.0
  %987 = vmatprep.subr.mxu0 0.0
  %988 = vmatpush1.msra.mxu0 0.0
  %989 = vmatprep.subr.mxu0 0.0
  %990 = vmatpush1.msra.mxu0 0.0
  %991 = vmatprep.subr.mxu0 0.0
  %992 = vmatpush1.msra.mxu0 0.0
  %993 = vmatprep.subr.mxu0 0.0
  %994 = vmatpush1.msra.mxu0 0.0
  %995 = vmatprep.subr.mxu0 0.0
  %996 = vmatpush1.msra.mxu0 0.0
  %997 = vmatprep.subr.mxu0 0.0
  %998 = vmatpush1.msra.mxu0 0.0
  %999 = vmatprep.subr.mxu0 0.0
  %1000 = vmatpush1.msra.mxu0 0.0
  %1001 = vmatprep.subr.mxu0 0.0
  %1002 = vmatpush1.msra.mxu0 0.0
  %1003 = vmatprep.subr.mxu0 0.0
  %1004 = vmatpush1.msra.mxu0 0.0
  %1005 = vmatprep.subr.mxu0 0.0
  %1006 = vmatpush1.msra.mxu0 0.0
  %1007 = vmatprep.subr.mxu0 0.0
  %1008 = vmatpush1.msra.mxu0 0.0
  %1009 = vmatprep.subr.mxu0 0.0
  %1010 = vmatpush1.msra.mxu0 0.0
  %1011 = vmatprep.subr.mxu0 0.0
  %1012 = vmatpush1.msra.mxu0 0.0
  %1013 = vmatprep.subr.mxu0 0.0
  %1014 = vmatpush1.msra.mxu0 0.0
  %1015 = vmatprep.subr.mxu0 0.0
  %1016 = vmatpush1.msra.mxu0 0.0
  %1017 = vmatprep.subr.mxu0 0.0
  %1018 = vmatpush1.msra.mxu0 0.0
  %1019 = vmatprep.subr.mxu0 0.0
  %1020 = vmatpush1.msra.mxu0 0.0
  %1021 = vmatprep.subr.mxu0 0.0
  %1022 = vmatpush1.msra.mxu0 0.0
  %1023 = vmatprep.subr.mxu0 0.0
  %1024 = vmatpush1.msra.mxu0 0.0
  %1025 = vmatprep.subr.mxu0 0.0
  %1026 = vmatpush1.msra.mxu0 0.0
  %1027 = vmatprep.subr.mxu0 0.0
  %1028 = vmatpush1.msra.mxu0 0.0
  %1029 = vmatprep.subr.mxu0 0.0
  %1030 = vmatpush1.msra.mxu0 0.0
  %1031 = vmatprep.subr.mxu0 0.0
  %1032 = vmatpush1.msra.mxu0 0.0
  %1033 = vmatprep.subr.mxu0 0.0
  %1034 = vmatpush1.msra.mxu0 0.0
  %1035 = vmatprep.subr.mxu0 0.0
  %1036 = vmatpush1.msra.mxu0 0.0
  %1037 = vmatprep.subr.mxu0 0.0
  %1038 = vmatpush1.msra.mxu0 0.0
  %1039 = vmatprep.mubr.f32.mxu0 0.0
  %1040 = vmatmul.mubr.f32.gmra.mrb[0].mxu0 %v971
  %v1041 = vpop.f32.mrb[0].mxu0
  %v1042 = vadd.f32 0.0, %v1041
  %v1043 = vpop.f32.mrb[0].mxu0
  %1044 = vmatprep.mubr.f32.mxu0 0.0
  %1045 = vmatmul.mubr.f32.gmra.mrb[0].mxu0 %v973
  %v1046 = vpop.f32.mrb[0].mxu0
  %v1047 = vadd.f32 0.0, %v1046
  %v1048 = vpop.f32.mrb[0].mxu0
  %1049 = vdwg.mxu0
  %v1050 = vtanh.pop %v1042
  %v1051 = vtanh.pop %v1047
  %v1052 = vmul.f32 %v829, %v1050
  %v1053 = vmul.f32 %v834, %v1051
  %v1054 = vsel %vm309, %v1052, 0.0
  %v1055 = vsel %vm309, %v1053, 0.0
  %v1056 = vadd.f32 %v1054, %v1055
  %v1057 = vrot.slane %v1056, 4
  %v1058 = vadd.f32 %v1056, %v1057
  %v1059 = vrot.slane %v1058, 2
  %v1060 = vadd.f32 %v1058, %v1059
  %v1061 = vrot.slane %v1060, 1
  %v1062 = vadd.f32 %v1060, %v1061
  %v1063 = vtanh.pop %v1062
  %v1065 = vsel %vm309, %v1063, 0
  %1067 = vmatprep.subr.mxu0 0.0
  %1068 = vmatpush1.msra.mxu0 %v30
  %1069 = vmatprep.subr.mxu0 0.0
  %1070 = vmatpush1.msra.mxu0 %v31
  %1071 = vmatprep.subr.mxu0 0.0
  %1072 = vmatpush1.msra.mxu0 0.0
  %1073 = vmatprep.subr.mxu0 0.0
  %1074 = vmatpush1.msra.mxu0 0.0
  %1075 = vmatprep.subr.mxu0 0.0
  %1076 = vmatpush1.msra.mxu0 0.0
  %1077 = vmatprep.subr.mxu0 0.0
  %1078 = vmatpush1.msra.mxu0 0.0
  %1079 = vmatprep.subr.mxu0 0.0
  %1080 = vmatpush1.msra.mxu0 0.0
  %1081 = vmatprep.subr.mxu0 0.0
  %1082 = vmatpush1.msra.mxu0 0.0
  %1083 = vmatprep.subr.mxu0 0.0
  %1084 = vmatpush1.msra.mxu0 0.0
  %1085 = vmatprep.subr.mxu0 0.0
  %1086 = vmatpush1.msra.mxu0 0.0
  %1087 = vmatprep.subr.mxu0 0.0
  %1088 = vmatpush1.msra.mxu0 0.0
  %1089 = vmatprep.subr.mxu0 0.0
  %1090 = vmatpush1.msra.mxu0 0.0
  %1091 = vmatprep.subr.mxu0 0.0
  %1092 = vmatpush1.msra.mxu0 0.0
  %1093 = vmatprep.subr.mxu0 0.0
  %1094 = vmatpush1.msra.mxu0 0.0
  %1095 = vmatprep.subr.mxu0 0.0
  %1096 = vmatpush1.msra.mxu0 0.0
  %1097 = vmatprep.subr.mxu0 0.0
  %1098 = vmatpush1.msra.mxu0 0.0
  %1099 = vmatprep.subr.mxu0 0.0
  %1100 = vmatpush1.msra.mxu0 0.0
  %1101 = vmatprep.subr.mxu0 0.0
  %1102 = vmatpush1.msra.mxu0 0.0
  %1103 = vmatprep.subr.mxu0 0.0
  %1104 = vmatpush1.msra.mxu0 0.0
  %1105 = vmatprep.subr.mxu0 0.0
  %1106 = vmatpush1.msra.mxu0 0.0
  %1107 = vmatprep.subr.mxu0 0.0
  %1108 = vmatpush1.msra.mxu0 0.0
  %1109 = vmatprep.subr.mxu0 0.0
  %1110 = vmatpush1.msra.mxu0 0.0
  %1111 = vmatprep.subr.mxu0 0.0
  %1112 = vmatpush1.msra.mxu0 0.0
  %1113 = vmatprep.subr.mxu0 0.0
  %1114 = vmatpush1.msra.mxu0 0.0
  %1115 = vmatprep.subr.mxu0 0.0
  %1116 = vmatpush1.msra.mxu0 0.0
  %1117 = vmatprep.subr.mxu0 0.0
  %1118 = vmatpush1.msra.mxu0 0.0
  %1119 = vmatprep.subr.mxu0 0.0
  %1120 = vmatpush1.msra.mxu0 0.0
  %1121 = vmatprep.subr.mxu0 0.0
  %1122 = vmatpush1.msra.mxu0 0.0
  %1123 = vmatprep.subr.mxu0 0.0
  %1124 = vmatpush1.msra.mxu0 0.0
  %1125 = vmatprep.subr.mxu0 0.0
  %1126 = vmatpush1.msra.mxu0 0.0
  %1127 = vmatprep.subr.mxu0 0.0
  %1128 = vmatpush1.msra.mxu0 0.0
  %1129 = vmatprep.subr.mxu0 0.0
  %1130 = vmatpush1.msra.mxu0 0.0
  %1131 = vmatprep.mubr.f32.mxu0 0.0
  %1132 = vmatmul.mubr.f32.gmra.mrb[0].mxu0 %v1065
  %v1133 = vpop.f32.mrb[0].mxu0
  %v1134 = vadd.f32 %v32, %v1133
  %v1135 = vpop.f32.mrb[0].mxu0
  %1136 = vdwg.mxu0
  %v1137 = vsel %vm393, %v1134, -inf
  %1138 = vmax.xlane.f32.xlu0 %v1137
  %v1139 = vpop.xlane.xlu0 %1138
  %v1140 = vsub.f32 %v1134, %v1139
  %v1141 = vmul.f32 %v1140, 1.442695
  %v1142 = vpow.pop %v1141
  %v1143 = vsel %vm393, %v1142, 0.0
  %1144 = vadd.xlane.f32.xlu0 %v1143
  %v1145 = vpop.xlane.xlu0 %1144
  %v1146 = vrcp.pop %v1145
  %v1147 = vmul.f32 %v1142, %v1146
  %v1148 = vld [vmem:[%s2 + $0x2] sm:$0x1]
  %v1149 = vadd.f32 %v1134, %v1148
  %v1150 = vsel %vm393, %v1149, -inf
  %1151 = vmax.xlane.f32.xlu0 %v1150
  %v1152 = vpop.xlane.xlu0 %1151
  %vm1153 = vcmp.eq.f32.partialorder %v1149, %v1152
  %v1154 = vsel %vm1153, %v34, 4
  %v1155 = vsel %vm393, %v1154, 2147483647
  %v1156 = vand.u32 %v1155, 65535
  %v1157 = vshra.s32 %v1155, 16
  %v1158 = vcvt.s32.f32 %v1156
  %v1159 = vcvt.s32.f32 %v1157
  %1160 = vmin.xlane.f32.xlu0 %v1159
  %v1161 = vpop.xlane.xlu0 %1160
  %vm1162 = vcmp.eq.f32.partialorder %v1159, %v1161
  %v1163 = vsel %vm1162, %v1158, inf
  %1164 = vmin.xlane.f32.xlu0 %v1163
  %v1165 = vpop.xlane.xlu0 %1164
  %v1166 = vcvt.f32.s32 %v1165
  %v1167 = vcvt.f32.s32 %v1161
  %v1168 = vshll.u32 %v1167, 16
  %v1169 = vadd.s32 %v1168, %v1166
  %vm1170 = vcmp.eq.s32.totalorder %v34, %v1169
  %v1171 = vsel %vm1170, 1, 0
  %v1172 = vcvt.s32.f32 %v1171
  %v1173 = vlaneseq
  %v1174 = vshrl.u32 %v1173, 7
  %v1175 = vsub.s32 0, %v1174
  %v1176 = vrot.slane %v1169, %v1175
  %vm1177 = vcmp.eq.s32.totalorder %v36, %v1176
  %v1178 = vsel %vm1177, 1, 0
  %v1179 = vcvt.s32.f32 %v1178
  %1180 = vst.msk [vmem:[%s7 + $0x2] sm:$0x1] %vm393, %v1147
  %1182 = vrot.lane.b32.xlu0 %v1172, 4
  %v1183 = vpop.permute.xlu0 %1182
  %1185 = vst.msk [vmem:[%s7 + $0x2] sm:$0x1] %vm442, %v1183
  %s1186 = scalar_lea.vmem %s1, 48
  %v1187 = vld [vmem:[%s1186] sm:$0xff]
  %v1188 = vld [vmem:[%s1186 + $0x8] sm:$0xff]
  %v1189 = vmul.f32 %v1179, %v26
  %v1190 = vsel %vm50, %v1189, 0.0
  %v1191 = vrot.slane %v1190, 4
  %v1192 = vadd.f32 %v1190, %v1191
  %v1193 = vrot.slane %v1192, 2
  %v1194 = vadd.f32 %v1192, %v1193
  %v1195 = vrot.slane %v1194, 1
  %v1196 = vadd.f32 %v1194, %v1195
  %1198 = vset.pattern.permute.xlu0 0
  %1199 = vperm.xlu0 %1198, %v1187
  %v1200 = vpop.permute.xlu0 %1199
  %1203 = vset.pattern.permute.xlu0 0
  %1204 = vperm.xlu0 %1203, %v1188
  %v1205 = vpop.permute.xlu0 %1204
  %v1207 = vmul.f32 %v1200, %v71
  %v1208 = vmul.f32 %v1205, %v71
  %1209 = vmatprep.subr.mxu0 0.0
  %1210 = vmatpush1.msra.mxu0 %v25
  %1211 = vmatprep.subr.mxu0 0.0
  %1212 = vmatpush1.msra.mxu0 0.0
  %1213 = vmatprep.subr.mxu0 0.0
  %1214 = vmatpush1.msra.mxu0 0.0
  %1215 = vmatprep.subr.mxu0 0.0
  %1216 = vmatpush1.msra.mxu0 0.0
  %1217 = vmatprep.subr.mxu0 0.0
  %1218 = vmatpush1.msra.mxu0 0.0
  %1219 = vmatprep.subr.mxu0 0.0
  %1220 = vmatpush1.msra.mxu0 0.0
  %1221 = vmatprep.subr.mxu0 0.0
  %1222 = vmatpush1.msra.mxu0 0.0
  %1223 = vmatprep.subr.mxu0 0.0
  %1224 = vmatpush1.msra.mxu0 0.0
  %1225 = vmatprep.subr.mxu0 0.0
  %1226 = vmatpush1.msra.mxu0 0.0
  %1227 = vmatprep.subr.mxu0 0.0
  %1228 = vmatpush1.msra.mxu0 0.0
  %1229 = vmatprep.subr.mxu0 0.0
  %1230 = vmatpush1.msra.mxu0 0.0
  %1231 = vmatprep.subr.mxu0 0.0
  %1232 = vmatpush1.msra.mxu0 0.0
  %1233 = vmatprep.subr.mxu0 0.0
  %1234 = vmatpush1.msra.mxu0 0.0
  %1235 = vmatprep.subr.mxu0 0.0
  %1236 = vmatpush1.msra.mxu0 0.0
  %1237 = vmatprep.subr.mxu0 0.0
  %1238 = vmatpush1.msra.mxu0 0.0
  %1239 = vmatprep.subr.mxu0 0.0
  %1240 = vmatpush1.msra.mxu0 0.0
  %1241 = vmatprep.subr.mxu0 0.0
  %1242 = vmatpush1.msra.mxu0 0.0
  %1243 = vmatprep.subr.mxu0 0.0
  %1244 = vmatpush1.msra.mxu0 0.0
  %1245 = vmatprep.subr.mxu0 0.0
  %1246 = vmatpush1.msra.mxu0 0.0
  %1247 = vmatprep.subr.mxu0 0.0
  %1248 = vmatpush1.msra.mxu0 0.0
  %1249 = vmatprep.subr.mxu0 0.0
  %1250 = vmatpush1.msra.mxu0 0.0
  %1251 = vmatprep.subr.mxu0 0.0
  %1252 = vmatpush1.msra.mxu0 0.0
  %1253 = vmatprep.subr.mxu0 0.0
  %1254 = vmatpush1.msra.mxu0 0.0
  %1255 = vmatprep.subr.mxu0 0.0
  %1256 = vmatpush1.msra.mxu0 0.0
  %1257 = vmatprep.subr.mxu0 0.0
  %1258 = vmatpush1.msra.mxu0 0.0
  %1259 = vmatprep.subr.mxu0 0.0
  %1260 = vmatpush1.msra.mxu0 0.0
  %1261 = vmatprep.subr.mxu0 0.0
  %1262 = vmatpush1.msra.mxu0 0.0
  %1263 = vmatprep.subr.mxu0 0.0
  %1264 = vmatpush1.msra.mxu0 0.0
  %1265 = vmatprep.subr.mxu0 0.0
  %1266 = vmatpush1.msra.mxu0 0.0
  %1267 = vmatprep.subr.mxu0 0.0
  %1268 = vmatpush1.msra.mxu0 0.0
  %1269 = vmatprep.subr.mxu0 0.0
  %1270 = vmatpush1.msra.mxu0 0.0
  %1271 = vmatprep.subr.mxu0 0.0
  %1272 = vmatpush1.msra.mxu0 0.0
  %1273 = vmatprep.mubr.f32.mxu0 0.0
  %1274 = vmatmul.mubr.f32.gmra.mrb[0].mxu0 %v971
  %v1275 = vpop.f32.mrb[0].mxu0
  %v1276 = vadd.f32 %v1207, %v1275
  %v1277 = vpop.f32.mrb[0].mxu0
  %1278 = vmatprep.mubr.f32.mxu0 0.0
  %1279 = vmatmul.mubr.f32.gmra.mrb[0].mxu0 %v973
  %v1280 = vpop.f32.mrb[0].mxu0
  %v1281 = vadd.f32 %v1208, %v1280
  %v1282 = vpop.f32.mrb[0].mxu0
  %1283 = vdwg.mxu0
  %v1284 = vadd.f32 %v1276, %v1196
  %v1285 = vadd.f32 %v1281, %v1196
  %v1286 = vadd.f32 %v1284, %v161
  %v1287 = vadd.f32 %v1285, %v161
  %v1288 = vxor.u32 %v1286, 2147483648
  %v1289 = vxor.u32 %v1287, 2147483648
  %v1290 = vmul.f32 %v1288, 1.442695
  %v1291 = vpow.pop %v1290
  %v1292 = vmul.f32 %v1289, 1.442695
  %v1293 = vpow.pop %v1292
  %v1294 = vadd.f32 %v1291, 1.0
  %v1295 = vadd.f32 %v1293, 1.0
  %v1296 = vrcp.pop %v1294
  %v1297 = vmul.f32 1.0, %v1296
  %v1298 = vrcp.pop %v1295
  %v1299 = vmul.f32 1.0, %v1298
  %v1300 = vtanh.pop %v1286
  %v1301 = vtanh.pop %v1287
  %v1302 = vmul.f32 %v1297, %v951
  %v1303 = vmul.f32 %v1299, %v952
  %1306 = vrot.lane.b32.xlu0 %v1300, 112
  %v1307 = vpop.permute.xlu0 %1306
  %1308 = vrot.lane.b32.xlu0 %v1301, 112
  %v1309 = vpop.permute.xlu0 %1308
  %v1312 = vmul.f32 %v1297, %v1307
  %v1313 = vmul.f32 %v1299, %v1309
  %1316 = vrot.lane.b32.xlu0 %v1312, 8
  %v1317 = vpop.permute.xlu0 %1316
  %1318 = vrot.lane.b32.xlu0 %v1313, 8
  %v1319 = vpop.permute.xlu0 %1318
  %v1322 = vadd.f32 %v1302, %v1317
  %v1323 = vadd.f32 %v1303, %v1319
  %v1324 = vtanh.pop %v1322
  %v1325 = vtanh.pop %v1323
  %1328 = vrot.lane.b32.xlu0 %v1324, 16
  %v1329 = vpop.permute.xlu0 %1328
  %1330 = vrot.lane.b32.xlu0 %v1325, 16
  %v1331 = vpop.permute.xlu0 %1330
  %v1334 = vmul.f32 %v1297, %v1329
  %v1335 = vmul.f32 %v1299, %v1331
  %1338 = vrot.lane.b32.xlu0 %v1334, 104
  %v1339 = vpop.permute.xlu0 %1338
  %1340 = vrot.lane.b32.xlu0 %v1335, 104
  %v1341 = vpop.permute.xlu0 %1340
  %v1342 = vsel %vm74, %v1339, 0
  %v1344 = vsel %vm74, %v1341, 0
  %1346 = vmatprep.subr.mxu0 0.0
  %1347 = vmatpush1.msra.mxu0 %v29
  %1348 = vmatprep.subr.mxu0 0.0
  %1349 = vmatpush1.msra.mxu0 0.0
  %1350 = vmatprep.subr.mxu0 0.0
  %1351 = vmatpush1.msra.mxu0 0.0
  %1352 = vmatprep.subr.mxu0 0.0
  %1353 = vmatpush1.msra.mxu0 0.0
  %1354 = vmatprep.subr.mxu0 0.0
  %1355 = vmatpush1.msra.mxu0 0.0
  %1356 = vmatprep.subr.mxu0 0.0
  %1357 = vmatpush1.msra.mxu0 0.0
  %1358 = vmatprep.subr.mxu0 0.0
  %1359 = vmatpush1.msra.mxu0 0.0
  %1360 = vmatprep.subr.mxu0 0.0
  %1361 = vmatpush1.msra.mxu0 0.0
  %1362 = vmatprep.subr.mxu0 0.0
  %1363 = vmatpush1.msra.mxu0 0.0
  %1364 = vmatprep.subr.mxu0 0.0
  %1365 = vmatpush1.msra.mxu0 0.0
  %1366 = vmatprep.subr.mxu0 0.0
  %1367 = vmatpush1.msra.mxu0 0.0
  %1368 = vmatprep.subr.mxu0 0.0
  %1369 = vmatpush1.msra.mxu0 0.0
  %1370 = vmatprep.subr.mxu0 0.0
  %1371 = vmatpush1.msra.mxu0 0.0
  %1372 = vmatprep.subr.mxu0 0.0
  %1373 = vmatpush1.msra.mxu0 0.0
  %1374 = vmatprep.subr.mxu0 0.0
  %1375 = vmatpush1.msra.mxu0 0.0
  %1376 = vmatprep.subr.mxu0 0.0
  %1377 = vmatpush1.msra.mxu0 0.0
  %1378 = vmatprep.subr.mxu0 0.0
  %1379 = vmatpush1.msra.mxu0 0.0
  %1380 = vmatprep.subr.mxu0 0.0
  %1381 = vmatpush1.msra.mxu0 0.0
  %1382 = vmatprep.subr.mxu0 0.0
  %1383 = vmatpush1.msra.mxu0 0.0
  %1384 = vmatprep.subr.mxu0 0.0
  %1385 = vmatpush1.msra.mxu0 0.0
  %1386 = vmatprep.subr.mxu0 0.0
  %1387 = vmatpush1.msra.mxu0 0.0
  %1388 = vmatprep.subr.mxu0 0.0
  %1389 = vmatpush1.msra.mxu0 0.0
  %1390 = vmatprep.subr.mxu0 0.0
  %1391 = vmatpush1.msra.mxu0 0.0
  %1392 = vmatprep.subr.mxu0 0.0
  %1393 = vmatpush1.msra.mxu0 0.0
  %1394 = vmatprep.subr.mxu0 0.0
  %1395 = vmatpush1.msra.mxu0 0.0
  %1396 = vmatprep.subr.mxu0 0.0
  %1397 = vmatpush1.msra.mxu0 0.0
  %1398 = vmatprep.subr.mxu0 0.0
  %1399 = vmatpush1.msra.mxu0 0.0
  %1400 = vmatprep.subr.mxu0 0.0
  %1401 = vmatpush1.msra.mxu0 0.0
  %1402 = vmatprep.subr.mxu0 0.0
  %1403 = vmatpush1.msra.mxu0 0.0
  %1404 = vmatprep.subr.mxu0 0.0
  %1405 = vmatpush1.msra.mxu0 0.0
  %1406 = vmatprep.subr.mxu0 0.0
  %1407 = vmatpush1.msra.mxu0 0.0
  %1408 = vmatprep.subr.mxu0 0.0
  %1409 = vmatpush1.msra.mxu0 0.0
  %1410 = vmatprep.mubr.f32.mxu0 0.0
  %1411 = vmatmul.mubr.f32.gmra.mrb[0].mxu0 %v1342
  %v1412 = vpop.f32.mrb[0].mxu0
  %v1413 = vadd.f32 0.0, %v1412
  %v1414 = vpop.f32.mrb[0].mxu0
  %1415 = vmatprep.mubr.f32.mxu0 0.0
  %1416 = vmatmul.mubr.f32.gmra.mrb[0].mxu0 %v1344
  %v1417 = vpop.f32.mrb[0].mxu0
  %v1418 = vadd.f32 0.0, %v1417
  %v1419 = vpop.f32.mrb[0].mxu0
  %1420 = vdwg.mxu0
  %v1421 = vtanh.pop %v1413
  %v1422 = vtanh.pop %v1418
  %v1423 = vmul.f32 %v1200, %v1421
  %v1424 = vmul.f32 %v1205, %v1422
  %v1425 = vsel %vm309, %v1423, 0.0
  %v1426 = vsel %vm309, %v1424, 0.0
  %v1427 = vadd.f32 %v1425, %v1426
  %v1428 = vrot.slane %v1427, 4
  %v1429 = vadd.f32 %v1427, %v1428
  %v1430 = vrot.slane %v1429, 2
  %v1431 = vadd.f32 %v1429, %v1430
  %v1432 = vrot.slane %v1431, 1
  %v1433 = vadd.f32 %v1431, %v1432
  %v1434 = vtanh.pop %v1433
  %v1436 = vsel %vm309, %v1434, 0
  %1438 = vmatprep.subr.mxu0 0.0
  %1439 = vmatpush1.msra.mxu0 %v30
  %1440 = vmatprep.subr.mxu0 0.0
  %1441 = vmatpush1.msra.mxu0 %v31
  %1442 = vmatprep.subr.mxu0 0.0
  %1443 = vmatpush1.msra.mxu0 0.0
  %1444 = vmatprep.subr.mxu0 0.0
  %1445 = vmatpush1.msra.mxu0 0.0
  %1446 = vmatprep.subr.mxu0 0.0
  %1447 = vmatpush1.msra.mxu0 0.0
  %1448 = vmatprep.subr.mxu0 0.0
  %1449 = vmatpush1.msra.mxu0 0.0
  %1450 = vmatprep.subr.mxu0 0.0
  %1451 = vmatpush1.msra.mxu0 0.0
  %1452 = vmatprep.subr.mxu0 0.0
  %1453 = vmatpush1.msra.mxu0 0.0
  %1454 = vmatprep.subr.mxu0 0.0
  %1455 = vmatpush1.msra.mxu0 0.0
  %1456 = vmatprep.subr.mxu0 0.0
  %1457 = vmatpush1.msra.mxu0 0.0
  %1458 = vmatprep.subr.mxu0 0.0
  %1459 = vmatpush1.msra.mxu0 0.0
  %1460 = vmatprep.subr.mxu0 0.0
  %1461 = vmatpush1.msra.mxu0 0.0
  %1462 = vmatprep.subr.mxu0 0.0
  %1463 = vmatpush1.msra.mxu0 0.0
  %1464 = vmatprep.subr.mxu0 0.0
  %1465 = vmatpush1.msra.mxu0 0.0
  %1466 = vmatprep.subr.mxu0 0.0
  %1467 = vmatpush1.msra.mxu0 0.0
  %1468 = vmatprep.subr.mxu0 0.0
  %1469 = vmatpush1.msra.mxu0 0.0
  %1470 = vmatprep.subr.mxu0 0.0
  %1471 = vmatpush1.msra.mxu0 0.0
  %1472 = vmatprep.subr.mxu0 0.0
  %1473 = vmatpush1.msra.mxu0 0.0
  %1474 = vmatprep.subr.mxu0 0.0
  %1475 = vmatpush1.msra.mxu0 0.0
  %1476 = vmatprep.subr.mxu0 0.0
  %1477 = vmatpush1.msra.mxu0 0.0
  %1478 = vmatprep.subr.mxu0 0.0
  %1479 = vmatpush1.msra.mxu0 0.0
  %1480 = vmatprep.subr.mxu0 0.0
  %1481 = vmatpush1.msra.mxu0 0.0
  %1482 = vmatprep.subr.mxu0 0.0
  %1483 = vmatpush1.msra.mxu0 0.0
  %1484 = vmatprep.subr.mxu0 0.0
  %1485 = vmatpush1.msra.mxu0 0.0
  %1486 = vmatprep.subr.mxu0 0.0
  %1487 = vmatpush1.msra.mxu0 0.0
  %1488 = vmatprep.subr.mxu0 0.0
  %1489 = vmatpush1.msra.mxu0 0.0
  %1490 = vmatprep.subr.mxu0 0.0
  %1491 = vmatpush1.msra.mxu0 0.0
  %1492 = vmatprep.subr.mxu0 0.0
  %1493 = vmatpush1.msra.mxu0 0.0
  %1494 = vmatprep.subr.mxu0 0.0
  %1495 = vmatpush1.msra.mxu0 0.0
  %1496 = vmatprep.subr.mxu0 0.0
  %1497 = vmatpush1.msra.mxu0 0.0
  %1498 = vmatprep.subr.mxu0 0.0
  %1499 = vmatpush1.msra.mxu0 0.0
  %1500 = vmatprep.subr.mxu0 0.0
  %1501 = vmatpush1.msra.mxu0 0.0
  %1502 = vmatprep.mubr.f32.mxu0 0.0
  %1503 = vmatmul.mubr.f32.gmra.mrb[0].mxu0 %v1436
  %v1504 = vpop.f32.mrb[0].mxu0
  %v1505 = vadd.f32 %v32, %v1504
  %v1506 = vpop.f32.mrb[0].mxu0
  %1507 = vdwg.mxu0
  %v1508 = vsel %vm393, %v1505, -inf
  %1509 = vmax.xlane.f32.xlu0 %v1508
  %v1510 = vpop.xlane.xlu0 %1509
  %v1511 = vsub.f32 %v1505, %v1510
  %v1512 = vmul.f32 %v1511, 1.442695
  %v1513 = vpow.pop %v1512
  %v1514 = vsel %vm393, %v1513, 0.0
  %1515 = vadd.xlane.f32.xlu0 %v1514
  %v1516 = vpop.xlane.xlu0 %1515
  %v1517 = vrcp.pop %v1516
  %v1518 = vmul.f32 %v1513, %v1517
  %v1519 = vld [vmem:[%s2 + $0x3] sm:$0x1]
  %v1520 = vadd.f32 %v1505, %v1519
  %v1521 = vsel %vm393, %v1520, -inf
  %1522 = vmax.xlane.f32.xlu0 %v1521
  %v1523 = vpop.xlane.xlu0 %1522
  %vm1524 = vcmp.eq.f32.partialorder %v1520, %v1523
  %v1525 = vsel %vm1524, %v34, 4
  %v1526 = vsel %vm393, %v1525, 2147483647
  %v1527 = vand.u32 %v1526, 65535
  %v1528 = vshra.s32 %v1526, 16
  %v1529 = vcvt.s32.f32 %v1527
  %v1530 = vcvt.s32.f32 %v1528
  %1531 = vmin.xlane.f32.xlu0 %v1530
  %v1532 = vpop.xlane.xlu0 %1531
  %vm1533 = vcmp.eq.f32.partialorder %v1530, %v1532
  %v1534 = vsel %vm1533, %v1529, inf
  %1535 = vmin.xlane.f32.xlu0 %v1534
  %v1536 = vpop.xlane.xlu0 %1535
  %v1537 = vcvt.f32.s32 %v1536
  %v1538 = vcvt.f32.s32 %v1532
  %v1539 = vshll.u32 %v1538, 16
  %v1540 = vadd.s32 %v1539, %v1537
  %vm1541 = vcmp.eq.s32.totalorder %v34, %v1540
  %v1542 = vsel %vm1541, 1, 0
  %v1543 = vcvt.s32.f32 %v1542
  %v1544 = vlaneseq
  %v1545 = vshrl.u32 %v1544, 7
  %v1546 = vsub.s32 0, %v1545
  %v1547 = vrot.slane %v1540, %v1546
  %vm1548 = vcmp.eq.s32.totalorder %v36, %v1547
  %v1549 = vsel %vm1548, 1, 0
  %v1550 = vcvt.s32.f32 %v1549
  %1551 = vst.msk [vmem:[%s7 + $0x3] sm:$0x1] %vm393, %v1518
  %1553 = vrot.lane.b32.xlu0 %v1543, 4
  %v1554 = vpop.permute.xlu0 %1553
  %1556 = vst.msk [vmem:[%s7 + $0x3] sm:$0x1] %vm442, %v1554
  %s1557 = scalar_lea.vmem %s1, 64
  %v1558 = vld [vmem:[%s1557] sm:$0xff]
  %v1559 = vld [vmem:[%s1557 + $0x8] sm:$0xff]
  %v1560 = vmul.f32 %v1550, %v26
  %v1561 = vsel %vm50, %v1560, 0.0
  %v1562 = vrot.slane %v1561, 4
  %v1563 = vadd.f32 %v1561, %v1562
  %v1564 = vrot.slane %v1563, 2
  %v1565 = vadd.f32 %v1563, %v1564
  %v1566 = vrot.slane %v1565, 1
  %v1567 = vadd.f32 %v1565, %v1566
  %1569 = vset.pattern.permute.xlu0 0
  %1570 = vperm.xlu0 %1569, %v1558
  %v1571 = vpop.permute.xlu0 %1570
  %1574 = vset.pattern.permute.xlu0 0
  %1575 = vperm.xlu0 %1574, %v1559
  %v1576 = vpop.permute.xlu0 %1575
  %v1578 = vmul.f32 %v1571, %v71
  %v1579 = vmul.f32 %v1576, %v71
  %1580 = vmatprep.subr.mxu0 0.0
  %1581 = vmatpush1.msra.mxu0 %v25
  %1582 = vmatprep.subr.mxu0 0.0
  %1583 = vmatpush1.msra.mxu0 0.0
  %1584 = vmatprep.subr.mxu0 0.0
  %1585 = vmatpush1.msra.mxu0 0.0
  %1586 = vmatprep.subr.mxu0 0.0
  %1587 = vmatpush1.msra.mxu0 0.0
  %1588 = vmatprep.subr.mxu0 0.0
  %1589 = vmatpush1.msra.mxu0 0.0
  %1590 = vmatprep.subr.mxu0 0.0
  %1591 = vmatpush1.msra.mxu0 0.0
  %1592 = vmatprep.subr.mxu0 0.0
  %1593 = vmatpush1.msra.mxu0 0.0
  %1594 = vmatprep.subr.mxu0 0.0
  %1595 = vmatpush1.msra.mxu0 0.0
  %1596 = vmatprep.subr.mxu0 0.0
  %1597 = vmatpush1.msra.mxu0 0.0
  %1598 = vmatprep.subr.mxu0 0.0
  %1599 = vmatpush1.msra.mxu0 0.0
  %1600 = vmatprep.subr.mxu0 0.0
  %1601 = vmatpush1.msra.mxu0 0.0
  %1602 = vmatprep.subr.mxu0 0.0
  %1603 = vmatpush1.msra.mxu0 0.0
  %1604 = vmatprep.subr.mxu0 0.0
  %1605 = vmatpush1.msra.mxu0 0.0
  %1606 = vmatprep.subr.mxu0 0.0
  %1607 = vmatpush1.msra.mxu0 0.0
  %1608 = vmatprep.subr.mxu0 0.0
  %1609 = vmatpush1.msra.mxu0 0.0
  %1610 = vmatprep.subr.mxu0 0.0
  %1611 = vmatpush1.msra.mxu0 0.0
  %1612 = vmatprep.subr.mxu0 0.0
  %1613 = vmatpush1.msra.mxu0 0.0
  %1614 = vmatprep.subr.mxu0 0.0
  %1615 = vmatpush1.msra.mxu0 0.0
  %1616 = vmatprep.subr.mxu0 0.0
  %1617 = vmatpush1.msra.mxu0 0.0
  %1618 = vmatprep.subr.mxu0 0.0
  %1619 = vmatpush1.msra.mxu0 0.0
  %1620 = vmatprep.subr.mxu0 0.0
  %1621 = vmatpush1.msra.mxu0 0.0
  %1622 = vmatprep.subr.mxu0 0.0
  %1623 = vmatpush1.msra.mxu0 0.0
  %1624 = vmatprep.subr.mxu0 0.0
  %1625 = vmatpush1.msra.mxu0 0.0
  %1626 = vmatprep.subr.mxu0 0.0
  %1627 = vmatpush1.msra.mxu0 0.0
  %1628 = vmatprep.subr.mxu0 0.0
  %1629 = vmatpush1.msra.mxu0 0.0
  %1630 = vmatprep.subr.mxu0 0.0
  %1631 = vmatpush1.msra.mxu0 0.0
  %1632 = vmatprep.subr.mxu0 0.0
  %1633 = vmatpush1.msra.mxu0 0.0
  %1634 = vmatprep.subr.mxu0 0.0
  %1635 = vmatpush1.msra.mxu0 0.0
  %1636 = vmatprep.subr.mxu0 0.0
  %1637 = vmatpush1.msra.mxu0 0.0
  %1638 = vmatprep.subr.mxu0 0.0
  %1639 = vmatpush1.msra.mxu0 0.0
  %1640 = vmatprep.subr.mxu0 0.0
  %1641 = vmatpush1.msra.mxu0 0.0
  %1642 = vmatprep.subr.mxu0 0.0
  %1643 = vmatpush1.msra.mxu0 0.0
  %1644 = vmatprep.mubr.f32.mxu0 0.0
  %1645 = vmatmul.mubr.f32.gmra.mrb[0].mxu0 %v1342
  %v1646 = vpop.f32.mrb[0].mxu0
  %v1647 = vadd.f32 %v1578, %v1646
  %v1648 = vpop.f32.mrb[0].mxu0
  %1649 = vmatprep.mubr.f32.mxu0 0.0
  %1650 = vmatmul.mubr.f32.gmra.mrb[0].mxu0 %v1344
  %v1651 = vpop.f32.mrb[0].mxu0
  %v1652 = vadd.f32 %v1579, %v1651
  %v1653 = vpop.f32.mrb[0].mxu0
  %1654 = vdwg.mxu0
  %v1655 = vadd.f32 %v1647, %v1567
  %v1656 = vadd.f32 %v1652, %v1567
  %v1657 = vadd.f32 %v1655, %v161
  %v1658 = vadd.f32 %v1656, %v161
  %v1659 = vxor.u32 %v1657, 2147483648
  %v1660 = vxor.u32 %v1658, 2147483648
  %v1661 = vmul.f32 %v1659, 1.442695
  %v1662 = vpow.pop %v1661
  %v1663 = vmul.f32 %v1660, 1.442695
  %v1664 = vpow.pop %v1663
  %v1665 = vadd.f32 %v1662, 1.0
  %v1666 = vadd.f32 %v1664, 1.0
  %v1667 = vrcp.pop %v1665
  %v1668 = vmul.f32 1.0, %v1667
  %v1669 = vrcp.pop %v1666
  %v1670 = vmul.f32 1.0, %v1669
  %v1671 = vtanh.pop %v1657
  %v1672 = vtanh.pop %v1658
  %v1673 = vmul.f32 %v1668, %v1322
  %v1674 = vmul.f32 %v1670, %v1323
  %1677 = vrot.lane.b32.xlu0 %v1671, 112
  %v1678 = vpop.permute.xlu0 %1677
  %1679 = vrot.lane.b32.xlu0 %v1672, 112
  %v1680 = vpop.permute.xlu0 %1679
  %v1683 = vmul.f32 %v1668, %v1678
  %v1684 = vmul.f32 %v1670, %v1680
  %1687 = vrot.lane.b32.xlu0 %v1683, 8
  %v1688 = vpop.permute.xlu0 %1687
  %1689 = vrot.lane.b32.xlu0 %v1684, 8
  %v1690 = vpop.permute.xlu0 %1689
  %v1693 = vadd.f32 %v1673, %v1688
  %v1694 = vadd.f32 %v1674, %v1690
  %v1695 = vtanh.pop %v1693
  %v1696 = vtanh.pop %v1694
  %1699 = vrot.lane.b32.xlu0 %v1695, 16
  %v1700 = vpop.permute.xlu0 %1699
  %1701 = vrot.lane.b32.xlu0 %v1696, 16
  %v1702 = vpop.permute.xlu0 %1701
  %v1705 = vmul.f32 %v1668, %v1700
  %v1706 = vmul.f32 %v1670, %v1702
  %1709 = vrot.lane.b32.xlu0 %v1705, 104
  %v1710 = vpop.permute.xlu0 %1709
  %1711 = vrot.lane.b32.xlu0 %v1706, 104
  %v1712 = vpop.permute.xlu0 %1711
  %v1713 = vsel %vm74, %v1710, 0
  %v1715 = vsel %vm74, %v1712, 0
  %1717 = vmatprep.subr.mxu0 0.0
  %1718 = vmatpush1.msra.mxu0 %v29
  %1719 = vmatprep.subr.mxu0 0.0
  %1720 = vmatpush1.msra.mxu0 0.0
  %1721 = vmatprep.subr.mxu0 0.0
  %1722 = vmatpush1.msra.mxu0 0.0
  %1723 = vmatprep.subr.mxu0 0.0
  %1724 = vmatpush1.msra.mxu0 0.0
  %1725 = vmatprep.subr.mxu0 0.0
  %1726 = vmatpush1.msra.mxu0 0.0
  %1727 = vmatprep.subr.mxu0 0.0
  %1728 = vmatpush1.msra.mxu0 0.0
  %1729 = vmatprep.subr.mxu0 0.0
  %1730 = vmatpush1.msra.mxu0 0.0
  %1731 = vmatprep.subr.mxu0 0.0
  %1732 = vmatpush1.msra.mxu0 0.0
  %1733 = vmatprep.subr.mxu0 0.0
  %1734 = vmatpush1.msra.mxu0 0.0
  %1735 = vmatprep.subr.mxu0 0.0
  %1736 = vmatpush1.msra.mxu0 0.0
  %1737 = vmatprep.subr.mxu0 0.0
  %1738 = vmatpush1.msra.mxu0 0.0
  %1739 = vmatprep.subr.mxu0 0.0
  %1740 = vmatpush1.msra.mxu0 0.0
  %1741 = vmatprep.subr.mxu0 0.0
  %1742 = vmatpush1.msra.mxu0 0.0
  %1743 = vmatprep.subr.mxu0 0.0
  %1744 = vmatpush1.msra.mxu0 0.0
  %1745 = vmatprep.subr.mxu0 0.0
  %1746 = vmatpush1.msra.mxu0 0.0
  %1747 = vmatprep.subr.mxu0 0.0
  %1748 = vmatpush1.msra.mxu0 0.0
  %1749 = vmatprep.subr.mxu0 0.0
  %1750 = vmatpush1.msra.mxu0 0.0
  %1751 = vmatprep.subr.mxu0 0.0
  %1752 = vmatpush1.msra.mxu0 0.0
  %1753 = vmatprep.subr.mxu0 0.0
  %1754 = vmatpush1.msra.mxu0 0.0
  %1755 = vmatprep.subr.mxu0 0.0
  %1756 = vmatpush1.msra.mxu0 0.0
  %1757 = vmatprep.subr.mxu0 0.0
  %1758 = vmatpush1.msra.mxu0 0.0
  %1759 = vmatprep.subr.mxu0 0.0
  %1760 = vmatpush1.msra.mxu0 0.0
  %1761 = vmatprep.subr.mxu0 0.0
  %1762 = vmatpush1.msra.mxu0 0.0
  %1763 = vmatprep.subr.mxu0 0.0
  %1764 = vmatpush1.msra.mxu0 0.0
  %1765 = vmatprep.subr.mxu0 0.0
  %1766 = vmatpush1.msra.mxu0 0.0
  %1767 = vmatprep.subr.mxu0 0.0
  %1768 = vmatpush1.msra.mxu0 0.0
  %1769 = vmatprep.subr.mxu0 0.0
  %1770 = vmatpush1.msra.mxu0 0.0
  %1771 = vmatprep.subr.mxu0 0.0
  %1772 = vmatpush1.msra.mxu0 0.0
  %1773 = vmatprep.subr.mxu0 0.0
  %1774 = vmatpush1.msra.mxu0 0.0
  %1775 = vmatprep.subr.mxu0 0.0
  %1776 = vmatpush1.msra.mxu0 0.0
  %1777 = vmatprep.subr.mxu0 0.0
  %1778 = vmatpush1.msra.mxu0 0.0
  %1779 = vmatprep.subr.mxu0 0.0
  %1780 = vmatpush1.msra.mxu0 0.0
  %1781 = vmatprep.mubr.f32.mxu0 0.0
  %1782 = vmatmul.mubr.f32.gmra.mrb[0].mxu0 %v1713
  %v1783 = vpop.f32.mrb[0].mxu0
  %v1784 = vadd.f32 0.0, %v1783
  %v1785 = vpop.f32.mrb[0].mxu0
  %1786 = vmatprep.mubr.f32.mxu0 0.0
  %1787 = vmatmul.mubr.f32.gmra.mrb[0].mxu0 %v1715
  %v1788 = vpop.f32.mrb[0].mxu0
  %v1789 = vadd.f32 0.0, %v1788
  %v1790 = vpop.f32.mrb[0].mxu0
  %1791 = vdwg.mxu0
  %v1792 = vtanh.pop %v1784
  %v1793 = vtanh.pop %v1789
  %v1794 = vmul.f32 %v1571, %v1792
  %v1795 = vmul.f32 %v1576, %v1793
  %v1796 = vsel %vm309, %v1794, 0.0
  %v1797 = vsel %vm309, %v1795, 0.0
  %v1798 = vadd.f32 %v1796, %v1797
  %v1799 = vrot.slane %v1798, 4
  %v1800 = vadd.f32 %v1798, %v1799
  %v1801 = vrot.slane %v1800, 2
  %v1802 = vadd.f32 %v1800, %v1801
  %v1803 = vrot.slane %v1802, 1
  %v1804 = vadd.f32 %v1802, %v1803
  %v1805 = vtanh.pop %v1804
  %v1807 = vsel %vm309, %v1805, 0
  %1809 = vmatprep.subr.mxu0 0.0
  %1810 = vmatpush1.msra.mxu0 %v30
  %1811 = vmatprep.subr.mxu0 0.0
  %1812 = vmatpush1.msra.mxu0 %v31
  %1813 = vmatprep.subr.mxu0 0.0
  %1814 = vmatpush1.msra.mxu0 0.0
  %1815 = vmatprep.subr.mxu0 0.0
  %1816 = vmatpush1.msra.mxu0 0.0
  %1817 = vmatprep.subr.mxu0 0.0
  %1818 = vmatpush1.msra.mxu0 0.0
  %1819 = vmatprep.subr.mxu0 0.0
  %1820 = vmatpush1.msra.mxu0 0.0
  %1821 = vmatprep.subr.mxu0 0.0
  %1822 = vmatpush1.msra.mxu0 0.0
  %1823 = vmatprep.subr.mxu0 0.0
  %1824 = vmatpush1.msra.mxu0 0.0
  %1825 = vmatprep.subr.mxu0 0.0
  %1826 = vmatpush1.msra.mxu0 0.0
  %1827 = vmatprep.subr.mxu0 0.0
  %1828 = vmatpush1.msra.mxu0 0.0
  %1829 = vmatprep.subr.mxu0 0.0
  %1830 = vmatpush1.msra.mxu0 0.0
  %1831 = vmatprep.subr.mxu0 0.0
  %1832 = vmatpush1.msra.mxu0 0.0
  %1833 = vmatprep.subr.mxu0 0.0
  %1834 = vmatpush1.msra.mxu0 0.0
  %1835 = vmatprep.subr.mxu0 0.0
  %1836 = vmatpush1.msra.mxu0 0.0
  %1837 = vmatprep.subr.mxu0 0.0
  %1838 = vmatpush1.msra.mxu0 0.0
  %1839 = vmatprep.subr.mxu0 0.0
  %1840 = vmatpush1.msra.mxu0 0.0
  %1841 = vmatprep.subr.mxu0 0.0
  %1842 = vmatpush1.msra.mxu0 0.0
  %1843 = vmatprep.subr.mxu0 0.0
  %1844 = vmatpush1.msra.mxu0 0.0
  %1845 = vmatprep.subr.mxu0 0.0
  %1846 = vmatpush1.msra.mxu0 0.0
  %1847 = vmatprep.subr.mxu0 0.0
  %1848 = vmatpush1.msra.mxu0 0.0
  %1849 = vmatprep.subr.mxu0 0.0
  %1850 = vmatpush1.msra.mxu0 0.0
  %1851 = vmatprep.subr.mxu0 0.0
  %1852 = vmatpush1.msra.mxu0 0.0
  %1853 = vmatprep.subr.mxu0 0.0
  %1854 = vmatpush1.msra.mxu0 0.0
  %1855 = vmatprep.subr.mxu0 0.0
  %1856 = vmatpush1.msra.mxu0 0.0
  %1857 = vmatprep.subr.mxu0 0.0
  %1858 = vmatpush1.msra.mxu0 0.0
  %1859 = vmatprep.subr.mxu0 0.0
  %1860 = vmatpush1.msra.mxu0 0.0
  %1861 = vmatprep.subr.mxu0 0.0
  %1862 = vmatpush1.msra.mxu0 0.0
  %1863 = vmatprep.subr.mxu0 0.0
  %1864 = vmatpush1.msra.mxu0 0.0
  %1865 = vmatprep.subr.mxu0 0.0
  %1866 = vmatpush1.msra.mxu0 0.0
  %1867 = vmatprep.subr.mxu0 0.0
  %1868 = vmatpush1.msra.mxu0 0.0
  %1869 = vmatprep.subr.mxu0 0.0
  %1870 = vmatpush1.msra.mxu0 0.0
  %1871 = vmatprep.subr.mxu0 0.0
  %1872 = vmatpush1.msra.mxu0 0.0
  %1873 = vmatprep.mubr.f32.mxu0 0.0
  %1874 = vmatmul.mubr.f32.gmra.mrb[0].mxu0 %v1807
  %v1875 = vpop.f32.mrb[0].mxu0
  %v1876 = vadd.f32 %v32, %v1875
  %v1877 = vpop.f32.mrb[0].mxu0
  %1878 = vdwg.mxu0
  %v1879 = vsel %vm393, %v1876, -inf
  %1880 = vmax.xlane.f32.xlu0 %v1879
  %v1881 = vpop.xlane.xlu0 %1880
  %v1882 = vsub.f32 %v1876, %v1881
  %v1883 = vmul.f32 %v1882, 1.442695
  %v1884 = vpow.pop %v1883
  %v1885 = vsel %vm393, %v1884, 0.0
  %1886 = vadd.xlane.f32.xlu0 %v1885
  %v1887 = vpop.xlane.xlu0 %1886
  %v1888 = vrcp.pop %v1887
  %v1889 = vmul.f32 %v1884, %v1888
  %v1890 = vld [vmem:[%s2 + $0x4] sm:$0x1]
  %v1891 = vadd.f32 %v1876, %v1890
  %v1892 = vsel %vm393, %v1891, -inf
  %1893 = vmax.xlane.f32.xlu0 %v1892
  %v1894 = vpop.xlane.xlu0 %1893
  %vm1895 = vcmp.eq.f32.partialorder %v1891, %v1894
  %v1896 = vsel %vm1895, %v34, 4
  %v1897 = vsel %vm393, %v1896, 2147483647
  %v1898 = vand.u32 %v1897, 65535
  %v1899 = vshra.s32 %v1897, 16
  %v1900 = vcvt.s32.f32 %v1898
  %v1901 = vcvt.s32.f32 %v1899
  %1902 = vmin.xlane.f32.xlu0 %v1901
  %v1903 = vpop.xlane.xlu0 %1902
  %vm1904 = vcmp.eq.f32.partialorder %v1901, %v1903
  %v1905 = vsel %vm1904, %v1900, inf
  %1906 = vmin.xlane.f32.xlu0 %v1905
  %v1907 = vpop.xlane.xlu0 %1906
  %v1908 = vcvt.f32.s32 %v1907
  %v1909 = vcvt.f32.s32 %v1903
  %v1910 = vshll.u32 %v1909, 16
  %v1911 = vadd.s32 %v1910, %v1908
  %vm1912 = vcmp.eq.s32.totalorder %v34, %v1911
  %v1913 = vsel %vm1912, 1, 0
  %v1914 = vcvt.s32.f32 %v1913
  %v1915 = vlaneseq
  %v1916 = vshrl.u32 %v1915, 7
  %v1917 = vsub.s32 0, %v1916
  %v1918 = vrot.slane %v1911, %v1917
  %vm1919 = vcmp.eq.s32.totalorder %v36, %v1918
  %v1920 = vsel %vm1919, 1, 0
  %v1921 = vcvt.s32.f32 %v1920
  %1922 = vst.msk [vmem:[%s7 + $0x4] sm:$0x1] %vm393, %v1889
  %1924 = vrot.lane.b32.xlu0 %v1914, 4
  %v1925 = vpop.permute.xlu0 %1924
  %1927 = vst.msk [vmem:[%s7 + $0x4] sm:$0x1] %vm442, %v1925
  %s1928 = scalar_lea.vmem %s1, 80
  %v1929 = vld [vmem:[%s1928] sm:$0xff]
  %v1930 = vld [vmem:[%s1928 + $0x8] sm:$0xff]
  %v1931 = vmul.f32 %v1921, %v26
  %v1932 = vsel %vm50, %v1931, 0.0
  %v1933 = vrot.slane %v1932, 4
  %v1934 = vadd.f32 %v1932, %v1933
  %v1935 = vrot.slane %v1934, 2
  %v1936 = vadd.f32 %v1934, %v1935
  %v1937 = vrot.slane %v1936, 1
  %v1938 = vadd.f32 %v1936, %v1937
  %1940 = vset.pattern.permute.xlu0 0
  %1941 = vperm.xlu0 %1940, %v1929
  %v1942 = vpop.permute.xlu0 %1941
  %1945 = vset.pattern.permute.xlu0 0
  %1946 = vperm.xlu0 %1945, %v1930
  %v1947 = vpop.permute.xlu0 %1946
  %v1949 = vmul.f32 %v1942, %v71
  %v1950 = vmul.f32 %v1947, %v71
  %1951 = vmatprep.subr.mxu0 0.0
  %1952 = vmatpush1.msra.mxu0 %v25
  %1953 = vmatprep.subr.mxu0 0.0
  %1954 = vmatpush1.msra.mxu0 0.0
  %1955 = vmatprep.subr.mxu0 0.0
  %1956 = vmatpush1.msra.mxu0 0.0
  %1957 = vmatprep.subr.mxu0 0.0
  %1958 = vmatpush1.msra.mxu0 0.0
  %1959 = vmatprep.subr.mxu0 0.0
  %1960 = vmatpush1.msra.mxu0 0.0
  %1961 = vmatprep.subr.mxu0 0.0
  %1962 = vmatpush1.msra.mxu0 0.0
  %1963 = vmatprep.subr.mxu0 0.0
  %1964 = vmatpush1.msra.mxu0 0.0
  %1965 = vmatprep.subr.mxu0 0.0
  %1966 = vmatpush1.msra.mxu0 0.0
  %1967 = vmatprep.subr.mxu0 0.0
  %1968 = vmatpush1.msra.mxu0 0.0
  %1969 = vmatprep.subr.mxu0 0.0
  %1970 = vmatpush1.msra.mxu0 0.0
  %1971 = vmatprep.subr.mxu0 0.0
  %1972 = vmatpush1.msra.mxu0 0.0
  %1973 = vmatprep.subr.mxu0 0.0
  %1974 = vmatpush1.msra.mxu0 0.0
  %1975 = vmatprep.subr.mxu0 0.0
  %1976 = vmatpush1.msra.mxu0 0.0
  %1977 = vmatprep.subr.mxu0 0.0
  %1978 = vmatpush1.msra.mxu0 0.0
  %1979 = vmatprep.subr.mxu0 0.0
  %1980 = vmatpush1.msra.mxu0 0.0
  %1981 = vmatprep.subr.mxu0 0.0
  %1982 = vmatpush1.msra.mxu0 0.0
  %1983 = vmatprep.subr.mxu0 0.0
  %1984 = vmatpush1.msra.mxu0 0.0
  %1985 = vmatprep.subr.mxu0 0.0
  %1986 = vmatpush1.msra.mxu0 0.0
  %1987 = vmatprep.subr.mxu0 0.0
  %1988 = vmatpush1.msra.mxu0 0.0
  %1989 = vmatprep.subr.mxu0 0.0
  %1990 = vmatpush1.msra.mxu0 0.0
  %1991 = vmatprep.subr.mxu0 0.0
  %1992 = vmatpush1.msra.mxu0 0.0
  %1993 = vmatprep.subr.mxu0 0.0
  %1994 = vmatpush1.msra.mxu0 0.0
  %1995 = vmatprep.subr.mxu0 0.0
  %1996 = vmatpush1.msra.mxu0 0.0
  %1997 = vmatprep.subr.mxu0 0.0
  %1998 = vmatpush1.msra.mxu0 0.0
  %1999 = vmatprep.subr.mxu0 0.0
  %2000 = vmatpush1.msra.mxu0 0.0
  %2001 = vmatprep.subr.mxu0 0.0
  %2002 = vmatpush1.msra.mxu0 0.0
  %2003 = vmatprep.subr.mxu0 0.0
  %2004 = vmatpush1.msra.mxu0 0.0
  %2005 = vmatprep.subr.mxu0 0.0
  %2006 = vmatpush1.msra.mxu0 0.0
  %2007 = vmatprep.subr.mxu0 0.0
  %2008 = vmatpush1.msra.mxu0 0.0
  %2009 = vmatprep.subr.mxu0 0.0
  %2010 = vmatpush1.msra.mxu0 0.0
  %2011 = vmatprep.subr.mxu0 0.0
  %2012 = vmatpush1.msra.mxu0 0.0
  %2013 = vmatprep.subr.mxu0 0.0
  %2014 = vmatpush1.msra.mxu0 0.0
  %2015 = vmatprep.mubr.f32.mxu0 0.0
  %2016 = vmatmul.mubr.f32.gmra.mrb[0].mxu0 %v1713
  %v2017 = vpop.f32.mrb[0].mxu0
  %v2018 = vadd.f32 %v1949, %v2017
  %v2019 = vpop.f32.mrb[0].mxu0
  %2020 = vmatprep.mubr.f32.mxu0 0.0
  %2021 = vmatmul.mubr.f32.gmra.mrb[0].mxu0 %v1715
  %v2022 = vpop.f32.mrb[0].mxu0
  %v2023 = vadd.f32 %v1950, %v2022
  %v2024 = vpop.f32.mrb[0].mxu0
  %2025 = vdwg.mxu0
  %v2026 = vadd.f32 %v2018, %v1938
  %v2027 = vadd.f32 %v2023, %v1938
  %v2028 = vadd.f32 %v2026, %v161
  %v2029 = vadd.f32 %v2027, %v161
  %v2030 = vxor.u32 %v2028, 2147483648
  %v2031 = vxor.u32 %v2029, 2147483648
  %v2032 = vmul.f32 %v2030, 1.442695
  %v2033 = vpow.pop %v2032
  %v2034 = vmul.f32 %v2031, 1.442695
  %v2035 = vpow.pop %v2034
  %v2036 = vadd.f32 %v2033, 1.0
  %v2037 = vadd.f32 %v2035, 1.0
  %v2038 = vrcp.pop %v2036
  %v2039 = vmul.f32 1.0, %v2038
  %v2040 = vrcp.pop %v2037
  %v2041 = vmul.f32 1.0, %v2040
  %v2042 = vtanh.pop %v2028
  %v2043 = vtanh.pop %v2029
  %v2044 = vmul.f32 %v2039, %v1693
  %v2045 = vmul.f32 %v2041, %v1694
  %2048 = vrot.lane.b32.xlu0 %v2042, 112
  %v2049 = vpop.permute.xlu0 %2048
  %2050 = vrot.lane.b32.xlu0 %v2043, 112
  %v2051 = vpop.permute.xlu0 %2050
  %v2054 = vmul.f32 %v2039, %v2049
  %v2055 = vmul.f32 %v2041, %v2051
  %2058 = vrot.lane.b32.xlu0 %v2054, 8
  %v2059 = vpop.permute.xlu0 %2058
  %2060 = vrot.lane.b32.xlu0 %v2055, 8
  %v2061 = vpop.permute.xlu0 %2060
  %v2064 = vadd.f32 %v2044, %v2059
  %v2065 = vadd.f32 %v2045, %v2061
  %v2066 = vtanh.pop %v2064
  %v2067 = vtanh.pop %v2065
  %2070 = vrot.lane.b32.xlu0 %v2066, 16
  %v2071 = vpop.permute.xlu0 %2070
  %2072 = vrot.lane.b32.xlu0 %v2067, 16
  %v2073 = vpop.permute.xlu0 %2072
  %v2076 = vmul.f32 %v2039, %v2071
  %v2077 = vmul.f32 %v2041, %v2073
  %2080 = vrot.lane.b32.xlu0 %v2076, 104
  %v2081 = vpop.permute.xlu0 %2080
  %2082 = vrot.lane.b32.xlu0 %v2077, 104
  %v2083 = vpop.permute.xlu0 %2082
  %v2084 = vsel %vm74, %v2081, 0
  %v2086 = vsel %vm74, %v2083, 0
  %2088 = vmatprep.subr.mxu0 0.0
  %2089 = vmatpush1.msra.mxu0 %v29
  %2090 = vmatprep.subr.mxu0 0.0
  %2091 = vmatpush1.msra.mxu0 0.0
  %2092 = vmatprep.subr.mxu0 0.0
  %2093 = vmatpush1.msra.mxu0 0.0
  %2094 = vmatprep.subr.mxu0 0.0
  %2095 = vmatpush1.msra.mxu0 0.0
  %2096 = vmatprep.subr.mxu0 0.0
  %2097 = vmatpush1.msra.mxu0 0.0
  %2098 = vmatprep.subr.mxu0 0.0
  %2099 = vmatpush1.msra.mxu0 0.0
  %2100 = vmatprep.subr.mxu0 0.0
  %2101 = vmatpush1.msra.mxu0 0.0
  %2102 = vmatprep.subr.mxu0 0.0
  %2103 = vmatpush1.msra.mxu0 0.0
  %2104 = vmatprep.subr.mxu0 0.0
  %2105 = vmatpush1.msra.mxu0 0.0
  %2106 = vmatprep.subr.mxu0 0.0
  %2107 = vmatpush1.msra.mxu0 0.0
  %2108 = vmatprep.subr.mxu0 0.0
  %2109 = vmatpush1.msra.mxu0 0.0
  %2110 = vmatprep.subr.mxu0 0.0
  %2111 = vmatpush1.msra.mxu0 0.0
  %2112 = vmatprep.subr.mxu0 0.0
  %2113 = vmatpush1.msra.mxu0 0.0
  %2114 = vmatprep.subr.mxu0 0.0
  %2115 = vmatpush1.msra.mxu0 0.0
  %2116 = vmatprep.subr.mxu0 0.0
  %2117 = vmatpush1.msra.mxu0 0.0
  %2118 = vmatprep.subr.mxu0 0.0
  %2119 = vmatpush1.msra.mxu0 0.0
  %2120 = vmatprep.subr.mxu0 0.0
  %2121 = vmatpush1.msra.mxu0 0.0
  %2122 = vmatprep.subr.mxu0 0.0
  %2123 = vmatpush1.msra.mxu0 0.0
  %2124 = vmatprep.subr.mxu0 0.0
  %2125 = vmatpush1.msra.mxu0 0.0
  %2126 = vmatprep.subr.mxu0 0.0
  %2127 = vmatpush1.msra.mxu0 0.0
  %2128 = vmatprep.subr.mxu0 0.0
  %2129 = vmatpush1.msra.mxu0 0.0
  %2130 = vmatprep.subr.mxu0 0.0
  %2131 = vmatpush1.msra.mxu0 0.0
  %2132 = vmatprep.subr.mxu0 0.0
  %2133 = vmatpush1.msra.mxu0 0.0
  %2134 = vmatprep.subr.mxu0 0.0
  %2135 = vmatpush1.msra.mxu0 0.0
  %2136 = vmatprep.subr.mxu0 0.0
  %2137 = vmatpush1.msra.mxu0 0.0
  %2138 = vmatprep.subr.mxu0 0.0
  %2139 = vmatpush1.msra.mxu0 0.0
  %2140 = vmatprep.subr.mxu0 0.0
  %2141 = vmatpush1.msra.mxu0 0.0
  %2142 = vmatprep.subr.mxu0 0.0
  %2143 = vmatpush1.msra.mxu0 0.0
  %2144 = vmatprep.subr.mxu0 0.0
  %2145 = vmatpush1.msra.mxu0 0.0
  %2146 = vmatprep.subr.mxu0 0.0
  %2147 = vmatpush1.msra.mxu0 0.0
  %2148 = vmatprep.subr.mxu0 0.0
  %2149 = vmatpush1.msra.mxu0 0.0
  %2150 = vmatprep.subr.mxu0 0.0
  %2151 = vmatpush1.msra.mxu0 0.0
  %2152 = vmatprep.mubr.f32.mxu0 0.0
  %2153 = vmatmul.mubr.f32.gmra.mrb[0].mxu0 %v2084
  %v2154 = vpop.f32.mrb[0].mxu0
  %v2155 = vadd.f32 0.0, %v2154
  %v2156 = vpop.f32.mrb[0].mxu0
  %2157 = vmatprep.mubr.f32.mxu0 0.0
  %2158 = vmatmul.mubr.f32.gmra.mrb[0].mxu0 %v2086
  %v2159 = vpop.f32.mrb[0].mxu0
  %v2160 = vadd.f32 0.0, %v2159
  %v2161 = vpop.f32.mrb[0].mxu0
  %2162 = vdwg.mxu0
  %v2163 = vtanh.pop %v2155
  %v2164 = vtanh.pop %v2160
  %v2165 = vmul.f32 %v1942, %v2163
  %v2166 = vmul.f32 %v1947, %v2164
  %v2167 = vsel %vm309, %v2165, 0.0
  %v2168 = vsel %vm309, %v2166, 0.0
  %v2169 = vadd.f32 %v2167, %v2168
  %v2170 = vrot.slane %v2169, 4
  %v2171 = vadd.f32 %v2169, %v2170
  %v2172 = vrot.slane %v2171, 2
  %v2173 = vadd.f32 %v2171, %v2172
  %v2174 = vrot.slane %v2173, 1
  %v2175 = vadd.f32 %v2173, %v2174
  %v2176 = vtanh.pop %v2175
  %v2178 = vsel %vm309, %v2176, 0
  %2180 = vmatprep.subr.mxu0 0.0
  %2181 = vmatpush1.msra.mxu0 %v30
  %2182 = vmatprep.subr.mxu0 0.0
  %2183 = vmatpush1.msra.mxu0 %v31
  %2184 = vmatprep.subr.mxu0 0.0
  %2185 = vmatpush1.msra.mxu0 0.0
  %2186 = vmatprep.subr.mxu0 0.0
  %2187 = vmatpush1.msra.mxu0 0.0
  %2188 = vmatprep.subr.mxu0 0.0
  %2189 = vmatpush1.msra.mxu0 0.0
  %2190 = vmatprep.subr.mxu0 0.0
  %2191 = vmatpush1.msra.mxu0 0.0
  %2192 = vmatprep.subr.mxu0 0.0
  %2193 = vmatpush1.msra.mxu0 0.0
  %2194 = vmatprep.subr.mxu0 0.0
  %2195 = vmatpush1.msra.mxu0 0.0
  %2196 = vmatprep.subr.mxu0 0.0
  %2197 = vmatpush1.msra.mxu0 0.0
  %2198 = vmatprep.subr.mxu0 0.0
  %2199 = vmatpush1.msra.mxu0 0.0
  %2200 = vmatprep.subr.mxu0 0.0
  %2201 = vmatpush1.msra.mxu0 0.0
  %2202 = vmatprep.subr.mxu0 0.0
  %2203 = vmatpush1.msra.mxu0 0.0
  %2204 = vmatprep.subr.mxu0 0.0
  %2205 = vmatpush1.msra.mxu0 0.0
  %2206 = vmatprep.subr.mxu0 0.0
  %2207 = vmatpush1.msra.mxu0 0.0
  %2208 = vmatprep.subr.mxu0 0.0
  %2209 = vmatpush1.msra.mxu0 0.0
  %2210 = vmatprep.subr.mxu0 0.0
  %2211 = vmatpush1.msra.mxu0 0.0
  %2212 = vmatprep.subr.mxu0 0.0
  %2213 = vmatpush1.msra.mxu0 0.0
  %2214 = vmatprep.subr.mxu0 0.0
  %2215 = vmatpush1.msra.mxu0 0.0
  %2216 = vmatprep.subr.mxu0 0.0
  %2217 = vmatpush1.msra.mxu0 0.0
  %2218 = vmatprep.subr.mxu0 0.0
  %2219 = vmatpush1.msra.mxu0 0.0
  %2220 = vmatprep.subr.mxu0 0.0
  %2221 = vmatpush1.msra.mxu0 0.0
  %2222 = vmatprep.subr.mxu0 0.0
  %2223 = vmatpush1.msra.mxu0 0.0
  %2224 = vmatprep.subr.mxu0 0.0
  %2225 = vmatpush1.msra.mxu0 0.0
  %2226 = vmatprep.subr.mxu0 0.0
  %2227 = vmatpush1.msra.mxu0 0.0
  %2228 = vmatprep.subr.mxu0 0.0
  %2229 = vmatpush1.msra.mxu0 0.0
  %2230 = vmatprep.subr.mxu0 0.0
  %2231 = vmatpush1.msra.mxu0 0.0
  %2232 = vmatprep.subr.mxu0 0.0
  %2233 = vmatpush1.msra.mxu0 0.0
  %2234 = vmatprep.subr.mxu0 0.0
  %2235 = vmatpush1.msra.mxu0 0.0
  %2236 = vmatprep.subr.mxu0 0.0
  %2237 = vmatpush1.msra.mxu0 0.0
  %2238 = vmatprep.subr.mxu0 0.0
  %2239 = vmatpush1.msra.mxu0 0.0
  %2240 = vmatprep.subr.mxu0 0.0
  %2241 = vmatpush1.msra.mxu0 0.0
  %2242 = vmatprep.subr.mxu0 0.0
  %2243 = vmatpush1.msra.mxu0 0.0
  %2244 = vmatprep.mubr.f32.mxu0 0.0
  %2245 = vmatmul.mubr.f32.gmra.mrb[0].mxu0 %v2178
  %v2246 = vpop.f32.mrb[0].mxu0
  %v2247 = vadd.f32 %v32, %v2246
  %v2248 = vpop.f32.mrb[0].mxu0
  %2249 = vdwg.mxu0
  %v2250 = vsel %vm393, %v2247, -inf
  %2251 = vmax.xlane.f32.xlu0 %v2250
  %v2252 = vpop.xlane.xlu0 %2251
  %v2253 = vsub.f32 %v2247, %v2252
  %v2254 = vmul.f32 %v2253, 1.442695
  %v2255 = vpow.pop %v2254
  %v2256 = vsel %vm393, %v2255, 0.0
  %2257 = vadd.xlane.f32.xlu0 %v2256
  %v2258 = vpop.xlane.xlu0 %2257
  %v2259 = vrcp.pop %v2258
  %v2260 = vmul.f32 %v2255, %v2259
  %v2261 = vld [vmem:[%s2 + $0x5] sm:$0x1]
  %v2262 = vadd.f32 %v2247, %v2261
  %v2263 = vsel %vm393, %v2262, -inf
  %2264 = vmax.xlane.f32.xlu0 %v2263
  %v2265 = vpop.xlane.xlu0 %2264
  %vm2266 = vcmp.eq.f32.partialorder %v2262, %v2265
  %v2267 = vsel %vm2266, %v34, 4
  %v2268 = vsel %vm393, %v2267, 2147483647
  %v2269 = vand.u32 %v2268, 65535
  %v2270 = vshra.s32 %v2268, 16
  %v2271 = vcvt.s32.f32 %v2269
  %v2272 = vcvt.s32.f32 %v2270
  %2273 = vmin.xlane.f32.xlu0 %v2272
  %v2274 = vpop.xlane.xlu0 %2273
  %vm2275 = vcmp.eq.f32.partialorder %v2272, %v2274
  %v2276 = vsel %vm2275, %v2271, inf
  %2277 = vmin.xlane.f32.xlu0 %v2276
  %v2278 = vpop.xlane.xlu0 %2277
  %v2279 = vcvt.f32.s32 %v2278
  %v2280 = vcvt.f32.s32 %v2274
  %v2281 = vshll.u32 %v2280, 16
  %v2282 = vadd.s32 %v2281, %v2279
  %vm2283 = vcmp.eq.s32.totalorder %v34, %v2282
  %v2284 = vsel %vm2283, 1, 0
  %v2285 = vcvt.s32.f32 %v2284
  %v2286 = vlaneseq
  %v2287 = vshrl.u32 %v2286, 7
  %v2288 = vsub.s32 0, %v2287
  %v2289 = vrot.slane %v2282, %v2288
  %vm2290 = vcmp.eq.s32.totalorder %v36, %v2289
  %v2291 = vsel %vm2290, 1, 0
  %v2292 = vcvt.s32.f32 %v2291
  %2293 = vst.msk [vmem:[%s7 + $0x5] sm:$0x1] %vm393, %v2260
  %2295 = vrot.lane.b32.xlu0 %v2285, 4
  %v2296 = vpop.permute.xlu0 %2295
  %2298 = vst.msk [vmem:[%s7 + $0x5] sm:$0x1] %vm442, %v2296
  %s2299 = scalar_lea.vmem %s1, 96
  %v2300 = vld [vmem:[%s2299] sm:$0xff]
  %v2301 = vld [vmem:[%s2299 + $0x8] sm:$0xff]
  %v2302 = vmul.f32 %v2292, %v26
  %v2303 = vsel %vm50, %v2302, 0.0
  %v2304 = vrot.slane %v2303, 4
  %v2305 = vadd.f32 %v2303, %v2304
  %v2306 = vrot.slane %v2305, 2
  %v2307 = vadd.f32 %v2305, %v2306
  %v2308 = vrot.slane %v2307, 1
  %v2309 = vadd.f32 %v2307, %v2308
  %2311 = vset.pattern.permute.xlu0 0
  %2312 = vperm.xlu0 %2311, %v2300
  %v2313 = vpop.permute.xlu0 %2312
  %2316 = vset.pattern.permute.xlu0 0
  %2317 = vperm.xlu0 %2316, %v2301
  %v2318 = vpop.permute.xlu0 %2317
  %v2320 = vmul.f32 %v2313, %v71
  %v2321 = vmul.f32 %v2318, %v71
  %2322 = vmatprep.subr.mxu0 0.0
  %2323 = vmatpush1.msra.mxu0 %v25
  %2324 = vmatprep.subr.mxu0 0.0
  %2325 = vmatpush1.msra.mxu0 0.0
  %2326 = vmatprep.subr.mxu0 0.0
  %2327 = vmatpush1.msra.mxu0 0.0
  %2328 = vmatprep.subr.mxu0 0.0
  %2329 = vmatpush1.msra.mxu0 0.0
  %2330 = vmatprep.subr.mxu0 0.0
  %2331 = vmatpush1.msra.mxu0 0.0
  %2332 = vmatprep.subr.mxu0 0.0
  %2333 = vmatpush1.msra.mxu0 0.0
  %2334 = vmatprep.subr.mxu0 0.0
  %2335 = vmatpush1.msra.mxu0 0.0
  %2336 = vmatprep.subr.mxu0 0.0
  %2337 = vmatpush1.msra.mxu0 0.0
  %2338 = vmatprep.subr.mxu0 0.0
  %2339 = vmatpush1.msra.mxu0 0.0
  %2340 = vmatprep.subr.mxu0 0.0
  %2341 = vmatpush1.msra.mxu0 0.0
  %2342 = vmatprep.subr.mxu0 0.0
  %2343 = vmatpush1.msra.mxu0 0.0
  %2344 = vmatprep.subr.mxu0 0.0
  %2345 = vmatpush1.msra.mxu0 0.0
  %2346 = vmatprep.subr.mxu0 0.0
  %2347 = vmatpush1.msra.mxu0 0.0
  %2348 = vmatprep.subr.mxu0 0.0
  %2349 = vmatpush1.msra.mxu0 0.0
  %2350 = vmatprep.subr.mxu0 0.0
  %2351 = vmatpush1.msra.mxu0 0.0
  %2352 = vmatprep.subr.mxu0 0.0
  %2353 = vmatpush1.msra.mxu0 0.0
  %2354 = vmatprep.subr.mxu0 0.0
  %2355 = vmatpush1.msra.mxu0 0.0
  %2356 = vmatprep.subr.mxu0 0.0
  %2357 = vmatpush1.msra.mxu0 0.0
  %2358 = vmatprep.subr.mxu0 0.0
  %2359 = vmatpush1.msra.mxu0 0.0
  %2360 = vmatprep.subr.mxu0 0.0
  %2361 = vmatpush1.msra.mxu0 0.0
  %2362 = vmatprep.subr.mxu0 0.0
  %2363 = vmatpush1.msra.mxu0 0.0
  %2364 = vmatprep.subr.mxu0 0.0
  %2365 = vmatpush1.msra.mxu0 0.0
  %2366 = vmatprep.subr.mxu0 0.0
  %2367 = vmatpush1.msra.mxu0 0.0
  %2368 = vmatprep.subr.mxu0 0.0
  %2369 = vmatpush1.msra.mxu0 0.0
  %2370 = vmatprep.subr.mxu0 0.0
  %2371 = vmatpush1.msra.mxu0 0.0
  %2372 = vmatprep.subr.mxu0 0.0
  %2373 = vmatpush1.msra.mxu0 0.0
  %2374 = vmatprep.subr.mxu0 0.0
  %2375 = vmatpush1.msra.mxu0 0.0
  %2376 = vmatprep.subr.mxu0 0.0
  %2377 = vmatpush1.msra.mxu0 0.0
  %2378 = vmatprep.subr.mxu0 0.0
  %2379 = vmatpush1.msra.mxu0 0.0
  %2380 = vmatprep.subr.mxu0 0.0
  %2381 = vmatpush1.msra.mxu0 0.0
  %2382 = vmatprep.subr.mxu0 0.0
  %2383 = vmatpush1.msra.mxu0 0.0
  %2384 = vmatprep.subr.mxu0 0.0
  %2385 = vmatpush1.msra.mxu0 0.0
  %2386 = vmatprep.mubr.f32.mxu0 0.0
  %2387 = vmatmul.mubr.f32.gmra.mrb[0].mxu0 %v2084
  %v2388 = vpop.f32.mrb[0].mxu0
  %v2389 = vadd.f32 %v2320, %v2388
  %v2390 = vpop.f32.mrb[0].mxu0
  %2391 = vmatprep.mubr.f32.mxu0 0.0
  %2392 = vmatmul.mubr.f32.gmra.mrb[0].mxu0 %v2086
  %v2393 = vpop.f32.mrb[0].mxu0
  %v2394 = vadd.f32 %v2321, %v2393
  %v2395 = vpop.f32.mrb[0].mxu0
  %2396 = vdwg.mxu0
  %v2397 = vadd.f32 %v2389, %v2309
  %v2398 = vadd.f32 %v2394, %v2309
  %v2399 = vadd.f32 %v2397, %v161
  %v2400 = vadd.f32 %v2398, %v161
  %v2401 = vxor.u32 %v2399, 2147483648
  %v2402 = vxor.u32 %v2400, 2147483648
  %v2403 = vmul.f32 %v2401, 1.442695
  %v2404 = vpow.pop %v2403
  %v2405 = vmul.f32 %v2402, 1.442695
  %v2406 = vpow.pop %v2405
  %v2407 = vadd.f32 %v2404, 1.0
  %v2408 = vadd.f32 %v2406, 1.0
  %v2409 = vrcp.pop %v2407
  %v2410 = vmul.f32 1.0, %v2409
  %v2411 = vrcp.pop %v2408
  %v2412 = vmul.f32 1.0, %v2411
  %v2413 = vtanh.pop %v2399
  %v2414 = vtanh.pop %v2400
  %v2415 = vmul.f32 %v2410, %v2064
  %v2416 = vmul.f32 %v2412, %v2065
  %2419 = vrot.lane.b32.xlu0 %v2413, 112
  %v2420 = vpop.permute.xlu0 %2419
  %2421 = vrot.lane.b32.xlu0 %v2414, 112
  %v2422 = vpop.permute.xlu0 %2421
  %v2425 = vmul.f32 %v2410, %v2420
  %v2426 = vmul.f32 %v2412, %v2422
  %2429 = vrot.lane.b32.xlu0 %v2425, 8
  %v2430 = vpop.permute.xlu0 %2429
  %2431 = vrot.lane.b32.xlu0 %v2426, 8
  %v2432 = vpop.permute.xlu0 %2431
  %v2435 = vadd.f32 %v2415, %v2430
  %v2436 = vadd.f32 %v2416, %v2432
  %v2437 = vtanh.pop %v2435
  %v2438 = vtanh.pop %v2436
  %2441 = vrot.lane.b32.xlu0 %v2437, 16
  %v2442 = vpop.permute.xlu0 %2441
  %2443 = vrot.lane.b32.xlu0 %v2438, 16
  %v2444 = vpop.permute.xlu0 %2443
  %v2447 = vmul.f32 %v2410, %v2442
  %v2448 = vmul.f32 %v2412, %v2444
  %2451 = vrot.lane.b32.xlu0 %v2447, 104
  %v2452 = vpop.permute.xlu0 %2451
  %2453 = vrot.lane.b32.xlu0 %v2448, 104
  %v2454 = vpop.permute.xlu0 %2453
  %v2455 = vsel %vm74, %v2452, 0
  %v2457 = vsel %vm74, %v2454, 0
  %2459 = vmatprep.subr.mxu0 0.0
  %2460 = vmatpush1.msra.mxu0 %v29
  %2461 = vmatprep.subr.mxu0 0.0
  %2462 = vmatpush1.msra.mxu0 0.0
  %2463 = vmatprep.subr.mxu0 0.0
  %2464 = vmatpush1.msra.mxu0 0.0
  %2465 = vmatprep.subr.mxu0 0.0
  %2466 = vmatpush1.msra.mxu0 0.0
  %2467 = vmatprep.subr.mxu0 0.0
  %2468 = vmatpush1.msra.mxu0 0.0
  %2469 = vmatprep.subr.mxu0 0.0
  %2470 = vmatpush1.msra.mxu0 0.0
  %2471 = vmatprep.subr.mxu0 0.0
  %2472 = vmatpush1.msra.mxu0 0.0
  %2473 = vmatprep.subr.mxu0 0.0
  %2474 = vmatpush1.msra.mxu0 0.0
  %2475 = vmatprep.subr.mxu0 0.0
  %2476 = vmatpush1.msra.mxu0 0.0
  %2477 = vmatprep.subr.mxu0 0.0
  %2478 = vmatpush1.msra.mxu0 0.0
  %2479 = vmatprep.subr.mxu0 0.0
  %2480 = vmatpush1.msra.mxu0 0.0
  %2481 = vmatprep.subr.mxu0 0.0
  %2482 = vmatpush1.msra.mxu0 0.0
  %2483 = vmatprep.subr.mxu0 0.0
  %2484 = vmatpush1.msra.mxu0 0.0
  %2485 = vmatprep.subr.mxu0 0.0
  %2486 = vmatpush1.msra.mxu0 0.0
  %2487 = vmatprep.subr.mxu0 0.0
  %2488 = vmatpush1.msra.mxu0 0.0
  %2489 = vmatprep.subr.mxu0 0.0
  %2490 = vmatpush1.msra.mxu0 0.0
  %2491 = vmatprep.subr.mxu0 0.0
  %2492 = vmatpush1.msra.mxu0 0.0
  %2493 = vmatprep.subr.mxu0 0.0
  %2494 = vmatpush1.msra.mxu0 0.0
  %2495 = vmatprep.subr.mxu0 0.0
  %2496 = vmatpush1.msra.mxu0 0.0
  %2497 = vmatprep.subr.mxu0 0.0
  %2498 = vmatpush1.msra.mxu0 0.0
  %2499 = vmatprep.subr.mxu0 0.0
  %2500 = vmatpush1.msra.mxu0 0.0
  %2501 = vmatprep.subr.mxu0 0.0
  %2502 = vmatpush1.msra.mxu0 0.0
  %2503 = vmatprep.subr.mxu0 0.0
  %2504 = vmatpush1.msra.mxu0 0.0
  %2505 = vmatprep.subr.mxu0 0.0
  %2506 = vmatpush1.msra.mxu0 0.0
  %2507 = vmatprep.subr.mxu0 0.0
  %2508 = vmatpush1.msra.mxu0 0.0
  %2509 = vmatprep.subr.mxu0 0.0
  %2510 = vmatpush1.msra.mxu0 0.0
  %2511 = vmatprep.subr.mxu0 0.0
  %2512 = vmatpush1.msra.mxu0 0.0
  %2513 = vmatprep.subr.mxu0 0.0
  %2514 = vmatpush1.msra.mxu0 0.0
  %2515 = vmatprep.subr.mxu0 0.0
  %2516 = vmatpush1.msra.mxu0 0.0
  %2517 = vmatprep.subr.mxu0 0.0
  %2518 = vmatpush1.msra.mxu0 0.0
  %2519 = vmatprep.subr.mxu0 0.0
  %2520 = vmatpush1.msra.mxu0 0.0
  %2521 = vmatprep.subr.mxu0 0.0
  %2522 = vmatpush1.msra.mxu0 0.0
  %2523 = vmatprep.mubr.f32.mxu0 0.0
  %2524 = vmatmul.mubr.f32.gmra.mrb[0].mxu0 %v2455
  %v2525 = vpop.f32.mrb[0].mxu0
  %v2526 = vadd.f32 0.0, %v2525
  %v2527 = vpop.f32.mrb[0].mxu0
  %2528 = vmatprep.mubr.f32.mxu0 0.0
  %2529 = vmatmul.mubr.f32.gmra.mrb[0].mxu0 %v2457
  %v2530 = vpop.f32.mrb[0].mxu0
  %v2531 = vadd.f32 0.0, %v2530
  %v2532 = vpop.f32.mrb[0].mxu0
  %2533 = vdwg.mxu0
  %v2534 = vtanh.pop %v2526
  %v2535 = vtanh.pop %v2531
  %v2536 = vmul.f32 %v2313, %v2534
  %v2537 = vmul.f32 %v2318, %v2535
  %v2538 = vsel %vm309, %v2536, 0.0
  %v2539 = vsel %vm309, %v2537, 0.0
  %v2540 = vadd.f32 %v2538, %v2539
  %v2541 = vrot.slane %v2540, 4
  %v2542 = vadd.f32 %v2540, %v2541
  %v2543 = vrot.slane %v2542, 2
  %v2544 = vadd.f32 %v2542, %v2543
  %v2545 = vrot.slane %v2544, 1
  %v2546 = vadd.f32 %v2544, %v2545
  %v2547 = vtanh.pop %v2546
  %v2549 = vsel %vm309, %v2547, 0
  %2551 = vmatprep.subr.mxu0 0.0
  %2552 = vmatpush1.msra.mxu0 %v30
  %2553 = vmatprep.subr.mxu0 0.0
  %2554 = vmatpush1.msra.mxu0 %v31
  %2555 = vmatprep.subr.mxu0 0.0
  %2556 = vmatpush1.msra.mxu0 0.0
  %2557 = vmatprep.subr.mxu0 0.0
  %2558 = vmatpush1.msra.mxu0 0.0
  %2559 = vmatprep.subr.mxu0 0.0
  %2560 = vmatpush1.msra.mxu0 0.0
  %2561 = vmatprep.subr.mxu0 0.0
  %2562 = vmatpush1.msra.mxu0 0.0
  %2563 = vmatprep.subr.mxu0 0.0
  %2564 = vmatpush1.msra.mxu0 0.0
  %2565 = vmatprep.subr.mxu0 0.0
  %2566 = vmatpush1.msra.mxu0 0.0
  %2567 = vmatprep.subr.mxu0 0.0
  %2568 = vmatpush1.msra.mxu0 0.0
  %2569 = vmatprep.subr.mxu0 0.0
  %2570 = vmatpush1.msra.mxu0 0.0
  %2571 = vmatprep.subr.mxu0 0.0
  %2572 = vmatpush1.msra.mxu0 0.0
  %2573 = vmatprep.subr.mxu0 0.0
  %2574 = vmatpush1.msra.mxu0 0.0
  %2575 = vmatprep.subr.mxu0 0.0
  %2576 = vmatpush1.msra.mxu0 0.0
  %2577 = vmatprep.subr.mxu0 0.0
  %2578 = vmatpush1.msra.mxu0 0.0
  %2579 = vmatprep.subr.mxu0 0.0
  %2580 = vmatpush1.msra.mxu0 0.0
  %2581 = vmatprep.subr.mxu0 0.0
  %2582 = vmatpush1.msra.mxu0 0.0
  %2583 = vmatprep.subr.mxu0 0.0
  %2584 = vmatpush1.msra.mxu0 0.0
  %2585 = vmatprep.subr.mxu0 0.0
  %2586 = vmatpush1.msra.mxu0 0.0
  %2587 = vmatprep.subr.mxu0 0.0
  %2588 = vmatpush1.msra.mxu0 0.0
  %2589 = vmatprep.subr.mxu0 0.0
  %2590 = vmatpush1.msra.mxu0 0.0
  %2591 = vmatprep.subr.mxu0 0.0
  %2592 = vmatpush1.msra.mxu0 0.0
  %2593 = vmatprep.subr.mxu0 0.0
  %2594 = vmatpush1.msra.mxu0 0.0
  %2595 = vmatprep.subr.mxu0 0.0
  %2596 = vmatpush1.msra.mxu0 0.0
  %2597 = vmatprep.subr.mxu0 0.0
  %2598 = vmatpush1.msra.mxu0 0.0
  %2599 = vmatprep.subr.mxu0 0.0
  %2600 = vmatpush1.msra.mxu0 0.0
  %2601 = vmatprep.subr.mxu0 0.0
  %2602 = vmatpush1.msra.mxu0 0.0
  %2603 = vmatprep.subr.mxu0 0.0
  %2604 = vmatpush1.msra.mxu0 0.0
  %2605 = vmatprep.subr.mxu0 0.0
  %2606 = vmatpush1.msra.mxu0 0.0
  %2607 = vmatprep.subr.mxu0 0.0
  %2608 = vmatpush1.msra.mxu0 0.0
  %2609 = vmatprep.subr.mxu0 0.0
  %2610 = vmatpush1.msra.mxu0 0.0
  %2611 = vmatprep.subr.mxu0 0.0
  %2612 = vmatpush1.msra.mxu0 0.0
  %2613 = vmatprep.subr.mxu0 0.0
  %2614 = vmatpush1.msra.mxu0 0.0
  %2615 = vmatprep.mubr.f32.mxu0 0.0
  %2616 = vmatmul.mubr.f32.gmra.mrb[0].mxu0 %v2549
  %v2617 = vpop.f32.mrb[0].mxu0
  %v2618 = vadd.f32 %v32, %v2617
  %v2619 = vpop.f32.mrb[0].mxu0
  %2620 = vdwg.mxu0
  %v2621 = vsel %vm393, %v2618, -inf
  %2622 = vmax.xlane.f32.xlu0 %v2621
  %v2623 = vpop.xlane.xlu0 %2622
  %v2624 = vsub.f32 %v2618, %v2623
  %v2625 = vmul.f32 %v2624, 1.442695
  %v2626 = vpow.pop %v2625
  %v2627 = vsel %vm393, %v2626, 0.0
  %2628 = vadd.xlane.f32.xlu0 %v2627
  %v2629 = vpop.xlane.xlu0 %2628
  %v2630 = vrcp.pop %v2629
  %v2631 = vmul.f32 %v2626, %v2630
  %v2632 = vld [vmem:[%s2 + $0x6] sm:$0x1]
  %v2633 = vadd.f32 %v2618, %v2632
  %v2634 = vsel %vm393, %v2633, -inf
  %2635 = vmax.xlane.f32.xlu0 %v2634
  %v2636 = vpop.xlane.xlu0 %2635
  %vm2637 = vcmp.eq.f32.partialorder %v2633, %v2636
  %v2638 = vsel %vm2637, %v34, 4
  %v2639 = vsel %vm393, %v2638, 2147483647
  %v2640 = vand.u32 %v2639, 65535
  %v2641 = vshra.s32 %v2639, 16
  %v2642 = vcvt.s32.f32 %v2640
  %v2643 = vcvt.s32.f32 %v2641
  %2644 = vmin.xlane.f32.xlu0 %v2643
  %v2645 = vpop.xlane.xlu0 %2644
  %vm2646 = vcmp.eq.f32.partialorder %v2643, %v2645
  %v2647 = vsel %vm2646, %v2642, inf
  %2648 = vmin.xlane.f32.xlu0 %v2647
  %v2649 = vpop.xlane.xlu0 %2648
  %v2650 = vcvt.f32.s32 %v2649
  %v2651 = vcvt.f32.s32 %v2645
  %v2652 = vshll.u32 %v2651, 16
  %v2653 = vadd.s32 %v2652, %v2650
  %vm2654 = vcmp.eq.s32.totalorder %v34, %v2653
  %v2655 = vsel %vm2654, 1, 0
  %v2656 = vcvt.s32.f32 %v2655
  %v2657 = vlaneseq
  %v2658 = vshrl.u32 %v2657, 7
  %v2659 = vsub.s32 0, %v2658
  %v2660 = vrot.slane %v2653, %v2659
  %vm2661 = vcmp.eq.s32.totalorder %v36, %v2660
  %v2662 = vsel %vm2661, 1, 0
  %v2663 = vcvt.s32.f32 %v2662
  %2664 = vst.msk [vmem:[%s7 + $0x6] sm:$0x1] %vm393, %v2631
  %2666 = vrot.lane.b32.xlu0 %v2656, 4
  %v2667 = vpop.permute.xlu0 %2666
  %2669 = vst.msk [vmem:[%s7 + $0x6] sm:$0x1] %vm442, %v2667
  %s2670 = scalar_lea.vmem %s1, 112
  %v2671 = vld [vmem:[%s2670] sm:$0xff]
  %v2672 = vld [vmem:[%s2670 + $0x8] sm:$0xff]
  %v2673 = vmul.f32 %v2663, %v26
  %v2674 = vsel %vm50, %v2673, 0.0
  %v2675 = vrot.slane %v2674, 4
  %v2676 = vadd.f32 %v2674, %v2675
  %v2677 = vrot.slane %v2676, 2
  %v2678 = vadd.f32 %v2676, %v2677
  %v2679 = vrot.slane %v2678, 1
  %v2680 = vadd.f32 %v2678, %v2679
  %2682 = vset.pattern.permute.xlu0 0
  %2683 = vperm.xlu0 %2682, %v2671
  %v2684 = vpop.permute.xlu0 %2683
  %2687 = vset.pattern.permute.xlu0 0
  %2688 = vperm.xlu0 %2687, %v2672
  %v2689 = vpop.permute.xlu0 %2688
  %v2691 = vmul.f32 %v2684, %v71
  %v2692 = vmul.f32 %v2689, %v71
  %2693 = vmatprep.subr.mxu0 0.0
  %2694 = vmatpush1.msra.mxu0 %v25
  %2695 = vmatprep.subr.mxu0 0.0
  %2696 = vmatpush1.msra.mxu0 0.0
  %2697 = vmatprep.subr.mxu0 0.0
  %2698 = vmatpush1.msra.mxu0 0.0
  %2699 = vmatprep.subr.mxu0 0.0
  %2700 = vmatpush1.msra.mxu0 0.0
  %2701 = vmatprep.subr.mxu0 0.0
  %2702 = vmatpush1.msra.mxu0 0.0
  %2703 = vmatprep.subr.mxu0 0.0
  %2704 = vmatpush1.msra.mxu0 0.0
  %2705 = vmatprep.subr.mxu0 0.0
  %2706 = vmatpush1.msra.mxu0 0.0
  %2707 = vmatprep.subr.mxu0 0.0
  %2708 = vmatpush1.msra.mxu0 0.0
  %2709 = vmatprep.subr.mxu0 0.0
  %2710 = vmatpush1.msra.mxu0 0.0
  %2711 = vmatprep.subr.mxu0 0.0
  %2712 = vmatpush1.msra.mxu0 0.0
  %2713 = vmatprep.subr.mxu0 0.0
  %2714 = vmatpush1.msra.mxu0 0.0
  %2715 = vmatprep.subr.mxu0 0.0
  %2716 = vmatpush1.msra.mxu0 0.0
  %2717 = vmatprep.subr.mxu0 0.0
  %2718 = vmatpush1.msra.mxu0 0.0
  %2719 = vmatprep.subr.mxu0 0.0
  %2720 = vmatpush1.msra.mxu0 0.0
  %2721 = vmatprep.subr.mxu0 0.0
  %2722 = vmatpush1.msra.mxu0 0.0
  %2723 = vmatprep.subr.mxu0 0.0
  %2724 = vmatpush1.msra.mxu0 0.0
  %2725 = vmatprep.subr.mxu0 0.0
  %2726 = vmatpush1.msra.mxu0 0.0
  %2727 = vmatprep.subr.mxu0 0.0
  %2728 = vmatpush1.msra.mxu0 0.0
  %2729 = vmatprep.subr.mxu0 0.0
  %2730 = vmatpush1.msra.mxu0 0.0
  %2731 = vmatprep.subr.mxu0 0.0
  %2732 = vmatpush1.msra.mxu0 0.0
  %2733 = vmatprep.subr.mxu0 0.0
  %2734 = vmatpush1.msra.mxu0 0.0
  %2735 = vmatprep.subr.mxu0 0.0
  %2736 = vmatpush1.msra.mxu0 0.0
  %2737 = vmatprep.subr.mxu0 0.0
  %2738 = vmatpush1.msra.mxu0 0.0
  %2739 = vmatprep.subr.mxu0 0.0
  %2740 = vmatpush1.msra.mxu0 0.0
  %2741 = vmatprep.subr.mxu0 0.0
  %2742 = vmatpush1.msra.mxu0 0.0
  %2743 = vmatprep.subr.mxu0 0.0
  %2744 = vmatpush1.msra.mxu0 0.0
  %2745 = vmatprep.subr.mxu0 0.0
  %2746 = vmatpush1.msra.mxu0 0.0
  %2747 = vmatprep.subr.mxu0 0.0
  %2748 = vmatpush1.msra.mxu0 0.0
  %2749 = vmatprep.subr.mxu0 0.0
  %2750 = vmatpush1.msra.mxu0 0.0
  %2751 = vmatprep.subr.mxu0 0.0
  %2752 = vmatpush1.msra.mxu0 0.0
  %2753 = vmatprep.subr.mxu0 0.0
  %2754 = vmatpush1.msra.mxu0 0.0
  %2755 = vmatprep.subr.mxu0 0.0
  %2756 = vmatpush1.msra.mxu0 0.0
  %2757 = vmatprep.mubr.f32.mxu0 0.0
  %2758 = vmatmul.mubr.f32.gmra.mrb[0].mxu0 %v2455
  %v2759 = vpop.f32.mrb[0].mxu0
  %v2760 = vadd.f32 %v2691, %v2759
  %v2761 = vpop.f32.mrb[0].mxu0
  %2762 = vmatprep.mubr.f32.mxu0 0.0
  %2763 = vmatmul.mubr.f32.gmra.mrb[0].mxu0 %v2457
  %v2764 = vpop.f32.mrb[0].mxu0
  %v2765 = vadd.f32 %v2692, %v2764
  %v2766 = vpop.f32.mrb[0].mxu0
  %2767 = vdwg.mxu0
  %v2768 = vadd.f32 %v2760, %v2680
  %v2769 = vadd.f32 %v2765, %v2680
  %v2770 = vadd.f32 %v2768, %v161
  %v2771 = vadd.f32 %v2769, %v161
  %v2772 = vxor.u32 %v2770, 2147483648
  %v2773 = vxor.u32 %v2771, 2147483648
  %v2774 = vmul.f32 %v2772, 1.442695
  %v2775 = vpow.pop %v2774
  %v2776 = vmul.f32 %v2773, 1.442695
  %v2777 = vpow.pop %v2776
  %v2778 = vadd.f32 %v2775, 1.0
  %v2779 = vadd.f32 %v2777, 1.0
  %v2780 = vrcp.pop %v2778
  %v2781 = vmul.f32 1.0, %v2780
  %v2782 = vrcp.pop %v2779
  %v2783 = vmul.f32 1.0, %v2782
  %v2784 = vtanh.pop %v2770
  %v2785 = vtanh.pop %v2771
  %v2786 = vmul.f32 %v2781, %v2435
  %v2787 = vmul.f32 %v2783, %v2436
  %2790 = vrot.lane.b32.xlu0 %v2784, 112
  %v2791 = vpop.permute.xlu0 %2790
  %2792 = vrot.lane.b32.xlu0 %v2785, 112
  %v2793 = vpop.permute.xlu0 %2792
  %v2796 = vmul.f32 %v2781, %v2791
  %v2797 = vmul.f32 %v2783, %v2793
  %2800 = vrot.lane.b32.xlu0 %v2796, 8
  %v2801 = vpop.permute.xlu0 %2800
  %2802 = vrot.lane.b32.xlu0 %v2797, 8
  %v2803 = vpop.permute.xlu0 %2802
  %v2806 = vadd.f32 %v2786, %v2801
  %v2807 = vadd.f32 %v2787, %v2803
  %v2808 = vtanh.pop %v2806
  %v2809 = vtanh.pop %v2807
  %2812 = vrot.lane.b32.xlu0 %v2808, 16
  %v2813 = vpop.permute.xlu0 %2812
  %2814 = vrot.lane.b32.xlu0 %v2809, 16
  %v2815 = vpop.permute.xlu0 %2814
  %v2818 = vmul.f32 %v2781, %v2813
  %v2819 = vmul.f32 %v2783, %v2815
  %2822 = vrot.lane.b32.xlu0 %v2818, 104
  %v2823 = vpop.permute.xlu0 %2822
  %2824 = vrot.lane.b32.xlu0 %v2819, 104
  %v2825 = vpop.permute.xlu0 %2824
  %v2826 = vsel %vm74, %v2823, 0
  %v2828 = vsel %vm74, %v2825, 0
  %2830 = vmatprep.subr.mxu0 0.0
  %2831 = vmatpush1.msra.mxu0 %v29
  %2832 = vmatprep.subr.mxu0 0.0
  %2833 = vmatpush1.msra.mxu0 0.0
  %2834 = vmatprep.subr.mxu0 0.0
  %2835 = vmatpush1.msra.mxu0 0.0
  %2836 = vmatprep.subr.mxu0 0.0
  %2837 = vmatpush1.msra.mxu0 0.0
  %2838 = vmatprep.subr.mxu0 0.0
  %2839 = vmatpush1.msra.mxu0 0.0
  %2840 = vmatprep.subr.mxu0 0.0
  %2841 = vmatpush1.msra.mxu0 0.0
  %2842 = vmatprep.subr.mxu0 0.0
  %2843 = vmatpush1.msra.mxu0 0.0
  %2844 = vmatprep.subr.mxu0 0.0
  %2845 = vmatpush1.msra.mxu0 0.0
  %2846 = vmatprep.subr.mxu0 0.0
  %2847 = vmatpush1.msra.mxu0 0.0
  %2848 = vmatprep.subr.mxu0 0.0
  %2849 = vmatpush1.msra.mxu0 0.0
  %2850 = vmatprep.subr.mxu0 0.0
  %2851 = vmatpush1.msra.mxu0 0.0
  %2852 = vmatprep.subr.mxu0 0.0
  %2853 = vmatpush1.msra.mxu0 0.0
  %2854 = vmatprep.subr.mxu0 0.0
  %2855 = vmatpush1.msra.mxu0 0.0
  %2856 = vmatprep.subr.mxu0 0.0
  %2857 = vmatpush1.msra.mxu0 0.0
  %2858 = vmatprep.subr.mxu0 0.0
  %2859 = vmatpush1.msra.mxu0 0.0
  %2860 = vmatprep.subr.mxu0 0.0
  %2861 = vmatpush1.msra.mxu0 0.0
  %2862 = vmatprep.subr.mxu0 0.0
  %2863 = vmatpush1.msra.mxu0 0.0
  %2864 = vmatprep.subr.mxu0 0.0
  %2865 = vmatpush1.msra.mxu0 0.0
  %2866 = vmatprep.subr.mxu0 0.0
  %2867 = vmatpush1.msra.mxu0 0.0
  %2868 = vmatprep.subr.mxu0 0.0
  %2869 = vmatpush1.msra.mxu0 0.0
  %2870 = vmatprep.subr.mxu0 0.0
  %2871 = vmatpush1.msra.mxu0 0.0
  %2872 = vmatprep.subr.mxu0 0.0
  %2873 = vmatpush1.msra.mxu0 0.0
  %2874 = vmatprep.subr.mxu0 0.0
  %2875 = vmatpush1.msra.mxu0 0.0
  %2876 = vmatprep.subr.mxu0 0.0
  %2877 = vmatpush1.msra.mxu0 0.0
  %2878 = vmatprep.subr.mxu0 0.0
  %2879 = vmatpush1.msra.mxu0 0.0
  %2880 = vmatprep.subr.mxu0 0.0
  %2881 = vmatpush1.msra.mxu0 0.0
  %2882 = vmatprep.subr.mxu0 0.0
  %2883 = vmatpush1.msra.mxu0 0.0
  %2884 = vmatprep.subr.mxu0 0.0
  %2885 = vmatpush1.msra.mxu0 0.0
  %2886 = vmatprep.subr.mxu0 0.0
  %2887 = vmatpush1.msra.mxu0 0.0
  %2888 = vmatprep.subr.mxu0 0.0
  %2889 = vmatpush1.msra.mxu0 0.0
  %2890 = vmatprep.subr.mxu0 0.0
  %2891 = vmatpush1.msra.mxu0 0.0
  %2892 = vmatprep.subr.mxu0 0.0
  %2893 = vmatpush1.msra.mxu0 0.0
  %2894 = vmatprep.mubr.f32.mxu0 0.0
  %2895 = vmatmul.mubr.f32.gmra.mrb[0].mxu0 %v2826
  %v2896 = vpop.f32.mrb[0].mxu0
  %v2897 = vadd.f32 0.0, %v2896
  %v2898 = vpop.f32.mrb[0].mxu0
  %2899 = vmatprep.mubr.f32.mxu0 0.0
  %2900 = vmatmul.mubr.f32.gmra.mrb[0].mxu0 %v2828
  %v2901 = vpop.f32.mrb[0].mxu0
  %v2902 = vadd.f32 0.0, %v2901
  %v2903 = vpop.f32.mrb[0].mxu0
  %2904 = vdwg.mxu0
  %v2905 = vtanh.pop %v2897
  %v2906 = vtanh.pop %v2902
  %v2907 = vmul.f32 %v2684, %v2905
  %v2908 = vmul.f32 %v2689, %v2906
  %v2909 = vsel %vm309, %v2907, 0.0
  %v2910 = vsel %vm309, %v2908, 0.0
  %v2911 = vadd.f32 %v2909, %v2910
  %v2912 = vrot.slane %v2911, 4
  %v2913 = vadd.f32 %v2911, %v2912
  %v2914 = vrot.slane %v2913, 2
  %v2915 = vadd.f32 %v2913, %v2914
  %v2916 = vrot.slane %v2915, 1
  %v2917 = vadd.f32 %v2915, %v2916
  %v2918 = vtanh.pop %v2917
  %v2920 = vsel %vm309, %v2918, 0
  %2922 = vmatprep.subr.mxu0 0.0
  %2923 = vmatpush1.msra.mxu0 %v30
  %2924 = vmatprep.subr.mxu0 0.0
  %2925 = vmatpush1.msra.mxu0 %v31
  %2926 = vmatprep.subr.mxu0 0.0
  %2927 = vmatpush1.msra.mxu0 0.0
  %2928 = vmatprep.subr.mxu0 0.0
  %2929 = vmatpush1.msra.mxu0 0.0
  %2930 = vmatprep.subr.mxu0 0.0
  %2931 = vmatpush1.msra.mxu0 0.0
  %2932 = vmatprep.subr.mxu0 0.0
  %2933 = vmatpush1.msra.mxu0 0.0
  %2934 = vmatprep.subr.mxu0 0.0
  %2935 = vmatpush1.msra.mxu0 0.0
  %2936 = vmatprep.subr.mxu0 0.0
  %2937 = vmatpush1.msra.mxu0 0.0
  %2938 = vmatprep.subr.mxu0 0.0
  %2939 = vmatpush1.msra.mxu0 0.0
  %2940 = vmatprep.subr.mxu0 0.0
  %2941 = vmatpush1.msra.mxu0 0.0
  %2942 = vmatprep.subr.mxu0 0.0
  %2943 = vmatpush1.msra.mxu0 0.0
  %2944 = vmatprep.subr.mxu0 0.0
  %2945 = vmatpush1.msra.mxu0 0.0
  %2946 = vmatprep.subr.mxu0 0.0
  %2947 = vmatpush1.msra.mxu0 0.0
  %2948 = vmatprep.subr.mxu0 0.0
  %2949 = vmatpush1.msra.mxu0 0.0
  %2950 = vmatprep.subr.mxu0 0.0
  %2951 = vmatpush1.msra.mxu0 0.0
  %2952 = vmatprep.subr.mxu0 0.0
  %2953 = vmatpush1.msra.mxu0 0.0
  %2954 = vmatprep.subr.mxu0 0.0
  %2955 = vmatpush1.msra.mxu0 0.0
  %2956 = vmatprep.subr.mxu0 0.0
  %2957 = vmatpush1.msra.mxu0 0.0
  %2958 = vmatprep.subr.mxu0 0.0
  %2959 = vmatpush1.msra.mxu0 0.0
  %2960 = vmatprep.subr.mxu0 0.0
  %2961 = vmatpush1.msra.mxu0 0.0
  %2962 = vmatprep.subr.mxu0 0.0
  %2963 = vmatpush1.msra.mxu0 0.0
  %2964 = vmatprep.subr.mxu0 0.0
  %2965 = vmatpush1.msra.mxu0 0.0
  %2966 = vmatprep.subr.mxu0 0.0
  %2967 = vmatpush1.msra.mxu0 0.0
  %2968 = vmatprep.subr.mxu0 0.0
  %2969 = vmatpush1.msra.mxu0 0.0
  %2970 = vmatprep.subr.mxu0 0.0
  %2971 = vmatpush1.msra.mxu0 0.0
  %2972 = vmatprep.subr.mxu0 0.0
  %2973 = vmatpush1.msra.mxu0 0.0
  %2974 = vmatprep.subr.mxu0 0.0
  %2975 = vmatpush1.msra.mxu0 0.0
  %2976 = vmatprep.subr.mxu0 0.0
  %2977 = vmatpush1.msra.mxu0 0.0
  %2978 = vmatprep.subr.mxu0 0.0
  %2979 = vmatpush1.msra.mxu0 0.0
  %2980 = vmatprep.subr.mxu0 0.0
  %2981 = vmatpush1.msra.mxu0 0.0
  %2982 = vmatprep.subr.mxu0 0.0
  %2983 = vmatpush1.msra.mxu0 0.0
  %2984 = vmatprep.subr.mxu0 0.0
  %2985 = vmatpush1.msra.mxu0 0.0
  %2986 = vmatprep.mubr.f32.mxu0 0.0
  %2987 = vmatmul.mubr.f32.gmra.mrb[0].mxu0 %v2920
  %v2988 = vpop.f32.mrb[0].mxu0
  %v2989 = vadd.f32 %v32, %v2988
  %v2990 = vpop.f32.mrb[0].mxu0
  %2991 = vdwg.mxu0
  %v2992 = vsel %vm393, %v2989, -inf
  %2993 = vmax.xlane.f32.xlu0 %v2992
  %v2994 = vpop.xlane.xlu0 %2993
  %v2995 = vsub.f32 %v2989, %v2994
  %v2996 = vmul.f32 %v2995, 1.442695
  %v2997 = vpow.pop %v2996
  %v2998 = vsel %vm393, %v2997, 0.0
  %2999 = vadd.xlane.f32.xlu0 %v2998
  %v3000 = vpop.xlane.xlu0 %2999
  %v3001 = vrcp.pop %v3000
  %v3002 = vmul.f32 %v2997, %v3001
  %v3003 = vld [vmem:[%s2 + $0x7] sm:$0x1]
  %v3004 = vadd.f32 %v2989, %v3003
  %v3005 = vsel %vm393, %v3004, -inf
  %3006 = vmax.xlane.f32.xlu0 %v3005
  %v3007 = vpop.xlane.xlu0 %3006
  %vm3008 = vcmp.eq.f32.partialorder %v3004, %v3007
  %v3009 = vsel %vm3008, %v34, 4
  %v3010 = vsel %vm393, %v3009, 2147483647
  %v3011 = vand.u32 %v3010, 65535
  %v3012 = vshra.s32 %v3010, 16
  %v3013 = vcvt.s32.f32 %v3011
  %v3014 = vcvt.s32.f32 %v3012
  %3015 = vmin.xlane.f32.xlu0 %v3014
  %v3016 = vpop.xlane.xlu0 %3015
  %vm3017 = vcmp.eq.f32.partialorder %v3014, %v3016
  %v3018 = vsel %vm3017, %v3013, inf
  %3019 = vmin.xlane.f32.xlu0 %v3018
  %v3020 = vpop.xlane.xlu0 %3019
  %v3021 = vcvt.f32.s32 %v3020
  %v3022 = vcvt.f32.s32 %v3016
  %v3023 = vshll.u32 %v3022, 16
  %v3024 = vadd.s32 %v3023, %v3021
  %vm3025 = vcmp.eq.s32.totalorder %v34, %v3024
  %v3026 = vsel %vm3025, 1, 0
  %v3027 = vcvt.s32.f32 %v3026
  %3028 = vst.msk [vmem:[%s7 + $0x7] sm:$0x1] %vm393, %v3002
  %3030 = vrot.lane.b32.xlu0 %v3027, 4
  %v3031 = vpop.permute.xlu0 %3030
  %3033 = vst.msk [vmem:[%s7 + $0x7] sm:$0x1] %vm442, %v3031
  %3036 = vst.msk [vmem:[%s6] sm:$0xff] %vm74, %v2823
  %3037 = vst.msk [vmem:[%s6 + $0x8] sm:$0xff] %vm74, %v2825
  %vm3038 = vcmask 130112
  %3039 = vst.msk [vmem:[%s6] sm:$0xff] %vm3038, %v2806
  %3040 = vst.msk [vmem:[%s6 + $0x8] sm:$0xff] %vm3038, %v2807
  // Predicated region
  $region26: #{pinn_rollout.1} parent=0 // pred_check
    _
  $region27: #{pinn_rollout.1} parent=0 // pred_check_branch
    %3042 = sbr.rel (0) target = $region29
  $region28: #{pinn_rollout.1} parent=0 // pred_region
    _
  $region29: #{pinn_rollout.1} parent=0 // pred_fallthru
    _
  // Predicated region
  $region30: #{pinn_rollout.1} parent=0 // pred_check
    _
  $region31: #{pinn_rollout.1} parent=0 // pred_check_branch
    %3044 = sbr.rel (0) target = $region33
  $region32: #{pinn_rollout.1} parent=0 // pred_region
    _
  $region33: #{pinn_rollout.1} parent=0 // pred_fallthru
    _
  // Predicated region
  $region34: #{pinn_rollout.1} parent=0 // pred_check
    _
  $region35: #{pinn_rollout.1} parent=0 // pred_check_branch
    %3046 = sbr.rel (0) target = $region37
  $region36: #{pinn_rollout.1} parent=0 // pred_region
    _
  $region37: #{pinn_rollout.1} parent=0 // pred_fallthru
    _
  // Predicated region
  $region38: #{pinn_rollout.1} parent=0 // pred_check
    _
  $region39: #{pinn_rollout.1} parent=0 // pred_check_branch
    %3048 = sbr.rel (0) target = $region41
  $region40: #{pinn_rollout.1} parent=0 // pred_region
    _
  $region41: #{pinn_rollout.1} parent=0 // pred_fallthru
    _

</llo_original>
